<compile_context>
chip_gen: v6e
topology: v6e:2x2x1
jax: 0.10.0
libtpu: 0.0.40
codegen_flags: <defaults>
</compile_context>

<pallas_src>
import math
from functools import partial

import jax
import jax.numpy as jnp
from jax import lax
from jax.experimental import pallas as pl
from jax.experimental.pallas import tpu as pltpu

_VMEM_LIMIT_BYTES = 48 * 1024 * 1024  # under v7x's 64 MiB; raises v5e's 16 MiB default


def _tile(n, target, align=8):
    """Largest tile <= target that divides n and is a multiple of `align`.

    Falls back to the full dimension (always legal as a block size)."""
    if n <= target:
        return n
    t = (target // align) * align
    while t >= align:
        if n % t == 0:
            return t
        t -= align
    return n


def _cp(semantics):
    return pltpu.CompilerParams(dimension_semantics=semantics,
                                vmem_limit_bytes=_VMEM_LIMIT_BYTES)


# ----------------------------- Pallas kernels ------------------------------

def ln_linear_kernel(x_ref, g_ref, b_ref, w_ref, bias_ref, o_ref, *, activation):
    # LayerNorm (f32) fused with x @ W + b (bf16 MXU inputs, f32 accumulation).
    x = x_ref[...].astype(jnp.float32)                       # (tm, C)
    mean = jnp.mean(x, axis=-1, keepdims=True)
    var = jnp.mean(jnp.square(x - mean), axis=-1, keepdims=True)
    h = (x - mean) * lax.rsqrt(var + 1e-5)
    h = h * g_ref[...].astype(jnp.float32) + b_ref[...].astype(jnp.float32)
    acc = jnp.dot(h.astype(w_ref.dtype), w_ref[...],
                  preferred_element_type=jnp.float32)
    acc = acc + bias_ref[...].astype(jnp.float32)
    if activation == "gelu":
        # exact (erf) GELU to match torch.nn.GELU() default
        acc = 0.5 * acc * (1.0 + lax.erf(acc * (1.0 / math.sqrt(2.0))))
    o_ref[...] = acc.astype(o_ref.dtype)


def linear_residual_kernel(x_ref, w_ref, bias_ref, res_ref, o_ref):
    # out = residual + x @ W + b   (residual add fused, saves an HBM round-trip)
    acc = jnp.dot(x_ref[...], w_ref[...], preferred_element_type=jnp.float32)
    acc = acc + bias_ref[...].astype(jnp.float32) + res_ref[...].astype(jnp.float32)
    o_ref[...] = acc.astype(o_ref.dtype)


def flash_attn_kernel(q_ref, k_ref, v_ref, o_ref, m_ref, l_ref, acc_ref,
                      *, scale, tq, tkv):
    # Online-softmax causal attention over KV tiles; several heads per block.
    qi = pl.program_id(1)
    ki = pl.program_id(2)

    @pl.when(ki == 0)
    def _():
        m_ref[...] = jnp.full_like(m_ref, -1e30)
        l_ref[...] = jnp.zeros_like(l_ref)
        acc_ref[...] = jnp.zeros_like(acc_ref)

    q_start = qi * tq
    k_start = ki * tkv
    q_end = q_start + tq - 1      # last row covered by this Q tile
    k_end = k_start + tkv - 1     # last col covered by this KV tile

    def update(masked):
        s = jnp.einsum("bqd,bkd->bqk", q_ref[...], k_ref[...],
                       preferred_element_type=jnp.float32) * scale   # (hblk,tq,tkv)
        if masked:
            row = q_start + lax.broadcasted_iota(jnp.int32, (tq, tkv), 0)
            col = k_start + lax.broadcasted_iota(jnp.int32, (tq, tkv), 1)
            s = jnp.where((col <= row)[None, :, :], s, -1e30)        # causal mask
        m_prev = m_ref[...]
        m_new = jnp.maximum(m_prev, jnp.max(s, axis=-1, keepdims=True))
        alpha = jnp.exp(m_prev - m_new)
        p = jnp.exp(s - m_new)
        l_ref[...] = alpha * l_ref[...] + jnp.sum(p, axis=-1, keepdims=True)
        acc_ref[...] = alpha * acc_ref[...] + jnp.einsum(
            "bqk,bkd->bqd", p.astype(v_ref.dtype), v_ref[...],
            preferred_element_type=jnp.float32)
        m_ref[...] = m_new

    # KV tile entirely below the diagonal: mask-free fast path.
    @pl.when(k_end <= q_start)
    def _():
        update(masked=False)

    # KV tile straddles the diagonal: per-element causal mask.
    @pl.when(jnp.logical_and(k_end > q_start, k_start <= q_end))
    def _():
        update(masked=True)

    # KV tiles fully above the diagonal are skipped (neither branch fires).

    @pl.when(ki == pl.num_programs(2) - 1)
    def _():
        o_ref[...] = (acc_ref[...] *
                      pl.reciprocal(l_ref[...], approx=True)).astype(o_ref.dtype)


def lnf_lm_head_kernel(x_ref, g_ref, b_ref, w_ref, o_ref):
    # final LayerNorm fused with logits = ln(x) @ wte.T  (no transposed copy:
    # contract the C axes of x and wte directly).
    x = x_ref[...].astype(jnp.float32)
    mean = jnp.mean(x, axis=-1, keepdims=True)
    var = jnp.mean(jnp.square(x - mean), axis=-1, keepdims=True)
    h = (x - mean) * lax.rsqrt(var + 1e-5)
    h = h * g_ref[...].astype(jnp.float32) + b_ref[...].astype(jnp.float32)
    o_ref[...] = lax.dot_general(
        h.astype(w_ref.dtype), w_ref[...],
        dimension_numbers=(((1,), (1,)), ((), ())),
        preferred_element_type=jnp.float32).astype(o_ref.dtype)


# ----------------------------- Pallas wrappers ------------------------------

def ln_linear(x2d, g, b, w, bias, activation=None, tm_target=512):
    M, C = x2d.shape
    N = w.shape[1]
    tm = _tile(M, tm_target)
    return pl.pallas_call(
        partial(ln_linear_kernel, activation=activation),
        out_shape=jax.ShapeDtypeStruct((M, N), x2d.dtype),
        grid=(M // tm,),
        in_specs=[pl.BlockSpec((tm, C), lambda i: (i, 0)),
                  pl.BlockSpec((1, C), lambda i: (0, 0)),
                  pl.BlockSpec((1, C), lambda i: (0, 0)),
                  pl.BlockSpec((C, N), lambda i: (0, 0)),
                  pl.BlockSpec((1, N), lambda i: (0, 0))],
        out_specs=pl.BlockSpec((tm, N), lambda i: (i, 0)),
        compiler_params=_cp(("parallel",)),
    )(x2d, g.reshape(1, C), b.reshape(1, C), w, bias.reshape(1, N))


def linear_residual(x2d, w, bias, res2d, tm_target=512):
    M, K = x2d.shape
    N = w.shape[1]
    tm = _tile(M, tm_target)
    return pl.pallas_call(
        linear_residual_kernel,
        out_shape=jax.ShapeDtypeStruct((M, N), res2d.dtype),
        grid=(M // tm,),
        in_specs=[pl.BlockSpec((tm, K), lambda i: (i, 0)),
                  pl.BlockSpec((K, N), lambda i: (0, 0)),
                  pl.BlockSpec((1, N), lambda i: (0, 0)),
                  pl.BlockSpec((tm, N), lambda i: (i, 0))],
        out_specs=pl.BlockSpec((tm, N), lambda i: (i, 0)),
        compiler_params=_cp(("parallel",)),
    )(x2d, w, bias.reshape(1, N), res2d)


def flash_attention(q, k, v, tq_target=128, tkv_target=128, hblk_target=8):
    # q, k, v: (B*nh, T, hd)
    BH, T, hd = q.shape
    scale = 1.0 / math.sqrt(hd)
    tq = _tile(T, tq_target)
    tkv = _tile(T, tkv_target)
    hblk = _tile(BH, hblk_target, align=1)
    q_spec = pl.BlockSpec((hblk, tq, hd), lambda b, qi, ki: (b, qi, 0))
    kv_spec = pl.BlockSpec((hblk, tkv, hd), lambda b, qi, ki: (b, ki, 0))
    return pl.pallas_call(
        partial(flash_attn_kernel, scale=scale, tq=tq, tkv=tkv),
        out_shape=jax.ShapeDtypeStruct((BH, T, hd), q.dtype),
        grid=(BH // hblk, T // tq, T // tkv),
        in_specs=[q_spec, kv_spec, kv_spec],
        out_specs=pl.BlockSpec((hblk, tq, hd), lambda b, qi, ki: (b, qi, 0)),
        scratch_shapes=[pltpu.VMEM((hblk, tq, 1), jnp.float32),
                        pltpu.VMEM((hblk, tq, 1), jnp.float32),
                        pltpu.VMEM((hblk, tq, hd), jnp.float32)],
        compiler_params=_cp(("parallel", "parallel", "arbitrary")),
    )(q, k, v)


def lnf_lm_head(x2d, g, b, wte, tm_target=256, tv_target=512):
    # logits = LayerNorm(x) @ wte.T, tiled over rows and the vocab axis.
    M, C = x2d.shape
    V = wte.shape[0]
    tm = _tile(M, tm_target)
    tv = _tile(V, tv_target)
    # TODO(synk): for vocab sizes with no nice divisor (e.g. 50257) pre-pad wte
    # once at init to a multiple of the vocab tile instead of the full-V fallback.
    return pl.pallas_call(
        lnf_lm_head_kernel,
        out_shape=jax.ShapeDtypeStruct((M, V), jnp.float32),
        grid=(M // tm, V // tv),
        in_specs=[pl.BlockSpec((tm, C), lambda i, j: (i, 0)),
                  pl.BlockSpec((1, C), lambda i, j: (0, 0)),
                  pl.BlockSpec((1, C), lambda i, j: (0, 0)),
                  pl.BlockSpec((tv, C), lambda i, j: (j, 0))],
        out_specs=pl.BlockSpec((tm, tv), lambda i, j: (i, j)),
        compiler_params=_cp(("parallel", "parallel")),
    )(x2d, g.reshape(1, C), b.reshape(1, C), wte)


# ----------------------------- model definition -----------------------------

def init_params(key, cfg):
    C, V, L = cfg["n_embd"], cfg["vocab_size"], cfg["n_layer"]
    Tmax = cfg["block_size"] + cfg["n_regist"]
    std = 0.02
    proj_std = 0.02 / math.sqrt(2 * L)

    keys = iter(jax.random.split(key, 2 + 4 * L))

    def nrm(shape, s):
        # bf16 weight storage: halves HBM traffic and feeds the MXU at bf16 peak.
        return (s * jax.random.normal(next(keys), shape, dtype=jnp.float32)
                ).astype(jnp.bfloat16)

    params = {
        "wte": nrm((V, C), std),            # tied with lm_head
        "wpe": nrm((Tmax, C), std),
        "lnf_w": jnp.ones((C,), jnp.float32),
        "lnf_b": jnp.zeros((C,), jnp.float32),
        "blocks": [],
    }
    for _ in range(L):
        params["blocks"].append({
            "ln1_w": jnp.ones((C,), jnp.float32),
            "ln1_b": jnp.zeros((C,), jnp.float32),
            "attn_w": nrm((C, 3 * C), std),          # stored (in, out); x @ W
            "attn_b": jnp.zeros((3 * C,), jnp.float32),
            "attn_proj_w": nrm((C, C), proj_std),
            "attn_proj_b": jnp.zeros((C,), jnp.float32),
            "ln2_w": jnp.ones((C,), jnp.float32),
            "ln2_b": jnp.zeros((C,), jnp.float32),
            "fc_w": nrm((C, 4 * C), std),
            "fc_b": jnp.zeros((4 * C,), jnp.float32),
            "mlp_proj_w": nrm((4 * C, C), proj_std),
            "mlp_proj_b": jnp.zeros((C,), jnp.float32),
        })
    return params


def gpt_forward(params, idx, cfg):
    B, T = idx.shape
    C, nh = cfg["n_embd"], cfg["n_head"]
    hd = C // nh

    # embedding gathers (glue, plain JAX); dropout p=0 -> identity
    tok_emb = params["wte"][idx]                                  # (B, T, C) bf16
    pos_emb = params["wpe"][jnp.arange(T) + cfg["n_regist"]]      # (T, C)
    x = (tok_emb + pos_emb).reshape(B * T, C)

    def to_heads(t):      # (BT, C) -> (B*nh, T, hd)
        return t.reshape(B, T, nh, hd).transpose(0, 2, 1, 3).reshape(B * nh, T, hd)

    def from_heads(t):    # (B*nh, T, hd) -> (BT, C)
        return t.reshape(B, nh, T, hd).transpose(0, 2, 1, 3).reshape(B * T, C)

    for blk in params["blocks"]:
        # --- attention sub-block: LN1 fused into QKV, residual fused into proj ---
        qkv = ln_linear(x, blk["ln1_w"], blk["ln1_b"], blk["attn_w"], blk["attn_b"])
        q, k, v = jnp.split(qkv, 3, axis=-1)
        y = flash_attention(to_heads(q), to_heads(k), to_heads(v))
        x = linear_residual(from_heads(y), blk["attn_proj_w"], blk["attn_proj_b"], x)
        # --- MLP sub-block: LN2+fc+GELU fused, residual fused into proj ---
        h = ln_linear(x, blk["ln2_w"], blk["ln2_b"], blk["fc_w"], blk["fc_b"],
                      activation="gelu")
        x = linear_residual(h, blk["mlp_proj_w"], blk["mlp_proj_b"], x)

    logits = lnf_lm_head(x, params["lnf_w"], params["lnf_b"], params["wte"])
    return logits.reshape(B, T, -1)
    # TODO(synk): n_regist>0 register-token path, sliding-window (wind) mask and
    # the cross-entropy loss path (targets is not None) are not implemented;
    # eval path with config defaults only.


# ----------------------------- pure-JAX reference ---------------------------

def ref_forward(params, idx, cfg):
    B, T = idx.shape
    C, nh = cfg["n_embd"], cfg["n_head"]
    hd = C // nh
    f32 = lambda a: a.astype(jnp.float32)

    def ln(x, w, b):
        m = jnp.mean(x, axis=-1, keepdims=True)
        v = jnp.mean((x - m) ** 2, axis=-1, keepdims=True)
        return (x - m) * lax.rsqrt(v + 1e-5) * w + b

    gelu = lambda x: 0.5 * x * (1.0 + lax.erf(x / math.sqrt(2.0)))

    x = f32(params["wte"])[idx] + f32(params["wpe"])[jnp.arange(T) + cfg["n_regist"]]
    for blk in params["blocks"]:
        h = ln(x, f32(blk["ln1_w"]), f32(blk["ln1_b"]))
        qkv = h @ f32(blk["attn_w"]) + f32(blk["attn_b"])
        q, k, v = jnp.split(qkv, 3, axis=-1)
        q = q.reshape(B, T, nh, hd).transpose(0, 2, 1, 3)
        k = k.reshape(B, T, nh, hd).transpose(0, 2, 1, 3)
        v = v.reshape(B, T, nh, hd).transpose(0, 2, 1, 3)
        s = (q @ k.transpose(0, 1, 3, 2)) / math.sqrt(hd)
        mask = jnp.tril(jnp.ones((T, T), bool))
        s = jnp.where(mask, s, -jnp.inf)
        p = jax.nn.softmax(s, axis=-1)
        y = (p @ v).transpose(0, 2, 1, 3).reshape(B, T, C)
        x = x + (y @ f32(blk["attn_proj_w"]) + f32(blk["attn_proj_b"]))
        h = ln(x, f32(blk["ln2_w"]), f32(blk["ln2_b"]))
        h = gelu(h @ f32(blk["fc_w"]) + f32(blk["fc_b"]))
        x = x + (h @ f32(blk["mlp_proj_w"]) + f32(blk["mlp_proj_b"]))
    x = ln(x, f32(params["lnf_w"]), f32(params["lnf_b"]))
    return x @ f32(params["wte"]).T


# --------------------------------- main --------------------------------------

if __name__ == "__main__":
    cfg = dict(block_size=16, vocab_size=512, n_layer=2, n_head=4, n_embd=64,
               n_regist=0, dropout=0.0, bias=True, wind=None)

    params = init_params(jax.random.PRNGKey(0), cfg)

    B, T = 2, 8
    idx = jax.random.randint(jax.random.PRNGKey(1), (B, T), 0,
                             cfg["vocab_size"], dtype=jnp.int32)

    fwd = jax.jit(partial(gpt_forward, cfg=cfg))
    logits = jax.block_until_ready(fwd(params, idx))
    assert logits.shape == (B, T, cfg["vocab_size"])
    assert logits.dtype == jnp.float32

    ref = jax.block_until_ready(ref_forward(params, idx, cfg))
    max_err = float(jnp.max(jnp.abs(logits - ref)))
    assert jnp.allclose(logits, ref, atol=2e-2, rtol=2e-2), max_err

    print("KERNEL_OK")
</pallas_src>

<mosaic_0001>
module attributes {stable_mosaic.version = 11 : i64} {
  func.func @ln_linear_kernel(%arg0: i32, %arg1: memref<16x64xbf16, #tpu.memory_space<vmem>>, %arg2: memref<1x64xf32, #tpu.memory_space<vmem>>, %arg3: memref<1x64xf32, #tpu.memory_space<vmem>>, %arg4: memref<64x192xbf16, #tpu.memory_space<vmem>>, %arg5: memref<1x192xf32, #tpu.memory_space<vmem>>, %arg6: memref<16x192xbf16, #tpu.memory_space<vmem>>) attributes {dimension_semantics = [#tpu.dimension_semantics<parallel>], iteration_bounds = array<i64: 1>, scalar_prefetch = 0 : i64, scratch_operands = 0 : i64, tpu.core_type = #tpu.core_type<tc>, window_params = [{transform_indices = @transform_0, window_bounds = array<i64: 16, 64>}, {pipeline_mode = #tpu.pipeline_mode<synchronous>, transform_indices = @transform_1, window_bounds = array<i64: 1, 64>}, {pipeline_mode = #tpu.pipeline_mode<synchronous>, transform_indices = @transform_2, window_bounds = array<i64: 1, 64>}, {pipeline_mode = #tpu.pipeline_mode<synchronous>, transform_indices = @transform_3, window_bounds = array<i64: 64, 192>}, {pipeline_mode = #tpu.pipeline_mode<synchronous>, transform_indices = @transform_4, window_bounds = array<i64: 1, 192>}, {transform_indices = @transform_5, window_bounds = array<i64: 16, 192>}]} {
    %c0 = arith.constant 0 : index
    %c0_0 = arith.constant 0 : index
    %0 = vector.load %arg1[%c0, %c0_0] : memref<16x64xbf16, #tpu.memory_space<vmem>>, vector<16x64xbf16>
    %1 = arith.extf %0 : vector<16x64xbf16> to vector<16x64xf32>
    %cst = arith.constant dense<0.000000e+00> : vector<16xf32>
    %2 = vector.multi_reduction <add>, %1, %cst [1] : vector<16x64xf32> to vector<16xf32>
    %3 = vector.shape_cast %2 : vector<16xf32> to vector<16x1xf32>
    %cst_1 = arith.constant 6.400000e+01 : f32
    %4 = vector.broadcast %cst_1 : f32 to vector<16x1xf32>
    %5 = arith.divf %3, %4 : vector<16x1xf32>
    %6 = vector.broadcast %5 : vector<16x1xf32> to vector<16x64xf32>
    %7 = arith.subf %1, %6 : vector<16x64xf32>
    %8 = arith.mulf %7, %7 : vector<16x64xf32>
    %cst_2 = arith.constant dense<0.000000e+00> : vector<16xf32>
    %9 = vector.multi_reduction <add>, %8, %cst_2 [1] : vector<16x64xf32> to vector<16xf32>
    %10 = vector.shape_cast %9 : vector<16xf32> to vector<16x1xf32>
    %cst_3 = arith.constant 6.400000e+01 : f32
    %11 = vector.broadcast %cst_3 : f32 to vector<16x1xf32>
    %12 = arith.divf %10, %11 : vector<16x1xf32>
    %13 = vector.broadcast %5 : vector<16x1xf32> to vector<16x64xf32>
    %14 = arith.subf %1, %13 : vector<16x64xf32>
    %cst_4 = arith.constant 9.99999974E-6 : f32
    %15 = vector.broadcast %cst_4 : f32 to vector<16x1xf32>
    %16 = arith.addf %12, %15 : vector<16x1xf32>
    %17 = math.rsqrt %16 : vector<16x1xf32>
    %18 = vector.broadcast %17 : vector<16x1xf32> to vector<16x64xf32>
    %19 = arith.mulf %14, %18 : vector<16x64xf32>
    %c0_5 = arith.constant 0 : index
    %c0_6 = arith.constant 0 : index
    %20 = vector.load %arg2[%c0_5, %c0_6] : memref<1x64xf32, #tpu.memory_space<vmem>>, vector<1x64xf32>
    %21 = vector.broadcast %20 : vector<1x64xf32> to vector<16x64xf32>
    %22 = arith.mulf %19, %21 : vector<16x64xf32>
    %c0_7 = arith.constant 0 : index
    %c0_8 = arith.constant 0 : index
    %23 = vector.load %arg3[%c0_7, %c0_8] : memref<1x64xf32, #tpu.memory_space<vmem>>, vector<1x64xf32>
    %24 = vector.broadcast %23 : vector<1x64xf32> to vector<16x64xf32>
    %25 = arith.addf %22, %24 : vector<16x64xf32>
    %26 = arith.truncf %25 : vector<16x64xf32> to vector<16x64xbf16>
    %c0_9 = arith.constant 0 : index
    %c0_10 = arith.constant 0 : index
    %27 = vector.load %arg4[%c0_9, %c0_10] : memref<64x192xbf16, #tpu.memory_space<vmem>>, vector<64x192xbf16>
    %cst_11 = arith.constant dense<0.000000e+00> : vector<16x192xf32>
    %28 = tpu.matmul %26, %27, %cst_11 {dimension_numbers = #tpu.dot_dimension_numbers<[1], [0], [0], [1], [0, 0, 1, 1], [], []>} : vector<16x64xbf16>, vector<64x192xbf16>, vector<16x192xf32> -> vector<16x192xf32>
    %c0_12 = arith.constant 0 : index
    %c0_13 = arith.constant 0 : index
    %29 = vector.load %arg5[%c0_12, %c0_13] : memref<1x192xf32, #tpu.memory_space<vmem>>, vector<1x192xf32>
    %30 = vector.broadcast %29 : vector<1x192xf32> to vector<16x192xf32>
    %31 = arith.addf %28, %30 : vector<16x192xf32>
    %32 = arith.truncf %31 : vector<16x192xf32> to vector<16x192xbf16>
    %c0_14 = arith.constant 0 : index
    %c0_15 = arith.constant 0 : index
    %33 = vector.load %arg6[%c0_14, %c0_15] : memref<16x192xbf16, #tpu.memory_space<vmem>>, vector<16x192xbf16>
    tpu.vector_store %arg6[%c0_14, %c0_15], %32 {strides = array<i32>} : memref<16x192xbf16, #tpu.memory_space<vmem>>, vector<16x192xbf16>,
    return
  }
  func.func @transform_0(%arg0: i32) -> (i32, i32) {
    %c0_i32 = arith.constant 0 : i32
    %c0_i32_0 = arith.constant 0 : i32
    return %arg0, %c0_i32 : i32, i32
  }
  func.func @transform_1(%arg0: i32) -> (i32, i32) {
    %c0_i32 = arith.constant 0 : i32
    %c0_i32_0 = arith.constant 0 : i32
    %c0_i32_1 = arith.constant 0 : i32
    return %c0_i32, %c0_i32_0 : i32, i32
  }
  func.func @transform_2(%arg0: i32) -> (i32, i32) {
    %c0_i32 = arith.constant 0 : i32
    %c0_i32_0 = arith.constant 0 : i32
    %c0_i32_1 = arith.constant 0 : i32
    return %c0_i32, %c0_i32_0 : i32, i32
  }
  func.func @transform_3(%arg0: i32) -> (i32, i32) {
    %c0_i32 = arith.constant 0 : i32
    %c0_i32_0 = arith.constant 0 : i32
    %c0_i32_1 = arith.constant 0 : i32
    return %c0_i32, %c0_i32_0 : i32, i32
  }
  func.func @transform_4(%arg0: i32) -> (i32, i32) {
    %c0_i32 = arith.constant 0 : i32
    %c0_i32_0 = arith.constant 0 : i32
    %c0_i32_1 = arith.constant 0 : i32
    return %c0_i32, %c0_i32_0 : i32, i32
  }
  func.func @transform_5(%arg0: i32) -> (i32, i32) {
    %c0_i32 = arith.constant 0 : i32
    %c0_i32_0 = arith.constant 0 : i32
    return %arg0, %c0_i32 : i32, i32
  }
}

module attributes {stable_mosaic.version = 11 : i64} {
  func.func @flash_attn_kernel(%arg0: i32, %arg1: i32, %arg2: i32, %arg3: memref<8x8x16xbf16, #tpu.memory_space<vmem>>, %arg4: memref<8x8x16xbf16, #tpu.memory_space<vmem>>, %arg5: memref<8x8x16xbf16, #tpu.memory_space<vmem>>, %arg6: memref<8x8x16xbf16, #tpu.memory_space<vmem>>, %arg7: memref<8x8x1xf32, #tpu.memory_space<vmem>>, %arg8: memref<8x8x1xf32, #tpu.memory_space<vmem>>, %arg9: memref<8x8x16xf32, #tpu.memory_space<vmem>>) attributes {dimension_semantics = [#tpu.dimension_semantics<parallel>, #tpu.dimension_semantics<parallel>, #tpu.dimension_semantics<arbitrary>], iteration_bounds = array<i64: 1, 1, 1>, scalar_prefetch = 0 : i64, scratch_operands = 3 : i64, tpu.core_type = #tpu.core_type<tc>, window_params = [{transform_indices = @transform_0, window_bounds = array<i64: 8, 8, 16>}, {transform_indices = @transform_1, window_bounds = array<i64: 8, 8, 16>}, {transform_indices = @transform_2, window_bounds = array<i64: 8, 8, 16>}, {transform_indices = @transform_3, window_bounds = array<i64: 8, 8, 16>}]} {
    %c0_i32 = arith.constant 0 : i32
    %0 = arith.cmpi eq, %arg2, %c0_i32 : i32
    %1 = arith.extui %0 : i1 to i32
    %c0_i32_0 = arith.constant 0 : i32
    %2 = arith.cmpi ne, %1, %c0_i32_0 : i32
    scf.if %2 {
      %cst = arith.constant -1.000000e+30 : f32
      %20 = vector.broadcast %cst : f32 to vector<8x8x1xf32>
      %c0 = arith.constant 0 : index
      %c0_9 = arith.constant 0 : index
      %c0_10 = arith.constant 0 : index
      %21 = vector.load %arg7[%c0, %c0_9, %c0_10] : memref<8x8x1xf32, #tpu.memory_space<vmem>>, vector<8x8x1xf32>
      tpu.vector_store %arg7[%c0, %c0_9, %c0_10], %20 {strides = array<i32>} : memref<8x8x1xf32, #tpu.memory_space<vmem>>, vector<8x8x1xf32>,
      %cst_11 = arith.constant 0.000000e+00 : f32
      %22 = vector.broadcast %cst_11 : f32 to vector<8x8x1xf32>
      %c0_12 = arith.constant 0 : index
      %c0_13 = arith.constant 0 : index
      %c0_14 = arith.constant 0 : index
      %23 = vector.load %arg8[%c0_12, %c0_13, %c0_14] : memref<8x8x1xf32, #tpu.memory_space<vmem>>, vector<8x8x1xf32>
      tpu.vector_store %arg8[%c0_12, %c0_13, %c0_14], %22 {strides = array<i32>} : memref<8x8x1xf32, #tpu.memory_space<vmem>>, vector<8x8x1xf32>,
      %cst_15 = arith.constant 0.000000e+00 : f32
      %24 = vector.broadcast %cst_15 : f32 to vector<8x8x16xf32>
      %c0_16 = arith.constant 0 : index
      %c0_17 = arith.constant 0 : index
      %c0_18 = arith.constant 0 : index
      %25 = vector.load %arg9[%c0_16, %c0_17, %c0_18] : memref<8x8x16xf32, #tpu.memory_space<vmem>>, vector<8x8x16xf32>
      tpu.vector_store %arg9[%c0_16, %c0_17, %c0_18], %24 {strides = array<i32>} : memref<8x8x16xf32, #tpu.memory_space<vmem>>, vector<8x8x16xf32>,
    } else {
    }
    %c8_i32 = arith.constant 8 : i32
    %3 = arith.muli %arg1, %c8_i32 : i32
    %c8_i32_1 = arith.constant 8 : i32
    %4 = arith.muli %arg2, %c8_i32_1 : i32
    %c8_i32_2 = arith.constant 8 : i32
    %5 = arith.addi %3, %c8_i32_2 : i32
    %c1_i32 = arith.constant 1 : i32
    %6 = arith.subi %5, %c1_i32 : i32
    %c8_i32_3 = arith.constant 8 : i32
    %7 = arith.addi %4, %c8_i32_3 : i32
    %c1_i32_4 = arith.constant 1 : i32
    %8 = arith.subi %7, %c1_i32_4 : i32
    %9 = arith.cmpi sle, %8, %3 : i32
    %10 = arith.extui %9 : i1 to i32
    %c0_i32_5 = arith.constant 0 : i32
    %11 = arith.cmpi ne, %10, %c0_i32_5 : i32
    scf.if %11 {
      %c0 = arith.constant 0 : index
      %c0_9 = arith.constant 0 : index
      %c0_10 = arith.constant 0 : index
      %20 = vector.load %arg3[%c0, %c0_9, %c0_10] : memref<8x8x16xbf16, #tpu.memory_space<vmem>>, vector<8x8x16xbf16>
      %c0_11 = arith.constant 0 : index
      %c0_12 = arith.constant 0 : index
      %c0_13 = arith.constant 0 : index
      %21 = vector.load %arg4[%c0_11, %c0_12, %c0_13] : memref<8x8x16xbf16, #tpu.memory_space<vmem>>, vector<8x8x16xbf16>
      "tpu.trace_start"() <{level = 10 : i32, message = "bqd,bkd->bqk"}> : () -> ()
      %cst = arith.constant dense<0.000000e+00> : vector<8x8x8xf32>
      %22 = tpu.matmul %20, %21, %cst {dimension_numbers = #tpu.dot_dimension_numbers<[2], [2], [1], [1], [0, 0, 0, 1, 1, 1], [0], [0]>} : vector<8x8x16xbf16>, vector<8x8x16xbf16>, vector<8x8x8xf32> -> vector<8x8x8xf32>
      "tpu.trace_stop"() : () -> ()
      %cst_14 = arith.constant 2.500000e-01 : f32
      %23 = vector.broadcast %cst_14 : f32 to vector<8x8x8xf32>
      %24 = arith.mulf %22, %23 : vector<8x8x8xf32>
      %c0_15 = arith.constant 0 : index
      %c0_16 = arith.constant 0 : index
      %c0_17 = arith.constant 0 : index
      %25 = vector.load %arg7[%c0_15, %c0_16, %c0_17] : memref<8x8x1xf32, #tpu.memory_space<vmem>>, vector<8x8x1xf32>
      %cst_18 = arith.constant dense<0xFF800000> : vector<8x8xf32>
      %26 = vector.multi_reduction <maximumf>, %24, %cst_18 [2] : vector<8x8x8xf32> to vector<8x8xf32>
      %27 = vector.shape_cast %26 : vector<8x8xf32> to vector<8x8x1xf32>
      %28 = arith.maximumf %25, %27 : vector<8x8x1xf32>
      %29 = arith.subf %25, %28 : vector<8x8x1xf32>
      %30 = math.exp %29 : vector<8x8x1xf32>
      %31 = vector.broadcast %28 : vector<8x8x1xf32> to vector<8x8x8xf32>
      %32 = arith.subf %24, %31 : vector<8x8x8xf32>
      %33 = math.exp %32 : vector<8x8x8xf32>
      %c0_19 = arith.constant 0 : index
      %c0_20 = arith.constant 0 : index
      %c0_21 = arith.constant 0 : index
      %34 = vector.load %arg8[%c0_19, %c0_20, %c0_21] : memref<8x8x1xf32, #tpu.memory_space<vmem>>, vector<8x8x1xf32>
      %35 = arith.mulf %30, %34 : vector<8x8x1xf32>
      %cst_22 = arith.constant dense<0.000000e+00> : vector<8x8xf32>
      %36 = vector.multi_reduction <add>, %33, %cst_22 [2] : vector<8x8x8xf32> to vector<8x8xf32>
      %37 = vector.shape_cast %36 : vector<8x8xf32> to vector<8x8x1xf32>
      %38 = arith.addf %35, %37 : vector<8x8x1xf32>
      %c0_23 = arith.constant 0 : index
      %c0_24 = arith.constant 0 : index
      %c0_25 = arith.constant 0 : index
      %39 = vector.load %arg8[%c0_23, %c0_24, %c0_25] : memref<8x8x1xf32, #tpu.memory_space<vmem>>, vector<8x8x1xf32>
      tpu.vector_store %arg8[%c0_23, %c0_24, %c0_25], %38 {strides = array<i32>} : memref<8x8x1xf32, #tpu.memory_space<vmem>>, vector<8x8x1xf32>,
      %c0_26 = arith.constant 0 : index
      %c0_27 = arith.constant 0 : index
      %c0_28 = arith.constant 0 : index
      %40 = vector.load %arg9[%c0_26, %c0_27, %c0_28] : memref<8x8x16xf32, #tpu.memory_space<vmem>>, vector<8x8x16xf32>
      %41 = vector.broadcast %30 : vector<8x8x1xf32> to vector<8x8x16xf32>
      %42 = arith.mulf %41, %40 : vector<8x8x16xf32>
      %43 = arith.truncf %33 : vector<8x8x8xf32> to vector<8x8x8xbf16>
      %c0_29 = arith.constant 0 : index
      %c0_30 = arith.constant 0 : index
      %c0_31 = arith.constant 0 : index
      %44 = vector.load %arg5[%c0_29, %c0_30, %c0_31] : memref<8x8x16xbf16, #tpu.memory_space<vmem>>, vector<8x8x16xbf16>
      "tpu.trace_start"() <{level = 10 : i32, message = "bqk,bkd->bqd"}> : () -> ()
      %cst_32 = arith.constant dense<0.000000e+00> : vector<8x8x16xf32>
      %45 = tpu.matmul %43, %44, %cst_32 {dimension_numbers = #tpu.dot_dimension_numbers<[2], [1], [1], [2], [0, 0, 0, 1, 1, 2], [0], [0]>} : vector<8x8x8xbf16>, vector<8x8x16xbf16>, vector<8x8x16xf32> -> vector<8x8x16xf32>
      "tpu.trace_stop"() : () -> ()
      %46 = arith.addf %42, %45 : vector<8x8x16xf32>
      %c0_33 = arith.constant 0 : index
      %c0_34 = arith.constant 0 : index
      %c0_35 = arith.constant 0 : index
      %47 = vector.load %arg9[%c0_33, %c0_34, %c0_35] : memref<8x8x16xf32, #tpu.memory_space<vmem>>, vector<8x8x16xf32>
      tpu.vector_store %arg9[%c0_33, %c0_34, %c0_35], %46 {strides = array<i32>} : memref<8x8x16xf32, #tpu.memory_space<vmem>>, vector<8x8x16xf32>,
      %c0_36 = arith.constant 0 : index
      %c0_37 = arith.constant 0 : index
      %c0_38 = arith.constant 0 : index
      %48 = vector.load %arg7[%c0_36, %c0_37, %c0_38] : memref<8x8x1xf32, #tpu.memory_space<vmem>>, vector<8x8x1xf32>
      tpu.vector_store %arg7[%c0_36, %c0_37, %c0_38], %28 {strides = array<i32>} : memref<8x8x1xf32, #tpu.memory_space<vmem>>, vector<8x8x1xf32>,
    } else {
    }
    %12 = arith.cmpi sgt, %8, %3 : i32
    %13 = arith.cmpi sle, %4, %6 : i32
    %14 = arith.andi %12, %13 : i1
    %15 = arith.extui %14 : i1 to i32
    %c0_i32_6 = arith.constant 0 : i32
    %16 = arith.cmpi ne, %15, %c0_i32_6 : i32
    scf.if %16 {
      %c0 = arith.constant 0 : index
      %c0_9 = arith.constant 0 : index
      %c0_10 = arith.constant 0 : index
      %20 = vector.load %arg3[%c0, %c0_9, %c0_10] : memref<8x8x16xbf16, #tpu.memory_space<vmem>>, vector<8x8x16xbf16>
      %c0_11 = arith.constant 0 : index
      %c0_12 = arith.constant 0 : index
      %c0_13 = arith.constant 0 : index
      %21 = vector.load %arg4[%c0_11, %c0_12, %c0_13] : memref<8x8x16xbf16, #tpu.memory_space<vmem>>, vector<8x8x16xbf16>
      "tpu.trace_start"() <{level = 10 : i32, message = "bqd,bkd->bqk"}> : () -> ()
      %cst = arith.constant dense<0.000000e+00> : vector<8x8x8xf32>
      %22 = tpu.matmul %20, %21, %cst {dimension_numbers = #tpu.dot_dimension_numbers<[2], [2], [1], [1], [0, 0, 0, 1, 1, 1], [0], [0]>} : vector<8x8x16xbf16>, vector<8x8x16xbf16>, vector<8x8x8xf32> -> vector<8x8x8xf32>
      "tpu.trace_stop"() : () -> ()
      %cst_14 = arith.constant 2.500000e-01 : f32
      %23 = vector.broadcast %cst_14 : f32 to vector<8x8x8xf32>
      %24 = arith.mulf %22, %23 : vector<8x8x8xf32>
      %25 = tpu.iota {dimensions = array<i32: 0>} : vector<8x8xi32>
      %26 = vector.broadcast %3 : i32 to vector<8x8xi32>
      %27 = arith.addi %26, %25 : vector<8x8xi32>
      %28 = tpu.iota {dimensions = array<i32: 1>} : vector<8x8xi32>
      %29 = vector.broadcast %4 : i32 to vector<8x8xi32>
      %30 = arith.addi %29, %28 : vector<8x8xi32>
      %31 = arith.cmpi sle, %30, %27 : vector<8x8xi32>
      %32 = vector.shape_cast %31 : vector<8x8xi1> to vector<1x8x8xi1>
      %cst_15 = arith.constant -1.000000e+30 : f32
      %33 = vector.shape_cast %32 : vector<1x8x8xi1> to vector<1x8x8xi1>
      %34 = vector.broadcast %33 : vector<1x8x8xi1> to vector<8x8x8xi1>
      %35 = vector.broadcast %cst_15 : f32 to vector<8x8x8xf32>
      %36 = arith.select %34, %24, %35 : vector<8x8x8xi1>, vector<8x8x8xf32>
      %c0_16 = arith.constant 0 : index
      %c0_17 = arith.constant 0 : index
      %c0_18 = arith.constant 0 : index
      %37 = vector.load %arg7[%c0_16, %c0_17, %c0_18] : memref<8x8x1xf32, #tpu.memory_space<vmem>>, vector<8x8x1xf32>
      %cst_19 = arith.constant dense<0xFF800000> : vector<8x8xf32>
      %38 = vector.multi_reduction <maximumf>, %36, %cst_19 [2] : vector<8x8x8xf32> to vector<8x8xf32>
      %39 = vector.shape_cast %38 : vector<8x8xf32> to vector<8x8x1xf32>
      %40 = arith.maximumf %37, %39 : vector<8x8x1xf32>
      %41 = arith.subf %37, %40 : vector<8x8x1xf32>
      %42 = math.exp %41 : vector<8x8x1xf32>
      %43 = vector.broadcast %40 : vector<8x8x1xf32> to vector<8x8x8xf32>
      %44 = arith.subf %36, %43 : vector<8x8x8xf32>
      %45 = math.exp %44 : vector<8x8x8xf32>
      %c0_20 = arith.constant 0 : index
      %c0_21 = arith.constant 0 : index
      %c0_22 = arith.constant 0 : index
      %46 = vector.load %arg8[%c0_20, %c0_21, %c0_22] : memref<8x8x1xf32, #tpu.memory_space<vmem>>, vector<8x8x1xf32>
      %47 = arith.mulf %42, %46 : vector<8x8x1xf32>
      %cst_23 = arith.constant dense<0.000000e+00> : vector<8x8xf32>
      %48 = vector.multi_reduction <add>, %45, %cst_23 [2] : vector<8x8x8xf32> to vector<8x8xf32>
      %49 = vector.shape_cast %48 : vector<8x8xf32> to vector<8x8x1xf32>
      %50 = arith.addf %47, %49 : vector<8x8x1xf32>
      %c0_24 = arith.constant 0 : index
      %c0_25 = arith.constant 0 : index
      %c0_26 = arith.constant 0 : index
      %51 = vector.load %arg8[%c0_24, %c0_25, %c0_26] : memref<8x8x1xf32, #tpu.memory_space<vmem>>, vector<8x8x1xf32>
      tpu.vector_store %arg8[%c0_24, %c0_25, %c0_26], %50 {strides = array<i32>} : memref<8x8x1xf32, #tpu.memory_space<vmem>>, vector<8x8x1xf32>,
      %c0_27 = arith.constant 0 : index
      %c0_28 = arith.constant 0 : index
      %c0_29 = arith.constant 0 : index
      %52 = vector.load %arg9[%c0_27, %c0_28, %c0_29] : memref<8x8x16xf32, #tpu.memory_space<vmem>>, vector<8x8x16xf32>
      %53 = vector.broadcast %42 : vector<8x8x1xf32> to vector<8x8x16xf32>
      %54 = arith.mulf %53, %52 : vector<8x8x16xf32>
      %55 = arith.truncf %45 : vector<8x8x8xf32> to vector<8x8x8xbf16>
      %c0_30 = arith.constant 0 : index
      %c0_31 = arith.constant 0 : index
      %c0_32 = arith.constant 0 : index
      %56 = vector.load %arg5[%c0_30, %c0_31, %c0_32] : memref<8x8x16xbf16, #tpu.memory_space<vmem>>, vector<8x8x16xbf16>
      "tpu.trace_start"() <{level = 10 : i32, message = "bqk,bkd->bqd"}> : () -> ()
      %cst_33 = arith.constant dense<0.000000e+00> : vector<8x8x16xf32>
      %57 = tpu.matmul %55, %56, %cst_33 {dimension_numbers = #tpu.dot_dimension_numbers<[2], [1], [1], [2], [0, 0, 0, 1, 1, 2], [0], [0]>} : vector<8x8x8xbf16>, vector<8x8x16xbf16>, vector<8x8x16xf32> -> vector<8x8x16xf32>
      "tpu.trace_stop"() : () -> ()
      %58 = arith.addf %54, %57 : vector<8x8x16xf32>
      %c0_34 = arith.constant 0 : index
      %c0_35 = arith.constant 0 : index
      %c0_36 = arith.constant 0 : index
      %59 = vector.load %arg9[%c0_34, %c0_35, %c0_36] : memref<8x8x16xf32, #tpu.memory_space<vmem>>, vector<8x8x16xf32>
      tpu.vector_store %arg9[%c0_34, %c0_35, %c0_36], %58 {strides = array<i32>} : memref<8x8x16xf32, #tpu.memory_space<vmem>>, vector<8x8x16xf32>,
      %c0_37 = arith.constant 0 : index
      %c0_38 = arith.constant 0 : index
      %c0_39 = arith.constant 0 : index
      %60 = vector.load %arg7[%c0_37, %c0_38, %c0_39] : memref<8x8x1xf32, #tpu.memory_space<vmem>>, vector<8x8x1xf32>
      tpu.vector_store %arg7[%c0_37, %c0_38, %c0_39], %40 {strides = array<i32>} : memref<8x8x1xf32, #tpu.memory_space<vmem>>, vector<8x8x1xf32>,
    } else {
    }
    %c0_i32_7 = arith.constant 0 : i32
    %17 = arith.cmpi eq, %arg2, %c0_i32_7 : i32
    %18 = arith.extui %17 : i1 to i32
    %c0_i32_8 = arith.constant 0 : i32
    %19 = arith.cmpi ne, %18, %c0_i32_8 : i32
    scf.if %19 {
      %c0 = arith.constant 0 : index
      %c0_9 = arith.constant 0 : index
      %c0_10 = arith.constant 0 : index
      %20 = vector.load %arg9[%c0, %c0_9, %c0_10] : memref<8x8x16xf32, #tpu.memory_space<vmem>>, vector<8x8x16xf32>
      %c0_11 = arith.constant 0 : index
      %c0_12 = arith.constant 0 : index
      %c0_13 = arith.constant 0 : index
      %21 = vector.load %arg8[%c0_11, %c0_12, %c0_13] : memref<8x8x1xf32, #tpu.memory_space<vmem>>, vector<8x8x1xf32>
      %22 = tpu.reciprocal %21 {approx = true} : vector<8x8x1xf32> -> vector<8x8x1xf32>
      %23 = vector.broadcast %22 : vector<8x8x1xf32> to vector<8x8x16xf32>
      %24 = arith.mulf %20, %23 : vector<8x8x16xf32>
      %25 = arith.truncf %24 : vector<8x8x16xf32> to vector<8x8x16xbf16>
      %c0_14 = arith.constant 0 : index
      %c0_15 = arith.constant 0 : index
      %c0_16 = arith.constant 0 : index
      %26 = vector.load %arg6[%c0_14, %c0_15, %c0_16] : memref<8x8x16xbf16, #tpu.memory_space<vmem>>, vector<8x8x16xbf16>
      tpu.vector_store %arg6[%c0_14, %c0_15, %c0_16], %25 {strides = array<i32>} : memref<8x8x16xbf16, #tpu.memory_space<vmem>>, vector<8x8x16xbf16>,
    } else {
    }
    return
  }
  func.func @transform_0(%arg0: i32, %arg1: i32, %arg2: i32) -> (i32, i32, i32) {
    %c0_i32 = arith.constant 0 : i32
    %c0_i32_0 = arith.constant 0 : i32
    return %arg0, %arg1, %c0_i32 : i32, i32, i32
  }
  func.func @transform_1(%arg0: i32, %arg1: i32, %arg2: i32) -> (i32, i32, i32) {
    %c0_i32 = arith.constant 0 : i32
    %c0_i32_0 = arith.constant 0 : i32
    return %arg0, %arg2, %c0_i32 : i32, i32, i32
  }
  func.func @transform_2(%arg0: i32, %arg1: i32, %arg2: i32) -> (i32, i32, i32) {
    %c0_i32 = arith.constant 0 : i32
    %c0_i32_0 = arith.constant 0 : i32
    return %arg0, %arg2, %c0_i32 : i32, i32, i32
  }
  func.func @transform_3(%arg0: i32, %arg1: i32, %arg2: i32) -> (i32, i32, i32) {
    %c0_i32 = arith.constant 0 : i32
    %c0_i32_0 = arith.constant 0 : i32
    return %arg0, %arg1, %c0_i32 : i32, i32, i32
  }
}

module attributes {stable_mosaic.version = 11 : i64} {
  func.func @linear_residual_kernel(%arg0: i32, %arg1: memref<16x64xbf16, #tpu.memory_space<vmem>>, %arg2: memref<64x64xbf16, #tpu.memory_space<vmem>>, %arg3: memref<1x64xf32, #tpu.memory_space<vmem>>, %arg4: memref<16x64xbf16, #tpu.memory_space<vmem>>, %arg5: memref<16x64xbf16, #tpu.memory_space<vmem>>) attributes {dimension_semantics = [#tpu.dimension_semantics<parallel>], iteration_bounds = array<i64: 1>, scalar_prefetch = 0 : i64, scratch_operands = 0 : i64, tpu.core_type = #tpu.core_type<tc>, window_params = [{transform_indices = @transform_0, window_bounds = array<i64: 16, 64>}, {pipeline_mode = #tpu.pipeline_mode<synchronous>, transform_indices = @transform_1, window_bounds = array<i64: 64, 64>}, {pipeline_mode = #tpu.pipeline_mode<synchronous>, transform_indices = @transform_2, window_bounds = array<i64: 1, 64>}, {transform_indices = @transform_3, window_bounds = array<i64: 16, 64>}, {transform_indices = @transform_4, window_bounds = array<i64: 16, 64>}]} {
    %c0 = arith.constant 0 : index
    %c0_0 = arith.constant 0 : index
    %0 = vector.load %arg1[%c0, %c0_0] : memref<16x64xbf16, #tpu.memory_space<vmem>>, vector<16x64xbf16>
    %c0_1 = arith.constant 0 : index
    %c0_2 = arith.constant 0 : index
    %1 = vector.load %arg2[%c0_1, %c0_2] : memref<64x64xbf16, #tpu.memory_space<vmem>>, vector<64x64xbf16>
    %cst = arith.constant dense<0.000000e+00> : vector<16x64xf32>
    %2 = tpu.matmul %0, %1, %cst {dimension_numbers = #tpu.dot_dimension_numbers<[1], [0], [0], [1], [0, 0, 1, 1], [], []>} : vector<16x64xbf16>, vector<64x64xbf16>, vector<16x64xf32> -> vector<16x64xf32>
    %c0_3 = arith.constant 0 : index
    %c0_4 = arith.constant 0 : index
    %3 = vector.load %arg3[%c0_3, %c0_4] : memref<1x64xf32, #tpu.memory_space<vmem>>, vector<1x64xf32>
    %4 = vector.broadcast %3 : vector<1x64xf32> to vector<16x64xf32>
    %5 = arith.addf %2, %4 : vector<16x64xf32>
    %c0_5 = arith.constant 0 : index
    %c0_6 = arith.constant 0 : index
    %6 = vector.load %arg4[%c0_5, %c0_6] : memref<16x64xbf16, #tpu.memory_space<vmem>>, vector<16x64xbf16>
    %7 = arith.extf %6 : vector<16x64xbf16> to vector<16x64xf32>
    %8 = arith.addf %5, %7 : vector<16x64xf32>
    %9 = arith.truncf %8 : vector<16x64xf32> to vector<16x64xbf16>
    %c0_7 = arith.constant 0 : index
    %c0_8 = arith.constant 0 : index
    %10 = vector.load %arg5[%c0_7, %c0_8] : memref<16x64xbf16, #tpu.memory_space<vmem>>, vector<16x64xbf16>
    tpu.vector_store %arg5[%c0_7, %c0_8], %9 {strides = array<i32>} : memref<16x64xbf16, #tpu.memory_space<vmem>>, vector<16x64xbf16>,
    return
  }
  func.func @transform_0(%arg0: i32) -> (i32, i32) {
    %c0_i32 = arith.constant 0 : i32
    %c0_i32_0 = arith.constant 0 : i32
    return %arg0, %c0_i32 : i32, i32
  }
  func.func @transform_1(%arg0: i32) -> (i32, i32) {
    %c0_i32 = arith.constant 0 : i32
    %c0_i32_0 = arith.constant 0 : i32
    %c0_i32_1 = arith.constant 0 : i32
    return %c0_i32, %c0_i32_0 : i32, i32
  }
  func.func @transform_2(%arg0: i32) -> (i32, i32) {
    %c0_i32 = arith.constant 0 : i32
    %c0_i32_0 = arith.constant 0 : i32
    %c0_i32_1 = arith.constant 0 : i32
    return %c0_i32, %c0_i32_0 : i32, i32
  }
  func.func @transform_3(%arg0: i32) -> (i32, i32) {
    %c0_i32 = arith.constant 0 : i32
    %c0_i32_0 = arith.constant 0 : i32
    return %arg0, %c0_i32 : i32, i32
  }
  func.func @transform_4(%arg0: i32) -> (i32, i32) {
    %c0_i32 = arith.constant 0 : i32
    %c0_i32_0 = arith.constant 0 : i32
    return %arg0, %c0_i32 : i32, i32
  }
}

module attributes {stable_mosaic.version = 11 : i64} {
  func.func @ln_linear_kernel(%arg0: i32, %arg1: memref<16x64xbf16, #tpu.memory_space<vmem>>, %arg2: memref<1x64xf32, #tpu.memory_space<vmem>>, %arg3: memref<1x64xf32, #tpu.memory_space<vmem>>, %arg4: memref<64x256xbf16, #tpu.memory_space<vmem>>, %arg5: memref<1x256xf32, #tpu.memory_space<vmem>>, %arg6: memref<16x256xbf16, #tpu.memory_space<vmem>>) attributes {dimension_semantics = [#tpu.dimension_semantics<parallel>], iteration_bounds = array<i64: 1>, scalar_prefetch = 0 : i64, scratch_operands = 0 : i64, tpu.core_type = #tpu.core_type<tc>, window_params = [{transform_indices = @transform_0, window_bounds = array<i64: 16, 64>}, {pipeline_mode = #tpu.pipeline_mode<synchronous>, transform_indices = @transform_1, window_bounds = array<i64: 1, 64>}, {pipeline_mode = #tpu.pipeline_mode<synchronous>, transform_indices = @transform_2, window_bounds = array<i64: 1, 64>}, {pipeline_mode = #tpu.pipeline_mode<synchronous>, transform_indices = @transform_3, window_bounds = array<i64: 64, 256>}, {pipeline_mode = #tpu.pipeline_mode<synchronous>, transform_indices = @transform_4, window_bounds = array<i64: 1, 256>}, {transform_indices = @transform_5, window_bounds = array<i64: 16, 256>}]} {
    %c0 = arith.constant 0 : index
    %c0_0 = arith.constant 0 : index
    %0 = vector.load %arg1[%c0, %c0_0] : memref<16x64xbf16, #tpu.memory_space<vmem>>, vector<16x64xbf16>
    %1 = arith.extf %0 : vector<16x64xbf16> to vector<16x64xf32>
    %cst = arith.constant dense<0.000000e+00> : vector<16xf32>
    %2 = vector.multi_reduction <add>, %1, %cst [1] : vector<16x64xf32> to vector<16xf32>
    %3 = vector.shape_cast %2 : vector<16xf32> to vector<16x1xf32>
    %cst_1 = arith.constant 6.400000e+01 : f32
    %4 = vector.broadcast %cst_1 : f32 to vector<16x1xf32>
    %5 = arith.divf %3, %4 : vector<16x1xf32>
    %6 = vector.broadcast %5 : vector<16x1xf32> to vector<16x64xf32>
    %7 = arith.subf %1, %6 : vector<16x64xf32>
    %8 = arith.mulf %7, %7 : vector<16x64xf32>
    %cst_2 = arith.constant dense<0.000000e+00> : vector<16xf32>
    %9 = vector.multi_reduction <add>, %8, %cst_2 [1] : vector<16x64xf32> to vector<16xf32>
    %10 = vector.shape_cast %9 : vector<16xf32> to vector<16x1xf32>
    %cst_3 = arith.constant 6.400000e+01 : f32
    %11 = vector.broadcast %cst_3 : f32 to vector<16x1xf32>
    %12 = arith.divf %10, %11 : vector<16x1xf32>
    %13 = vector.broadcast %5 : vector<16x1xf32> to vector<16x64xf32>
    %14 = arith.subf %1, %13 : vector<16x64xf32>
    %cst_4 = arith.constant 9.99999974E-6 : f32
    %15 = vector.broadcast %cst_4 : f32 to vector<16x1xf32>
    %16 = arith.addf %12, %15 : vector<16x1xf32>
    %17 = math.rsqrt %16 : vector<16x1xf32>
    %18 = vector.broadcast %17 : vector<16x1xf32> to vector<16x64xf32>
    %19 = arith.mulf %14, %18 : vector<16x64xf32>
    %c0_5 = arith.constant 0 : index
    %c0_6 = arith.constant 0 : index
    %20 = vector.load %arg2[%c0_5, %c0_6] : memref<1x64xf32, #tpu.memory_space<vmem>>, vector<1x64xf32>
    %21 = vector.broadcast %20 : vector<1x64xf32> to vector<16x64xf32>
    %22 = arith.mulf %19, %21 : vector<16x64xf32>
    %c0_7 = arith.constant 0 : index
    %c0_8 = arith.constant 0 : index
    %23 = vector.load %arg3[%c0_7, %c0_8] : memref<1x64xf32, #tpu.memory_space<vmem>>, vector<1x64xf32>
    %24 = vector.broadcast %23 : vector<1x64xf32> to vector<16x64xf32>
    %25 = arith.addf %22, %24 : vector<16x64xf32>
    %26 = arith.truncf %25 : vector<16x64xf32> to vector<16x64xbf16>
    %c0_9 = arith.constant 0 : index
    %c0_10 = arith.constant 0 : index
    %27 = vector.load %arg4[%c0_9, %c0_10] : memref<64x256xbf16, #tpu.memory_space<vmem>>, vector<64x256xbf16>
    %cst_11 = arith.constant dense<0.000000e+00> : vector<16x256xf32>
    %28 = tpu.matmul %26, %27, %cst_11 {dimension_numbers = #tpu.dot_dimension_numbers<[1], [0], [0], [1], [0, 0, 1, 1], [], []>} : vector<16x64xbf16>, vector<64x256xbf16>, vector<16x256xf32> -> vector<16x256xf32>
    %c0_12 = arith.constant 0 : index
    %c0_13 = arith.constant 0 : index
    %29 = vector.load %arg5[%c0_12, %c0_13] : memref<1x256xf32, #tpu.memory_space<vmem>>, vector<1x256xf32>
    %30 = vector.broadcast %29 : vector<1x256xf32> to vector<16x256xf32>
    %31 = arith.addf %28, %30 : vector<16x256xf32>
    %cst_14 = arith.constant 5.000000e-01 : f32
    %32 = vector.broadcast %cst_14 : f32 to vector<16x256xf32>
    %33 = arith.mulf %32, %31 : vector<16x256xf32>
    %cst_15 = arith.constant 0.707106769 : f32
    %34 = vector.broadcast %cst_15 : f32 to vector<16x256xf32>
    %35 = arith.mulf %31, %34 : vector<16x256xf32>
    %36 = math.erf %35 : vector<16x256xf32>
    %cst_16 = arith.constant 1.000000e+00 : f32
    %37 = vector.broadcast %cst_16 : f32 to vector<16x256xf32>
    %38 = arith.addf %37, %36 : vector<16x256xf32>
    %39 = arith.mulf %33, %38 : vector<16x256xf32>
    %40 = arith.truncf %39 : vector<16x256xf32> to vector<16x256xbf16>
    %c0_17 = arith.constant 0 : index
    %c0_18 = arith.constant 0 : index
    %41 = vector.load %arg6[%c0_17, %c0_18] : memref<16x256xbf16, #tpu.memory_space<vmem>>, vector<16x256xbf16>
    tpu.vector_store %arg6[%c0_17, %c0_18], %40 {strides = array<i32>} : memref<16x256xbf16, #tpu.memory_space<vmem>>, vector<16x256xbf16>,
    return
  }
  func.func @transform_0(%arg0: i32) -> (i32, i32) {
    %c0_i32 = arith.constant 0 : i32
    %c0_i32_0 = arith.constant 0 : i32
    return %arg0, %c0_i32 : i32, i32
  }
  func.func @transform_1(%arg0: i32) -> (i32, i32) {
    %c0_i32 = arith.constant 0 : i32
    %c0_i32_0 = arith.constant 0 : i32
    %c0_i32_1 = arith.constant 0 : i32
    return %c0_i32, %c0_i32_0 : i32, i32
  }
  func.func @transform_2(%arg0: i32) -> (i32, i32) {
    %c0_i32 = arith.constant 0 : i32
    %c0_i32_0 = arith.constant 0 : i32
    %c0_i32_1 = arith.constant 0 : i32
    return %c0_i32, %c0_i32_0 : i32, i32
  }
  func.func @transform_3(%arg0: i32) -> (i32, i32) {
    %c0_i32 = arith.constant 0 : i32
    %c0_i32_0 = arith.constant 0 : i32
    %c0_i32_1 = arith.constant 0 : i32
    return %c0_i32, %c0_i32_0 : i32, i32
  }
  func.func @transform_4(%arg0: i32) -> (i32, i32) {
    %c0_i32 = arith.constant 0 : i32
    %c0_i32_0 = arith.constant 0 : i32
    %c0_i32_1 = arith.constant 0 : i32
    return %c0_i32, %c0_i32_0 : i32, i32
  }
  func.func @transform_5(%arg0: i32) -> (i32, i32) {
    %c0_i32 = arith.constant 0 : i32
    %c0_i32_0 = arith.constant 0 : i32
    return %arg0, %c0_i32 : i32, i32
  }
}

module attributes {stable_mosaic.version = 11 : i64} {
  func.func @linear_residual_kernel(%arg0: i32, %arg1: memref<16x256xbf16, #tpu.memory_space<vmem>>, %arg2: memref<256x64xbf16, #tpu.memory_space<vmem>>, %arg3: memref<1x64xf32, #tpu.memory_space<vmem>>, %arg4: memref<16x64xbf16, #tpu.memory_space<vmem>>, %arg5: memref<16x64xbf16, #tpu.memory_space<vmem>>) attributes {dimension_semantics = [#tpu.dimension_semantics<parallel>], iteration_bounds = array<i64: 1>, scalar_prefetch = 0 : i64, scratch_operands = 0 : i64, tpu.core_type = #tpu.core_type<tc>, window_params = [{transform_indices = @transform_0, window_bounds = array<i64: 16, 256>}, {pipeline_mode = #tpu.pipeline_mode<synchronous>, transform_indices = @transform_1, window_bounds = array<i64: 256, 64>}, {pipeline_mode = #tpu.pipeline_mode<synchronous>, transform_indices = @transform_2, window_bounds = array<i64: 1, 64>}, {transform_indices = @transform_3, window_bounds = array<i64: 16, 64>}, {transform_indices = @transform_4, window_bounds = array<i64: 16, 64>}]} {
    %c0 = arith.constant 0 : index
    %c0_0 = arith.constant 0 : index
    %0 = vector.load %arg1[%c0, %c0_0] : memref<16x256xbf16, #tpu.memory_space<vmem>>, vector<16x256xbf16>
    %c0_1 = arith.constant 0 : index
    %c0_2 = arith.constant 0 : index
    %1 = vector.load %arg2[%c0_1, %c0_2] : memref<256x64xbf16, #tpu.memory_space<vmem>>, vector<256x64xbf16>
    %cst = arith.constant dense<0.000000e+00> : vector<16x64xf32>
    %2 = tpu.matmul %0, %1, %cst {dimension_numbers = #tpu.dot_dimension_numbers<[1], [0], [0], [1], [0, 0, 1, 1], [], []>} : vector<16x256xbf16>, vector<256x64xbf16>, vector<16x64xf32> -> vector<16x64xf32>
    %c0_3 = arith.constant 0 : index
    %c0_4 = arith.constant 0 : index
    %3 = vector.load %arg3[%c0_3, %c0_4] : memref<1x64xf32, #tpu.memory_space<vmem>>, vector<1x64xf32>
    %4 = vector.broadcast %3 : vector<1x64xf32> to vector<16x64xf32>
    %5 = arith.addf %2, %4 : vector<16x64xf32>
    %c0_5 = arith.constant 0 : index
    %c0_6 = arith.constant 0 : index
    %6 = vector.load %arg4[%c0_5, %c0_6] : memref<16x64xbf16, #tpu.memory_space<vmem>>, vector<16x64xbf16>
    %7 = arith.extf %6 : vector<16x64xbf16> to vector<16x64xf32>
    %8 = arith.addf %5, %7 : vector<16x64xf32>
    %9 = arith.truncf %8 : vector<16x64xf32> to vector<16x64xbf16>
    %c0_7 = arith.constant 0 : index
    %c0_8 = arith.constant 0 : index
    %10 = vector.load %arg5[%c0_7, %c0_8] : memref<16x64xbf16, #tpu.memory_space<vmem>>, vector<16x64xbf16>
    tpu.vector_store %arg5[%c0_7, %c0_8], %9 {strides = array<i32>} : memref<16x64xbf16, #tpu.memory_space<vmem>>, vector<16x64xbf16>,
    return
  }
  func.func @transform_0(%arg0: i32) -> (i32, i32) {
    %c0_i32 = arith.constant 0 : i32
    %c0_i32_0 = arith.constant 0 : i32
    return %arg0, %c0_i32 : i32, i32
  }
  func.func @transform_1(%arg0: i32) -> (i32, i32) {
    %c0_i32 = arith.constant 0 : i32
    %c0_i32_0 = arith.constant 0 : i32
    %c0_i32_1 = arith.constant 0 : i32
    return %c0_i32, %c0_i32_0 : i32, i32
  }
  func.func @transform_2(%arg0: i32) -> (i32, i32) {
    %c0_i32 = arith.constant 0 : i32
    %c0_i32_0 = arith.constant 0 : i32
    %c0_i32_1 = arith.constant 0 : i32
    return %c0_i32, %c0_i32_0 : i32, i32
  }
  func.func @transform_3(%arg0: i32) -> (i32, i32) {
    %c0_i32 = arith.constant 0 : i32
    %c0_i32_0 = arith.constant 0 : i32
    return %arg0, %c0_i32 : i32, i32
  }
  func.func @transform_4(%arg0: i32) -> (i32, i32) {
    %c0_i32 = arith.constant 0 : i32
    %c0_i32_0 = arith.constant 0 : i32
    return %arg0, %c0_i32 : i32, i32
  }
}

module attributes {stable_mosaic.version = 11 : i64} {
  func.func @lnf_lm_head_kernel(%arg0: i32, %arg1: i32, %arg2: memref<16x64xbf16, #tpu.memory_space<vmem>>, %arg3: memref<1x64xf32, #tpu.memory_space<vmem>>, %arg4: memref<1x64xf32, #tpu.memory_space<vmem>>, %arg5: memref<512x64xbf16, #tpu.memory_space<vmem>>, %arg6: memref<16x512xf32, #tpu.memory_space<vmem>>) attributes {dimension_semantics = [#tpu.dimension_semantics<parallel>, #tpu.dimension_semantics<parallel>], iteration_bounds = array<i64: 1, 1>, scalar_prefetch = 0 : i64, scratch_operands = 0 : i64, tpu.core_type = #tpu.core_type<tc>, window_params = [{transform_indices = @transform_0, window_bounds = array<i64: 16, 64>}, {pipeline_mode = #tpu.pipeline_mode<synchronous>, transform_indices = @transform_1, window_bounds = array<i64: 1, 64>}, {pipeline_mode = #tpu.pipeline_mode<synchronous>, transform_indices = @transform_2, window_bounds = array<i64: 1, 64>}, {transform_indices = @transform_3, window_bounds = array<i64: 512, 64>}, {transform_indices = @transform_4, window_bounds = array<i64: 16, 512>}]} {
    %c0 = arith.constant 0 : index
    %c0_0 = arith.constant 0 : index
    %0 = vector.load %arg2[%c0, %c0_0] : memref<16x64xbf16, #tpu.memory_space<vmem>>, vector<16x64xbf16>
    %1 = arith.extf %0 : vector<16x64xbf16> to vector<16x64xf32>
    %cst = arith.constant dense<0.000000e+00> : vector<16xf32>
    %2 = vector.multi_reduction <add>, %1, %cst [1] : vector<16x64xf32> to vector<16xf32>
    %3 = vector.shape_cast %2 : vector<16xf32> to vector<16x1xf32>
    %cst_1 = arith.constant 6.400000e+01 : f32
    %4 = vector.broadcast %cst_1 : f32 to vector<16x1xf32>
    %5 = arith.divf %3, %4 : vector<16x1xf32>
    %6 = vector.broadcast %5 : vector<16x1xf32> to vector<16x64xf32>
    %7 = arith.subf %1, %6 : vector<16x64xf32>
    %8 = arith.mulf %7, %7 : vector<16x64xf32>
    %cst_2 = arith.constant dense<0.000000e+00> : vector<16xf32>
    %9 = vector.multi_reduction <add>, %8, %cst_2 [1] : vector<16x64xf32> to vector<16xf32>
    %10 = vector.shape_cast %9 : vector<16xf32> to vector<16x1xf32>
    %cst_3 = arith.constant 6.400000e+01 : f32
    %11 = vector.broadcast %cst_3 : f32 to vector<16x1xf32>
    %12 = arith.divf %10, %11 : vector<16x1xf32>
    %13 = vector.broadcast %5 : vector<16x1xf32> to vector<16x64xf32>
    %14 = arith.subf %1, %13 : vector<16x64xf32>
    %cst_4 = arith.constant 9.99999974E-6 : f32
    %15 = vector.broadcast %cst_4 : f32 to vector<16x1xf32>
    %16 = arith.addf %12, %15 : vector<16x1xf32>
    %17 = math.rsqrt %16 : vector<16x1xf32>
    %18 = vector.broadcast %17 : vector<16x1xf32> to vector<16x64xf32>
    %19 = arith.mulf %14, %18 : vector<16x64xf32>
    %c0_5 = arith.constant 0 : index
    %c0_6 = arith.constant 0 : index
    %20 = vector.load %arg3[%c0_5, %c0_6] : memref<1x64xf32, #tpu.memory_space<vmem>>, vector<1x64xf32>
    %21 = vector.broadcast %20 : vector<1x64xf32> to vector<16x64xf32>
    %22 = arith.mulf %19, %21 : vector<16x64xf32>
    %c0_7 = arith.constant 0 : index
    %c0_8 = arith.constant 0 : index
    %23 = vector.load %arg4[%c0_7, %c0_8] : memref<1x64xf32, #tpu.memory_space<vmem>>, vector<1x64xf32>
    %24 = vector.broadcast %23 : vector<1x64xf32> to vector<16x64xf32>
    %25 = arith.addf %22, %24 : vector<16x64xf32>
    %26 = arith.truncf %25 : vector<16x64xf32> to vector<16x64xbf16>
    %c0_9 = arith.constant 0 : index
    %c0_10 = arith.constant 0 : index
    %27 = vector.load %arg5[%c0_9, %c0_10] : memref<512x64xbf16, #tpu.memory_space<vmem>>, vector<512x64xbf16>
    %cst_11 = arith.constant dense<0.000000e+00> : vector<16x512xf32>
    %28 = tpu.matmul %26, %27, %cst_11 {dimension_numbers = #tpu.dot_dimension_numbers<[1], [1], [0], [0], [0, 0, 1, 0], [], []>} : vector<16x64xbf16>, vector<512x64xbf16>, vector<16x512xf32> -> vector<16x512xf32>
    %c0_12 = arith.constant 0 : index
    %c0_13 = arith.constant 0 : index
    %29 = vector.load %arg6[%c0_12, %c0_13] : memref<16x512xf32, #tpu.memory_space<vmem>>, vector<16x512xf32>
    tpu.vector_store %arg6[%c0_12, %c0_13], %28 {strides = array<i32>} : memref<16x512xf32, #tpu.memory_space<vmem>>, vector<16x512xf32>,
    return
  }
  func.func @transform_0(%arg0: i32, %arg1: i32) -> (i32, i32) {
    %c0_i32 = arith.constant 0 : i32
    %c0_i32_0 = arith.constant 0 : i32
    return %arg0, %c0_i32 : i32, i32
  }
  func.func @transform_1(%arg0: i32, %arg1: i32) -> (i32, i32) {
    %c0_i32 = arith.constant 0 : i32
    %c0_i32_0 = arith.constant 0 : i32
    %c0_i32_1 = arith.constant 0 : i32
    return %c0_i32, %c0_i32_0 : i32, i32
  }
  func.func @transform_2(%arg0: i32, %arg1: i32) -> (i32, i32) {
    %c0_i32 = arith.constant 0 : i32
    %c0_i32_0 = arith.constant 0 : i32
    %c0_i32_1 = arith.constant 0 : i32
    return %c0_i32, %c0_i32_0 : i32, i32
  }
  func.func @transform_3(%arg0: i32, %arg1: i32) -> (i32, i32) {
    %c0_i32 = arith.constant 0 : i32
    %c0_i32_0 = arith.constant 0 : i32
    return %arg1, %c0_i32 : i32, i32
  }
  func.func @transform_4(%arg0: i32, %arg1: i32) -> (i32, i32) {
    %c0_i32 = arith.constant 0 : i32
    return %arg0, %arg1 : i32, i32
  }
}

</mosaic_0001>

<llo_original>
// kernel: gpt_forward.11
$region0: #{gpt_forward.11}
  #allocation0 [shape = 'u32[]', space=smem, size = 0x4, offset = 0x4, fixed_abs, tag = 'smem constant byte address 0x4 - core index']
  #allocation1 [shape = 'u32[144,128]{1,0:T(1,128)}', space=vmem, size = 0x12000, scoped, tag = 'internal scratch']
  %s0 = inlined_call_operand.vmem [shape: bf16[16,64], index: 0, kind: input, shape index: {}]
  %s1 = inlined_call_operand.vmem [shape: f32[1,64], index: 1, kind: input, shape index: {}]
  %s2 = inlined_call_operand.vmem [shape: f32[1,64], index: 2, kind: input, shape index: {}]
  %s3 = inlined_call_operand.vmem [shape: bf16[64,192], index: 3, kind: input, shape index: {}]
  %s4 = inlined_call_operand.vmem [shape: f32[1,192], index: 4, kind: input, shape index: {}]
  %s5 = inlined_call_operand.vmem [shape: bf16[16,192], index: 5, kind: output, shape index: {}]
  %s6 = sld [smem:[#allocation0]]
  $region30: #{gpt_forward.11} parent=0
    _
  %s8 = ssub.s32 1, %s6
  %s9 = scalar_select 0, %s8, %s6
  // Predicated region
  $region2: #{gpt_forward.11} parent=0 // pred_check
    _
  $region3: #{gpt_forward.11} parent=0 // pred_check_branch
    %11 = sbr.rel (0) target = $region5
  $region4: #{gpt_forward.11} parent=0 // pred_region
    _
  $region5: #{gpt_forward.11} parent=0 // pred_fallthru
    _
  // Predicated region
  $region6: #{gpt_forward.11} parent=0 // pred_check
    _
  $region7: #{gpt_forward.11} parent=0 // pred_check_branch
    %13 = sbr.rel (0) target = $region9
  $region8: #{gpt_forward.11} parent=0 // pred_region
    _
  $region9: #{gpt_forward.11} parent=0 // pred_fallthru
    _
  // Predicated region
  $region10: #{gpt_forward.11} parent=0 // pred_check
    _
  $region11: #{gpt_forward.11} parent=0 // pred_check_branch
    %15 = sbr.rel (0) target = $region13
  $region12: #{gpt_forward.11} parent=0 // pred_region
    _
  $region13: #{gpt_forward.11} parent=0 // pred_fallthru
    _
  // Predicated region
  $region14: #{gpt_forward.11} parent=0 // pred_check
    _
  $region15: #{gpt_forward.11} parent=0 // pred_check_branch
    %17 = sbr.rel (0) target = $region17
  $region16: #{gpt_forward.11} parent=0 // pred_region
    _
  $region17: #{gpt_forward.11} parent=0 // pred_fallthru
    _
  // Predicated region
  $region18: #{gpt_forward.11} parent=0 // pred_check
    _
  $region19: #{gpt_forward.11} parent=0 // pred_check_branch
    %19 = sbr.rel (0) target = $region21
  $region20: #{gpt_forward.11} parent=0 // pred_region
    _
  $region21: #{gpt_forward.11} parent=0 // pred_fallthru
    _
  %v21 = vld [vmem:[%s0] sm:$0xf]
  %v22 = vld [vmem:[%s0 + $0x4] sm:$0xf]
  %v23 = vunpack.c.l.bf16 %v21
  %v24 = vunpack.c.l.bf16 %v22
  %vm25 = vcmask 523264
  %v26 = vsel %vm25, %v23, 0.0
  %27 = vadd.xlane.f32.xlu0 %v26
  %v28 = vpop.xlane.xlu0 %27
  %v29 = vsel %vm25, %v24, 0.0
  %30 = vadd.xlane.f32.xlu0 %v29
  %v31 = vpop.xlane.xlu0 %30
  %v32 = vrcp.pop 64.0
  %v33 = vmul.f32 %v28, %v32
  %v34 = vmul.f32 %v31, %v32
  %v35 = vsub.f32 %v23, %v33
  %v36 = vsub.f32 %v24, %v34
  %v37 = vmul.f32 %v35, %v35
  %v38 = vmul.f32 %v36, %v36
  %v39 = vsel %vm25, %v37, 0.0
  %40 = vadd.xlane.f32.xlu0 %v39
  %v41 = vpop.xlane.xlu0 %40
  %v42 = vsel %vm25, %v38, 0.0
  %43 = vadd.xlane.f32.xlu0 %v42
  %v44 = vpop.xlane.xlu0 %43
  %v45 = vmul.f32 %v41, %v32
  %v46 = vmul.f32 %v44, %v32
  %v47 = vadd.f32 %v45, 1e-05
  %v48 = vadd.f32 %v46, 1e-05
  %v49 = vrsqrt.pop %v47
  %v50 = vrsqrt.pop %v48
  %v51 = vmul.f32 %v35, %v49
  %v52 = vmul.f32 %v36, %v50
  %v53 = vld [vmem:[%s1] sm:$0x1]
  %v55 = vlaneseq
  %v56 = vshrl.u32 %v55, 7
  %v57 = vsub.s32 0, %v56
  %v58 = vrot.slane %v53, %v57
  %v60 = vmul.f32 %v51, %v58
  %v61 = vmul.f32 %v52, %v58
  %v62 = vld [vmem:[%s2] sm:$0x1]
  %v64 = vlaneseq
  %v65 = vshrl.u32 %v64, 7
  %v66 = vsub.s32 0, %v65
  %v67 = vrot.slane %v62, %v66
  %v69 = vadd.f32 %v60, %v67
  %v70 = vadd.f32 %v61, %v67
  %v71 = vpack.c.bf16 %v70, %v69
  %v72 = vld [vmem:[%s3] sm:$0xff]
  %v73 = vld [vmem:[%s3 + $0x8] sm:$0xff]
  %v74 = vld [vmem:[%s3 + $0x10] sm:$0xff]
  %v75 = vld [vmem:[%s3 + $0x18] sm:$0xff]
  %v76 = vld [vmem:[%s3 + $0x20] sm:$0xff]
  %v77 = vld [vmem:[%s3 + $0x28] sm:$0xff]
  %v78 = vld [vmem:[%s3 + $0x30] sm:$0xff]
  %v79 = vld [vmem:[%s3 + $0x38] sm:$0xff]
  %v80 = vld [vmem:[%s4] sm:$0x3]
  %v82 = vlaneseq
  %v83 = vshrl.u32 %v82, 7
  %v84 = vsub.s32 0, %v83
  %v85 = vrot.slane %v80, %v84
  %v86 = vlaneseq
  %v87 = vshrl.u32 %v86, 7
  %v88 = vsub.s32 1, %v87
  %v89 = vrot.slane %v80, %v88
  %v100 = vunpack.c.l.b16 %v72
  %v101 = vunpack.c.h.b16 %v72
  %v102 = vunpack.c.l.b16 %v73
  %v103 = vunpack.c.h.b16 %v73
  %v104 = vunpack.c.l.b16 %v74
  %v105 = vunpack.c.h.b16 %v74
  %v106 = vunpack.c.l.b16 %v75
  %v107 = vunpack.c.h.b16 %v75
  %v108 = vunpack.c.l.b16 %v76
  %v109 = vunpack.c.h.b16 %v76
  %v110 = vunpack.c.l.b16 %v77
  %v111 = vunpack.c.h.b16 %v77
  %v112 = vunpack.c.l.b16 %v78
  %v113 = vunpack.c.h.b16 %v78
  %v114 = vunpack.c.l.b16 %v79
  %v115 = vunpack.c.h.b16 %v79
  %v116 = vpack.c.b16 %v102, %v100
  %v117 = vpack.c.b16 %v103, %v101
  %v118 = vpack.c.b16 %v106, %v104
  %v119 = vpack.c.b16 %v107, %v105
  %v120 = vpack.c.b16 %v110, %v108
  %v121 = vpack.c.b16 %v111, %v109
  %v122 = vpack.c.b16 %v114, %v112
  %v123 = vpack.c.b16 %v115, %v113
  %v133 = vsel %vm25, %v71, 0
  %135 = vmatprep.subr.bf16.mxu0 0
  %136 = vmatpush1.bf16.msra.mxu0 0
  %137 = vmatprep.subr.bf16.mxu0 0
  %138 = vmatpush1.bf16.msra.mxu0 0
  %139 = vmatprep.subr.bf16.mxu0 0
  %140 = vmatpush1.bf16.msra.mxu0 0
  %141 = vmatprep.subr.bf16.mxu0 0
  %142 = vmatpush1.bf16.msra.mxu0 0
  %143 = vmatprep.subr.bf16.mxu0 %v123
  %144 = vmatpush1.bf16.msra.mxu0 %v122
  %145 = vmatprep.subr.bf16.mxu0 %v121
  %146 = vmatpush1.bf16.msra.mxu0 %v120
  %147 = vmatprep.subr.bf16.mxu0 %v119
  %148 = vmatpush1.bf16.msra.mxu0 %v118
  %149 = vmatprep.subr.bf16.mxu0 %v117
  %150 = vmatpush1.bf16.msra.mxu0 %v116
  %151 = vmatprep.subr.bf16.mxu0 0
  %152 = vmatpush2.bf16.msra.mxu0 0
  %153 = vmatprep.subr.bf16.mxu0 0
  %154 = vmatpush2.bf16.msra.mxu0 0
  %155 = vmatprep.subr.bf16.mxu0 0
  %156 = vmatpush2.bf16.msra.mxu0 0
  %157 = vmatprep.subr.bf16.mxu0 0
  %158 = vmatpush2.bf16.msra.mxu0 0
  %159 = vmatprep.subr.bf16.mxu0 0
  %160 = vmatpush2.bf16.msra.mxu0 0
  %161 = vmatprep.subr.bf16.mxu0 0
  %162 = vmatpush2.bf16.msra.mxu0 0
  %163 = vmatprep.subr.bf16.mxu0 0
  %164 = vmatpush2.bf16.msra.mxu0 0
  %165 = vmatprep.subr.bf16.mxu0 0
  %166 = vmatpush2.bf16.msra.mxu0 0
  %167 = vmatprep.mubr.bf16.mxu0 0
  %168 = vmatmul.mubr.bf16.gmra.mxu0 %v133
  %v169 = vpop.f32.mrf.mxu0
  %v170 = vadd.f32 %v85, %v169
  %v171 = vpop.f32.mrf.mxu0
  %v172 = vadd.f32 %v89, %v171
  %v173 = vpop.f32.mrf.mxu0
  %v174 = vadd.f32 %v85, %v173
  %v175 = vpop.f32.mrf.mxu0
  %v176 = vadd.f32 %v89, %v175
  %177 = vdwg.mxu0
  %v178 = vpack.c.bf16 %v174, %v170
  %v179 = vpack.c.bf16 %v176, %v172
  %v182 = vunpack.c.l.b16 %v178
  %v183 = vunpack.c.l.b16 %v179
  %v184 = vunpack.c.h.b16 %v178
  %v185 = vunpack.c.h.b16 %v179
  %v186 = vpack.c.b16 %v183, %v182
  %v187 = vpack.c.b16 %v185, %v184
  %vm190 = vcmask 1043456
  %vm191 = vcmask 523268
  %vm192 = vmor %vm191, %vm190
  %193 = vst.msk [vmem:[%s5] sm:$0xff] %vm192, %v186
  %194 = vst.msk [vmem:[%s5 + $0x8] sm:$0xff] %vm192, %v187
  // Predicated region
  $region22: #{gpt_forward.11} parent=0 // pred_check
    _
  $region23: #{gpt_forward.11} parent=0 // pred_check_branch
    %196 = sbr.rel (0) target = $region25
  $region24: #{gpt_forward.11} parent=0 // pred_region
    _
  $region25: #{gpt_forward.11} parent=0 // pred_fallthru
    _
  // Predicated region
  $region26: #{gpt_forward.11} parent=0 // pred_check
    _
  $region27: #{gpt_forward.11} parent=0 // pred_check_branch
    %198 = sbr.rel (0) target = $region29
  $region28: #{gpt_forward.11} parent=0 // pred_region
    _
  $region29: #{gpt_forward.11} parent=0 // pred_fallthru
    _

// kernel: gpt_forward.13
$region0: #{gpt_forward.13}
  #allocation0 [shape = 'u32[]', space=smem, size = 0x4, offset = 0x4, fixed_abs, tag = 'smem constant byte address 0x4 - core index']
  #allocation1 [shape = 'u32[144,128]{1,0:T(1,128)}', space=vmem, size = 0x12000, scoped, tag = 'internal scratch']
  %s0 = inlined_call_operand.vmem [shape: bf16[16,64], index: 0, kind: input, shape index: {}]
  %s1 = inlined_call_operand.vmem [shape: bf16[64,64], index: 1, kind: input, shape index: {}]
  %s2 = inlined_call_operand.vmem [shape: f32[1,64], index: 2, kind: input, shape index: {}]
  %s3 = inlined_call_operand.vmem [shape: bf16[16,64], index: 3, kind: input, shape index: {}]
  %s4 = inlined_call_operand.vmem [shape: bf16[16,64], index: 4, kind: output, shape index: {}]
  %s5 = sld [smem:[#allocation0]]
  $region26: #{gpt_forward.13} parent=0
    _
  %s7 = ssub.s32 1, %s5
  %s8 = scalar_select 0, %s7, %s5
  // Predicated region
  $region2: #{gpt_forward.13} parent=0 // pred_check
    _
  $region3: #{gpt_forward.13} parent=0 // pred_check_branch
    %10 = sbr.rel (0) target = $region5
  $region4: #{gpt_forward.13} parent=0 // pred_region
    _
  $region5: #{gpt_forward.13} parent=0 // pred_fallthru
    _
  // Predicated region
  $region6: #{gpt_forward.13} parent=0 // pred_check
    _
  $region7: #{gpt_forward.13} parent=0 // pred_check_branch
    %12 = sbr.rel (0) target = $region9
  $region8: #{gpt_forward.13} parent=0 // pred_region
    _
  $region9: #{gpt_forward.13} parent=0 // pred_fallthru
    _
  // Predicated region
  $region10: #{gpt_forward.13} parent=0 // pred_check
    _
  $region11: #{gpt_forward.13} parent=0 // pred_check_branch
    %14 = sbr.rel (0) target = $region13
  $region12: #{gpt_forward.13} parent=0 // pred_region
    _
  $region13: #{gpt_forward.13} parent=0 // pred_fallthru
    _
  // Predicated region
  $region14: #{gpt_forward.13} parent=0 // pred_check
    _
  $region15: #{gpt_forward.13} parent=0 // pred_check_branch
    %16 = sbr.rel (0) target = $region17
  $region16: #{gpt_forward.13} parent=0 // pred_region
    _
  $region17: #{gpt_forward.13} parent=0 // pred_fallthru
    _
  %v18 = vld [vmem:[%s0] sm:$0xf]
  %v19 = vld [vmem:[%s0 + $0x4] sm:$0xf]
  %v20 = vld [vmem:[%s1] sm:$0xf]
  %v21 = vld [vmem:[%s1 + $0x4] sm:$0xf]
  %v22 = vld [vmem:[%s1 + $0x8] sm:$0xf]
  %v23 = vld [vmem:[%s1 + $0xc] sm:$0xf]
  %v24 = vld [vmem:[%s1 + $0x10] sm:$0xf]
  %v25 = vld [vmem:[%s1 + $0x14] sm:$0xf]
  %v26 = vld [vmem:[%s1 + $0x18] sm:$0xf]
  %v27 = vld [vmem:[%s1 + $0x1c] sm:$0xf]
  %v28 = vld [vmem:[%s2] sm:$0x1]
  %v30 = vlaneseq
  %v31 = vshrl.u32 %v30, 7
  %v32 = vsub.s32 0, %v31
  %v33 = vrot.slane %v28, %v32
  %v37 = vunpack.c.l.b16 %v18
  %v38 = vunpack.c.l.b16 %v19
  %v39 = vpack.c.b16 %v38, %v37
  %v48 = vunpack.c.l.b16 %v20
  %v49 = vunpack.c.l.b16 %v21
  %v50 = vunpack.c.l.b16 %v22
  %v51 = vunpack.c.l.b16 %v23
  %v52 = vunpack.c.l.b16 %v24
  %v53 = vunpack.c.l.b16 %v25
  %v54 = vunpack.c.l.b16 %v26
  %v55 = vunpack.c.l.b16 %v27
  %v56 = vpack.c.b16 %v49, %v48
  %v57 = vpack.c.b16 %v51, %v50
  %v58 = vpack.c.b16 %v53, %v52
  %v59 = vpack.c.b16 %v55, %v54
  %vm64 = vcmask 523264
  %v66 = vsel %vm64, %v39, 0
  %68 = vmatprep.subr.bf16.mxu0 0
  %69 = vmatpush1.bf16.msra.mxu0 0
  %70 = vmatprep.subr.bf16.mxu0 0
  %71 = vmatpush1.bf16.msra.mxu0 0
  %72 = vmatprep.subr.bf16.mxu0 0
  %73 = vmatpush1.bf16.msra.mxu0 0
  %74 = vmatprep.subr.bf16.mxu0 0
  %75 = vmatpush1.bf16.msra.mxu0 0
  %76 = vmatprep.subr.bf16.mxu0 0
  %77 = vmatpush1.bf16.msra.mxu0 %v59
  %78 = vmatprep.subr.bf16.mxu0 0
  %79 = vmatpush1.bf16.msra.mxu0 %v58
  %80 = vmatprep.subr.bf16.mxu0 0
  %81 = vmatpush1.bf16.msra.mxu0 %v57
  %82 = vmatprep.subr.bf16.mxu0 0
  %83 = vmatpush1.bf16.msra.mxu0 %v56
  %84 = vmatprep.subr.bf16.mxu0 0
  %85 = vmatpush2.bf16.msra.mxu0 0
  %86 = vmatprep.subr.bf16.mxu0 0
  %87 = vmatpush2.bf16.msra.mxu0 0
  %88 = vmatprep.subr.bf16.mxu0 0
  %89 = vmatpush2.bf16.msra.mxu0 0
  %90 = vmatprep.subr.bf16.mxu0 0
  %91 = vmatpush2.bf16.msra.mxu0 0
  %92 = vmatprep.subr.bf16.mxu0 0
  %93 = vmatpush2.bf16.msra.mxu0 0
  %94 = vmatprep.subr.bf16.mxu0 0
  %95 = vmatpush2.bf16.msra.mxu0 0
  %96 = vmatprep.subr.bf16.mxu0 0
  %97 = vmatpush2.bf16.msra.mxu0 0
  %98 = vmatprep.subr.bf16.mxu0 0
  %99 = vmatpush2.bf16.msra.mxu0 0
  %100 = vmatprep.mubr.bf16.mxu0 0
  %101 = vmatmul.mubr.bf16.gmra.mxu0 %v66
  %v102 = vpop.f32.mrf.mxu0
  %v103 = vadd.f32 %v33, %v102
  %v104 = vpop.f32.mrf.mxu0
  %v105 = vpop.f32.mrf.mxu0
  %v106 = vadd.f32 %v33, %v105
  %v107 = vpop.f32.mrf.mxu0
  %108 = vdwg.mxu0
  %v109 = vld [vmem:[%s3] sm:$0xf]
  %v110 = vld [vmem:[%s3 + $0x4] sm:$0xf]
  %v111 = vunpack.c.l.bf16 %v109
  %v112 = vunpack.c.l.bf16 %v110
  %v113 = vadd.f32 %v103, %v111
  %v114 = vadd.f32 %v106, %v112
  %v115 = vpack.c.bf16 %v114, %v113
  %v117 = vunpack.c.l.b16 %v115
  %v118 = vunpack.c.h.b16 %v115
  %v119 = vpack.c.b16 %v117, %v117
  %v120 = vpack.c.b16 %v118, %v118
  %vm123 = vcmask 519168
  %124 = vst.msk [vmem:[%s4] sm:$0xf] %vm123, %v119
  %125 = vst.msk [vmem:[%s4 + $0x4] sm:$0xf] %vm123, %v120
  // Predicated region
  $region18: #{gpt_forward.13} parent=0 // pred_check
    _
  $region19: #{gpt_forward.13} parent=0 // pred_check_branch
    %127 = sbr.rel (0) target = $region21
  $region20: #{gpt_forward.13} parent=0 // pred_region
    _
  $region21: #{gpt_forward.13} parent=0 // pred_fallthru
    _
  // Predicated region
  $region22: #{gpt_forward.13} parent=0 // pred_check
    _
  $region23: #{gpt_forward.13} parent=0 // pred_check_branch
    %129 = sbr.rel (0) target = $region25
  $region24: #{gpt_forward.13} parent=0 // pred_region
    _
  $region25: #{gpt_forward.13} parent=0 // pred_fallthru
    _

// kernel: gpt_forward.14
$region0: #{gpt_forward.14}
  #allocation0 [shape = 'u32[]', space=smem, size = 0x4, offset = 0x4, fixed_abs, tag = 'smem constant byte address 0x4 - core index']
  #allocation1 [shape = 'u32[144,128]{1,0:T(1,128)}', space=vmem, size = 0x12000, scoped, tag = 'internal scratch']
  %s0 = inlined_call_operand.vmem [shape: bf16[16,64], index: 0, kind: input, shape index: {}]
  %s1 = inlined_call_operand.vmem [shape: f32[1,64], index: 1, kind: input, shape index: {}]
  %s2 = inlined_call_operand.vmem [shape: f32[1,64], index: 2, kind: input, shape index: {}]
  %s3 = inlined_call_operand.vmem [shape: bf16[64,256], index: 3, kind: input, shape index: {}]
  %s4 = inlined_call_operand.vmem [shape: f32[1,256], index: 4, kind: input, shape index: {}]
  %s5 = inlined_call_operand.vmem [shape: bf16[16,256], index: 5, kind: output, shape index: {}]
  %s6 = sld [smem:[#allocation0]]
  $region30: #{gpt_forward.14} parent=0
    _
  %s8 = ssub.s32 1, %s6
  %s9 = scalar_select 0, %s8, %s6
  // Predicated region
  $region2: #{gpt_forward.14} parent=0 // pred_check
    _
  $region3: #{gpt_forward.14} parent=0 // pred_check_branch
    %11 = sbr.rel (0) target = $region5
  $region4: #{gpt_forward.14} parent=0 // pred_region
    _
  $region5: #{gpt_forward.14} parent=0 // pred_fallthru
    _
  // Predicated region
  $region6: #{gpt_forward.14} parent=0 // pred_check
    _
  $region7: #{gpt_forward.14} parent=0 // pred_check_branch
    %13 = sbr.rel (0) target = $region9
  $region8: #{gpt_forward.14} parent=0 // pred_region
    _
  $region9: #{gpt_forward.14} parent=0 // pred_fallthru
    _
  // Predicated region
  $region10: #{gpt_forward.14} parent=0 // pred_check
    _
  $region11: #{gpt_forward.14} parent=0 // pred_check_branch
    %15 = sbr.rel (0) target = $region13
  $region12: #{gpt_forward.14} parent=0 // pred_region
    _
  $region13: #{gpt_forward.14} parent=0 // pred_fallthru
    _
  // Predicated region
  $region14: #{gpt_forward.14} parent=0 // pred_check
    _
  $region15: #{gpt_forward.14} parent=0 // pred_check_branch
    %17 = sbr.rel (0) target = $region17
  $region16: #{gpt_forward.14} parent=0 // pred_region
    _
  $region17: #{gpt_forward.14} parent=0 // pred_fallthru
    _
  // Predicated region
  $region18: #{gpt_forward.14} parent=0 // pred_check
    _
  $region19: #{gpt_forward.14} parent=0 // pred_check_branch
    %19 = sbr.rel (0) target = $region21
  $region20: #{gpt_forward.14} parent=0 // pred_region
    _
  $region21: #{gpt_forward.14} parent=0 // pred_fallthru
    _
  %v21 = vld [vmem:[%s0] sm:$0xf]
  %v22 = vld [vmem:[%s0 + $0x4] sm:$0xf]
  %v23 = vunpack.c.l.bf16 %v21
  %v24 = vunpack.c.l.bf16 %v22
  %vm25 = vcmask 523264
  %v26 = vsel %vm25, %v23, 0.0
  %27 = vadd.xlane.f32.xlu0 %v26
  %v28 = vpop.xlane.xlu0 %27
  %v29 = vsel %vm25, %v24, 0.0
  %30 = vadd.xlane.f32.xlu0 %v29
  %v31 = vpop.xlane.xlu0 %30
  %v32 = vrcp.pop 64.0
  %v33 = vmul.f32 %v28, %v32
  %v34 = vmul.f32 %v31, %v32
  %v35 = vsub.f32 %v23, %v33
  %v36 = vsub.f32 %v24, %v34
  %v37 = vmul.f32 %v35, %v35
  %v38 = vmul.f32 %v36, %v36
  %v39 = vsel %vm25, %v37, 0.0
  %40 = vadd.xlane.f32.xlu0 %v39
  %v41 = vpop.xlane.xlu0 %40
  %v42 = vsel %vm25, %v38, 0.0
  %43 = vadd.xlane.f32.xlu0 %v42
  %v44 = vpop.xlane.xlu0 %43
  %v45 = vmul.f32 %v41, %v32
  %v46 = vmul.f32 %v44, %v32
  %v47 = vadd.f32 %v45, 1e-05
  %v48 = vadd.f32 %v46, 1e-05
  %v49 = vrsqrt.pop %v47
  %v50 = vrsqrt.pop %v48
  %v51 = vmul.f32 %v35, %v49
  %v52 = vmul.f32 %v36, %v50
  %v53 = vld [vmem:[%s1] sm:$0x1]
  %v55 = vlaneseq
  %v56 = vshrl.u32 %v55, 7
  %v57 = vsub.s32 0, %v56
  %v58 = vrot.slane %v53, %v57
  %v60 = vmul.f32 %v51, %v58
  %v61 = vmul.f32 %v52, %v58
  %v62 = vld [vmem:[%s2] sm:$0x1]
  %v64 = vlaneseq
  %v65 = vshrl.u32 %v64, 7
  %v66 = vsub.s32 0, %v65
  %v67 = vrot.slane %v62, %v66
  %v69 = vadd.f32 %v60, %v67
  %v70 = vadd.f32 %v61, %v67
  %v71 = vpack.c.bf16 %v70, %v69
  %v72 = vld [vmem:[%s3] sm:$0xff]
  %v73 = vld [vmem:[%s3 + $0x8] sm:$0xff]
  %v74 = vld [vmem:[%s3 + $0x10] sm:$0xff]
  %v75 = vld [vmem:[%s3 + $0x18] sm:$0xff]
  %v76 = vld [vmem:[%s3 + $0x20] sm:$0xff]
  %v77 = vld [vmem:[%s3 + $0x28] sm:$0xff]
  %v78 = vld [vmem:[%s3 + $0x30] sm:$0xff]
  %v79 = vld [vmem:[%s3 + $0x38] sm:$0xff]
  %v80 = vld [vmem:[%s4] sm:$0x3]
  %v82 = vlaneseq
  %v83 = vshrl.u32 %v82, 7
  %v84 = vsub.s32 0, %v83
  %v85 = vrot.slane %v80, %v84
  %v86 = vlaneseq
  %v87 = vshrl.u32 %v86, 7
  %v88 = vsub.s32 1, %v87
  %v89 = vrot.slane %v80, %v88
  %v100 = vunpack.c.l.b16 %v72
  %v101 = vunpack.c.h.b16 %v72
  %v102 = vunpack.c.l.b16 %v73
  %v103 = vunpack.c.h.b16 %v73
  %v104 = vunpack.c.l.b16 %v74
  %v105 = vunpack.c.h.b16 %v74
  %v106 = vunpack.c.l.b16 %v75
  %v107 = vunpack.c.h.b16 %v75
  %v108 = vunpack.c.l.b16 %v76
  %v109 = vunpack.c.h.b16 %v76
  %v110 = vunpack.c.l.b16 %v77
  %v111 = vunpack.c.h.b16 %v77
  %v112 = vunpack.c.l.b16 %v78
  %v113 = vunpack.c.h.b16 %v78
  %v114 = vunpack.c.l.b16 %v79
  %v115 = vunpack.c.h.b16 %v79
  %v116 = vpack.c.b16 %v102, %v100
  %v117 = vpack.c.b16 %v103, %v101
  %v118 = vpack.c.b16 %v106, %v104
  %v119 = vpack.c.b16 %v107, %v105
  %v120 = vpack.c.b16 %v110, %v108
  %v121 = vpack.c.b16 %v111, %v109
  %v122 = vpack.c.b16 %v114, %v112
  %v123 = vpack.c.b16 %v115, %v113
  %v133 = vsel %vm25, %v71, 0
  %135 = vmatprep.subr.bf16.mxu0 0
  %136 = vmatpush1.bf16.msra.mxu0 0
  %137 = vmatprep.subr.bf16.mxu0 0
  %138 = vmatpush1.bf16.msra.mxu0 0
  %139 = vmatprep.subr.bf16.mxu0 0
  %140 = vmatpush1.bf16.msra.mxu0 0
  %141 = vmatprep.subr.bf16.mxu0 0
  %142 = vmatpush1.bf16.msra.mxu0 0
  %143 = vmatprep.subr.bf16.mxu0 %v123
  %144 = vmatpush1.bf16.msra.mxu0 %v122
  %145 = vmatprep.subr.bf16.mxu0 %v121
  %146 = vmatpush1.bf16.msra.mxu0 %v120
  %147 = vmatprep.subr.bf16.mxu0 %v119
  %148 = vmatpush1.bf16.msra.mxu0 %v118
  %149 = vmatprep.subr.bf16.mxu0 %v117
  %150 = vmatpush1.bf16.msra.mxu0 %v116
  %151 = vmatprep.subr.bf16.mxu0 0
  %152 = vmatpush2.bf16.msra.mxu0 0
  %153 = vmatprep.subr.bf16.mxu0 0
  %154 = vmatpush2.bf16.msra.mxu0 0
  %155 = vmatprep.subr.bf16.mxu0 0
  %156 = vmatpush2.bf16.msra.mxu0 0
  %157 = vmatprep.subr.bf16.mxu0 0
  %158 = vmatpush2.bf16.msra.mxu0 0
  %159 = vmatprep.subr.bf16.mxu0 0
  %160 = vmatpush2.bf16.msra.mxu0 0
  %161 = vmatprep.subr.bf16.mxu0 0
  %162 = vmatpush2.bf16.msra.mxu0 0
  %163 = vmatprep.subr.bf16.mxu0 0
  %164 = vmatpush2.bf16.msra.mxu0 0
  %165 = vmatprep.subr.bf16.mxu0 0
  %166 = vmatpush2.bf16.msra.mxu0 0
  %167 = vmatprep.mubr.bf16.mxu0 0
  %168 = vmatmul.mubr.bf16.gmra.mxu0 %v133
  %v169 = vpop.f32.mrf.mxu0
  %v170 = vadd.f32 %v85, %v169
  %v171 = vpop.f32.mrf.mxu0
  %v172 = vadd.f32 %v89, %v171
  %v173 = vpop.f32.mrf.mxu0
  %v174 = vadd.f32 %v85, %v173
  %v175 = vpop.f32.mrf.mxu0
  %v176 = vadd.f32 %v89, %v175
  %177 = vdwg.mxu0
  %v178 = vmul.f32 %v170, 0.5
  %v179 = vmul.f32 %v172, 0.5
  %v180 = vmul.f32 %v174, 0.5
  %v181 = vmul.f32 %v176, 0.5
  %v182 = vmul.f32 %v170, 0.70710677
  %v183 = vmul.f32 %v172, 0.70710677
  %v184 = vmul.f32 %v174, 0.70710677
  %v185 = vmul.f32 %v176, 0.70710677
  %v186 = verf.f32.pop %v182
  %v187 = verf.f32.pop %v183
  %v188 = verf.f32.pop %v184
  %v189 = verf.f32.pop %v185
  %v190 = vadd.f32 %v186, 1.0
  %v191 = vadd.f32 %v187, 1.0
  %v192 = vadd.f32 %v188, 1.0
  %v193 = vadd.f32 %v189, 1.0
  %v194 = vmul.f32 %v178, %v190
  %v195 = vmul.f32 %v179, %v191
  %v196 = vmul.f32 %v180, %v192
  %v197 = vmul.f32 %v181, %v193
  %v198 = vpack.c.bf16 %v196, %v194
  %v199 = vpack.c.bf16 %v197, %v195
  %v202 = vunpack.c.l.b16 %v198
  %v203 = vunpack.c.l.b16 %v199
  %v204 = vunpack.c.h.b16 %v198
  %v205 = vunpack.c.h.b16 %v199
  %v206 = vpack.c.b16 %v203, %v202
  %v207 = vpack.c.b16 %v205, %v204
  %210 = vst [vmem:[%s5] sm:$0xff] %v206
  %211 = vst [vmem:[%s5 + $0x8] sm:$0xff] %v207
  // Predicated region
  $region22: #{gpt_forward.14} parent=0 // pred_check
    _
  $region23: #{gpt_forward.14} parent=0 // pred_check_branch
    %213 = sbr.rel (0) target = $region25
  $region24: #{gpt_forward.14} parent=0 // pred_region
    _
  $region25: #{gpt_forward.14} parent=0 // pred_fallthru
    _
  // Predicated region
  $region26: #{gpt_forward.14} parent=0 // pred_check
    _
  $region27: #{gpt_forward.14} parent=0 // pred_check_branch
    %215 = sbr.rel (0) target = $region29
  $region28: #{gpt_forward.14} parent=0 // pred_region
    _
  $region29: #{gpt_forward.14} parent=0 // pred_fallthru
    _

// kernel: gpt_forward.12
$region0: #{gpt_forward.12}
  #allocation0 [shape = 'u32[]', space=smem, size = 0x4, offset = 0x4, fixed_abs, tag = 'smem constant byte address 0x4 - core index']
  #allocation1 [shape = 'u32[144,128]{1,0:T(1,128)}', space=vmem, size = 0x12000, scoped, tag = 'internal scratch']
  #allocation2 [shape = 'f32[8,8,1]{2,1,0:T(8,128)}', space=vmem, size = 0x8000, scoped, tag = 'scratch operand']
  #allocation3 [shape = 'f32[8,8,1]{2,1,0:T(8,128)}', space=vmem, size = 0x8000, scoped, tag = 'scratch operand']
  #allocation4 [shape = 'f32[8,8,16]{2,1,0:T(8,128)}', space=vmem, size = 0x8000, scoped, tag = 'scratch operand']
  %s0 = inlined_call_operand.vmem [shape: bf16[8,8,16], index: 0, kind: input, shape index: {}]
  %s1 = inlined_call_operand.vmem [shape: bf16[8,8,16], index: 1, kind: input, shape index: {}]
  %s2 = inlined_call_operand.vmem [shape: bf16[8,8,16], index: 2, kind: input, shape index: {}]
  %s3 = inlined_call_operand.vmem [shape: bf16[8,8,16], index: 3, kind: output, shape index: {}]
  %s4 = sld [smem:[#allocation0]]
  $region38: #{gpt_forward.12} parent=0
    _
  %s6 = ssub.s32 1, %s4
  %s7 = scalar_select 0, %s6, %s4
  // Predicated region
  $region2: #{gpt_forward.12} parent=0 // pred_check
    _
  $region3: #{gpt_forward.12} parent=0 // pred_check_branch
    %9 = sbr.rel (0) target = $region5
  $region4: #{gpt_forward.12} parent=0 // pred_region
    _
  $region5: #{gpt_forward.12} parent=0 // pred_fallthru
    _
  // Predicated region
  $region6: #{gpt_forward.12} parent=0 // pred_check
    _
  $region7: #{gpt_forward.12} parent=0 // pred_check_branch
    %11 = sbr.rel (0) target = $region9
  $region8: #{gpt_forward.12} parent=0 // pred_region
    _
  $region9: #{gpt_forward.12} parent=0 // pred_fallthru
    _
  // Predicated region
  $region10: #{gpt_forward.12} parent=0 // pred_check
    _
  $region11: #{gpt_forward.12} parent=0 // pred_check_branch
    %13 = sbr.rel (0) target = $region13
  $region12: #{gpt_forward.12} parent=0 // pred_region
    _
  $region13: #{gpt_forward.12} parent=0 // pred_fallthru
    _
  %p15 = scmp.eq.s32.totalorder 0, 0
  // Predicated region
  $region14: #{gpt_forward.12} parent=0 // pred_check
    %p16 = pneg %p15
  $region15: #{gpt_forward.12} parent=0 // pred_check_branch
    %18 = sbr.rel (%p16) target = $region17
  $region16: #{gpt_forward.12} parent=0 // pred_region
    %vm19 = vcmask 7168
    %20 = vst.msk [vmem:[#allocation2] sm:$0xff] %vm19, -1e+30
    %21 = vst.msk [vmem:[#allocation2 + $0x8] sm:$0xff] %vm19, -1e+30
    %22 = vst.msk [vmem:[#allocation2 + $0x10] sm:$0xff] %vm19, -1e+30
    %23 = vst.msk [vmem:[#allocation2 + $0x18] sm:$0xff] %vm19, -1e+30
    %24 = vst.msk [vmem:[#allocation2 + $0x20] sm:$0xff] %vm19, -1e+30
    %25 = vst.msk [vmem:[#allocation2 + $0x28] sm:$0xff] %vm19, -1e+30
    %26 = vst.msk [vmem:[#allocation2 + $0x30] sm:$0xff] %vm19, -1e+30
    %27 = vst.msk [vmem:[#allocation2 + $0x38] sm:$0xff] %vm19, -1e+30
    %28 = vst.msk [vmem:[#allocation3] sm:$0xff] %vm19, 0.0
    %29 = vst.msk [vmem:[#allocation3 + $0x8] sm:$0xff] %vm19, 0.0
    %30 = vst.msk [vmem:[#allocation3 + $0x10] sm:$0xff] %vm19, 0.0
    %31 = vst.msk [vmem:[#allocation3 + $0x18] sm:$0xff] %vm19, 0.0
    %32 = vst.msk [vmem:[#allocation3 + $0x20] sm:$0xff] %vm19, 0.0
    %33 = vst.msk [vmem:[#allocation3 + $0x28] sm:$0xff] %vm19, 0.0
    %34 = vst.msk [vmem:[#allocation3 + $0x30] sm:$0xff] %vm19, 0.0
    %35 = vst.msk [vmem:[#allocation3 + $0x38] sm:$0xff] %vm19, 0.0
    %vm36 = vcmask 130048
    %37 = vst.msk [vmem:[#allocation4] sm:$0xff] %vm36, 0.0
    %38 = vst.msk [vmem:[#allocation4 + $0x8] sm:$0xff] %vm36, 0.0
    %39 = vst.msk [vmem:[#allocation4 + $0x10] sm:$0xff] %vm36, 0.0
    %40 = vst.msk [vmem:[#allocation4 + $0x18] sm:$0xff] %vm36, 0.0
    %41 = vst.msk [vmem:[#allocation4 + $0x20] sm:$0xff] %vm36, 0.0
    %42 = vst.msk [vmem:[#allocation4 + $0x28] sm:$0xff] %vm36, 0.0
    %43 = vst.msk [vmem:[#allocation4 + $0x30] sm:$0xff] %vm36, 0.0
    %44 = vst.msk [vmem:[#allocation4 + $0x38] sm:$0xff] %vm36, 0.0
  $region17: #{gpt_forward.12} parent=0 // pred_fallthru
    _
  %s45 = smul.u32 0, 8
  %s46 = smul.u32 0, 8
  %s47 = sadd.s32 %s45, 7
  %s48 = sadd.s32 %s46, 7
  %p49 = scmp.le.s32.totalorder %s48, %s45
  // Predicated region
  $region18: #{gpt_forward.12} parent=0 // pred_check
    %p50 = pneg %p49
  $region19: #{gpt_forward.12} parent=0 // pred_check_branch
    %52 = sbr.rel (%p50) target = $region21
  $region20: #{gpt_forward.12} parent=0 // pred_region
    %v53 = vld [vmem:[%s0] sm:$0xf]
    %v54 = vld [vmem:[%s0 + $0x4] sm:$0xf]
    %v55 = vld [vmem:[%s0 + $0x8] sm:$0xf]
    %v56 = vld [vmem:[%s0 + $0xc] sm:$0xf]
    %v57 = vld [vmem:[%s0 + $0x10] sm:$0xf]
    %v58 = vld [vmem:[%s0 + $0x14] sm:$0xf]
    %v59 = vld [vmem:[%s0 + $0x18] sm:$0xf]
    %v60 = vld [vmem:[%s0 + $0x1c] sm:$0xf]
    %v61 = vld [vmem:[%s1] sm:$0xf]
    %v62 = vld [vmem:[%s1 + $0x4] sm:$0xf]
    %v63 = vld [vmem:[%s1 + $0x8] sm:$0xf]
    %v64 = vld [vmem:[%s1 + $0xc] sm:$0xf]
    %v65 = vld [vmem:[%s1 + $0x10] sm:$0xf]
    %v66 = vld [vmem:[%s1 + $0x14] sm:$0xf]
    %v67 = vld [vmem:[%s1 + $0x18] sm:$0xf]
    %v68 = vld [vmem:[%s1 + $0x1c] sm:$0xf]
    %vm69 = vcmask 130048
    %v71 = vsel %vm69, %v53, 0
    %v74 = vsel %vm69, %v61, 0
    %76 = vmatprep.subr.bf16.mxu0 0
    %77 = vmatpush1.bf16.xpose.msra.mxu0 0
    %78 = vmatprep.subr.bf16.mxu0 0
    %79 = vmatpush1.bf16.xpose.msra.mxu0 0
    %80 = vmatprep.subr.bf16.mxu0 0
    %81 = vmatpush1.bf16.xpose.msra.mxu0 0
    %82 = vmatprep.subr.bf16.mxu0 0
    %83 = vmatpush1.bf16.xpose.msra.mxu0 0
    %84 = vmatprep.subr.bf16.mxu0 0
    %85 = vmatpush1.bf16.xpose.msra.mxu0 0
    %86 = vmatprep.subr.bf16.mxu0 0
    %87 = vmatpush1.bf16.xpose.msra.mxu0 0
    %88 = vmatprep.subr.bf16.mxu0 0
    %89 = vmatpush1.bf16.xpose.msra.mxu0 0
    %90 = vmatprep.subr.bf16.mxu0 0
    %91 = vmatpush1.bf16.xpose.msra.mxu0 %v74
    %92 = vmatprep.subr.bf16.mxu0 0
    %93 = vmatpush2.bf16.xpose.msra.mxu0 0
    %94 = vmatprep.subr.bf16.mxu0 0
    %95 = vmatpush2.bf16.xpose.msra.mxu0 0
    %96 = vmatprep.subr.bf16.mxu0 0
    %97 = vmatpush2.bf16.xpose.msra.mxu0 0
    %98 = vmatprep.subr.bf16.mxu0 0
    %99 = vmatpush2.bf16.xpose.msra.mxu0 0
    %100 = vmatprep.subr.bf16.mxu0 0
    %101 = vmatpush2.bf16.xpose.msra.mxu0 0
    %102 = vmatprep.subr.bf16.mxu0 0
    %103 = vmatpush2.bf16.xpose.msra.mxu0 0
    %104 = vmatprep.subr.bf16.mxu0 0
    %105 = vmatpush2.bf16.xpose.msra.mxu0 0
    %106 = vmatprep.subr.bf16.mxu0 0
    %107 = vmatpush2.bf16.xpose.msra.mxu0 0
    %108 = vmatprep.mubr.bf16.mxu0 0
    %109 = vmatmul.mubr.bf16.gmra.mxu0 %v71
    %v110 = vpop.f32.mrf.mxu0
    %v111 = vadd.f32 0.0, %v110
    %v112 = vpop.f32.mrf.mxu0
    %v113 = vpop.f32.mrf.mxu0
    %v114 = vpop.f32.mrf.mxu0
    %115 = vdwg.mxu0
    %v117 = vsel %vm69, %v54, 0
    %v120 = vsel %vm69, %v62, 0
    %122 = vmatprep.subr.bf16.mxu0 0
    %123 = vmatpush1.bf16.xpose.msra.mxu0 0
    %124 = vmatprep.subr.bf16.mxu0 0
    %125 = vmatpush1.bf16.xpose.msra.mxu0 0
    %126 = vmatprep.subr.bf16.mxu0 0
    %127 = vmatpush1.bf16.xpose.msra.mxu0 0
    %128 = vmatprep.subr.bf16.mxu0 0
    %129 = vmatpush1.bf16.xpose.msra.mxu0 0
    %130 = vmatprep.subr.bf16.mxu0 0
    %131 = vmatpush1.bf16.xpose.msra.mxu0 0
    %132 = vmatprep.subr.bf16.mxu0 0
    %133 = vmatpush1.bf16.xpose.msra.mxu0 0
    %134 = vmatprep.subr.bf16.mxu0 0
    %135 = vmatpush1.bf16.xpose.msra.mxu0 0
    %136 = vmatprep.subr.bf16.mxu0 0
    %137 = vmatpush1.bf16.xpose.msra.mxu0 %v120
    %138 = vmatprep.subr.bf16.mxu0 0
    %139 = vmatpush2.bf16.xpose.msra.mxu0 0
    %140 = vmatprep.subr.bf16.mxu0 0
    %141 = vmatpush2.bf16.xpose.msra.mxu0 0
    %142 = vmatprep.subr.bf16.mxu0 0
    %143 = vmatpush2.bf16.xpose.msra.mxu0 0
    %144 = vmatprep.subr.bf16.mxu0 0
    %145 = vmatpush2.bf16.xpose.msra.mxu0 0
    %146 = vmatprep.subr.bf16.mxu0 0
    %147 = vmatpush2.bf16.xpose.msra.mxu0 0
    %148 = vmatprep.subr.bf16.mxu0 0
    %149 = vmatpush2.bf16.xpose.msra.mxu0 0
    %150 = vmatprep.subr.bf16.mxu0 0
    %151 = vmatpush2.bf16.xpose.msra.mxu0 0
    %152 = vmatprep.subr.bf16.mxu0 0
    %153 = vmatpush2.bf16.xpose.msra.mxu0 0
    %154 = vmatprep.mubr.bf16.mxu0 0
    %155 = vmatmul.mubr.bf16.gmra.mxu0 %v117
    %v156 = vpop.f32.mrf.mxu0
    %v157 = vadd.f32 0.0, %v156
    %v158 = vpop.f32.mrf.mxu0
    %v159 = vpop.f32.mrf.mxu0
    %v160 = vpop.f32.mrf.mxu0
    %161 = vdwg.mxu0
    %v163 = vsel %vm69, %v55, 0
    %v166 = vsel %vm69, %v63, 0
    %168 = vmatprep.subr.bf16.mxu0 0
    %169 = vmatpush1.bf16.xpose.msra.mxu0 0
    %170 = vmatprep.subr.bf16.mxu0 0
    %171 = vmatpush1.bf16.xpose.msra.mxu0 0
    %172 = vmatprep.subr.bf16.mxu0 0
    %173 = vmatpush1.bf16.xpose.msra.mxu0 0
    %174 = vmatprep.subr.bf16.mxu0 0
    %175 = vmatpush1.bf16.xpose.msra.mxu0 0
    %176 = vmatprep.subr.bf16.mxu0 0
    %177 = vmatpush1.bf16.xpose.msra.mxu0 0
    %178 = vmatprep.subr.bf16.mxu0 0
    %179 = vmatpush1.bf16.xpose.msra.mxu0 0
    %180 = vmatprep.subr.bf16.mxu0 0
    %181 = vmatpush1.bf16.xpose.msra.mxu0 0
    %182 = vmatprep.subr.bf16.mxu0 0
    %183 = vmatpush1.bf16.xpose.msra.mxu0 %v166
    %184 = vmatprep.subr.bf16.mxu0 0
    %185 = vmatpush2.bf16.xpose.msra.mxu0 0
    %186 = vmatprep.subr.bf16.mxu0 0
    %187 = vmatpush2.bf16.xpose.msra.mxu0 0
    %188 = vmatprep.subr.bf16.mxu0 0
    %189 = vmatpush2.bf16.xpose.msra.mxu0 0
    %190 = vmatprep.subr.bf16.mxu0 0
    %191 = vmatpush2.bf16.xpose.msra.mxu0 0
    %192 = vmatprep.subr.bf16.mxu0 0
    %193 = vmatpush2.bf16.xpose.msra.mxu0 0
    %194 = vmatprep.subr.bf16.mxu0 0
    %195 = vmatpush2.bf16.xpose.msra.mxu0 0
    %196 = vmatprep.subr.bf16.mxu0 0
    %197 = vmatpush2.bf16.xpose.msra.mxu0 0
    %198 = vmatprep.subr.bf16.mxu0 0
    %199 = vmatpush2.bf16.xpose.msra.mxu0 0
    %200 = vmatprep.mubr.bf16.mxu0 0
    %201 = vmatmul.mubr.bf16.gmra.mxu0 %v163
    %v202 = vpop.f32.mrf.mxu0
    %v203 = vadd.f32 0.0, %v202
    %v204 = vpop.f32.mrf.mxu0
    %v205 = vpop.f32.mrf.mxu0
    %v206 = vpop.f32.mrf.mxu0
    %207 = vdwg.mxu0
    %v209 = vsel %vm69, %v56, 0
    %v212 = vsel %vm69, %v64, 0
    %214 = vmatprep.subr.bf16.mxu0 0
    %215 = vmatpush1.bf16.xpose.msra.mxu0 0
    %216 = vmatprep.subr.bf16.mxu0 0
    %217 = vmatpush1.bf16.xpose.msra.mxu0 0
    %218 = vmatprep.subr.bf16.mxu0 0
    %219 = vmatpush1.bf16.xpose.msra.mxu0 0
    %220 = vmatprep.subr.bf16.mxu0 0
    %221 = vmatpush1.bf16.xpose.msra.mxu0 0
    %222 = vmatprep.subr.bf16.mxu0 0
    %223 = vmatpush1.bf16.xpose.msra.mxu0 0
    %224 = vmatprep.subr.bf16.mxu0 0
    %225 = vmatpush1.bf16.xpose.msra.mxu0 0
    %226 = vmatprep.subr.bf16.mxu0 0
    %227 = vmatpush1.bf16.xpose.msra.mxu0 0
    %228 = vmatprep.subr.bf16.mxu0 0
    %229 = vmatpush1.bf16.xpose.msra.mxu0 %v212
    %230 = vmatprep.subr.bf16.mxu0 0
    %231 = vmatpush2.bf16.xpose.msra.mxu0 0
    %232 = vmatprep.subr.bf16.mxu0 0
    %233 = vmatpush2.bf16.xpose.msra.mxu0 0
    %234 = vmatprep.subr.bf16.mxu0 0
    %235 = vmatpush2.bf16.xpose.msra.mxu0 0
    %236 = vmatprep.subr.bf16.mxu0 0
    %237 = vmatpush2.bf16.xpose.msra.mxu0 0
    %238 = vmatprep.subr.bf16.mxu0 0
    %239 = vmatpush2.bf16.xpose.msra.mxu0 0
    %240 = vmatprep.subr.bf16.mxu0 0
    %241 = vmatpush2.bf16.xpose.msra.mxu0 0
    %242 = vmatprep.subr.bf16.mxu0 0
    %243 = vmatpush2.bf16.xpose.msra.mxu0 0
    %244 = vmatprep.subr.bf16.mxu0 0
    %245 = vmatpush2.bf16.xpose.msra.mxu0 0
    %246 = vmatprep.mubr.bf16.mxu0 0
    %247 = vmatmul.mubr.bf16.gmra.mxu0 %v209
    %v248 = vpop.f32.mrf.mxu0
    %v249 = vadd.f32 0.0, %v248
    %v250 = vpop.f32.mrf.mxu0
    %v251 = vpop.f32.mrf.mxu0
    %v252 = vpop.f32.mrf.mxu0
    %253 = vdwg.mxu0
    %v255 = vsel %vm69, %v57, 0
    %v258 = vsel %vm69, %v65, 0
    %260 = vmatprep.subr.bf16.mxu0 0
    %261 = vmatpush1.bf16.xpose.msra.mxu0 0
    %262 = vmatprep.subr.bf16.mxu0 0
    %263 = vmatpush1.bf16.xpose.msra.mxu0 0
    %264 = vmatprep.subr.bf16.mxu0 0
    %265 = vmatpush1.bf16.xpose.msra.mxu0 0
    %266 = vmatprep.subr.bf16.mxu0 0
    %267 = vmatpush1.bf16.xpose.msra.mxu0 0
    %268 = vmatprep.subr.bf16.mxu0 0
    %269 = vmatpush1.bf16.xpose.msra.mxu0 0
    %270 = vmatprep.subr.bf16.mxu0 0
    %271 = vmatpush1.bf16.xpose.msra.mxu0 0
    %272 = vmatprep.subr.bf16.mxu0 0
    %273 = vmatpush1.bf16.xpose.msra.mxu0 0
    %274 = vmatprep.subr.bf16.mxu0 0
    %275 = vmatpush1.bf16.xpose.msra.mxu0 %v258
    %276 = vmatprep.subr.bf16.mxu0 0
    %277 = vmatpush2.bf16.xpose.msra.mxu0 0
    %278 = vmatprep.subr.bf16.mxu0 0
    %279 = vmatpush2.bf16.xpose.msra.mxu0 0
    %280 = vmatprep.subr.bf16.mxu0 0
    %281 = vmatpush2.bf16.xpose.msra.mxu0 0
    %282 = vmatprep.subr.bf16.mxu0 0
    %283 = vmatpush2.bf16.xpose.msra.mxu0 0
    %284 = vmatprep.subr.bf16.mxu0 0
    %285 = vmatpush2.bf16.xpose.msra.mxu0 0
    %286 = vmatprep.subr.bf16.mxu0 0
    %287 = vmatpush2.bf16.xpose.msra.mxu0 0
    %288 = vmatprep.subr.bf16.mxu0 0
    %289 = vmatpush2.bf16.xpose.msra.mxu0 0
    %290 = vmatprep.subr.bf16.mxu0 0
    %291 = vmatpush2.bf16.xpose.msra.mxu0 0
    %292 = vmatprep.mubr.bf16.mxu0 0
    %293 = vmatmul.mubr.bf16.gmra.mxu0 %v255
    %v294 = vpop.f32.mrf.mxu0
    %v295 = vadd.f32 0.0, %v294
    %v296 = vpop.f32.mrf.mxu0
    %v297 = vpop.f32.mrf.mxu0
    %v298 = vpop.f32.mrf.mxu0
    %299 = vdwg.mxu0
    %v301 = vsel %vm69, %v58, 0
    %v304 = vsel %vm69, %v66, 0
    %306 = vmatprep.subr.bf16.mxu0 0
    %307 = vmatpush1.bf16.xpose.msra.mxu0 0
    %308 = vmatprep.subr.bf16.mxu0 0
    %309 = vmatpush1.bf16.xpose.msra.mxu0 0
    %310 = vmatprep.subr.bf16.mxu0 0
    %311 = vmatpush1.bf16.xpose.msra.mxu0 0
    %312 = vmatprep.subr.bf16.mxu0 0
    %313 = vmatpush1.bf16.xpose.msra.mxu0 0
    %314 = vmatprep.subr.bf16.mxu0 0
    %315 = vmatpush1.bf16.xpose.msra.mxu0 0
    %316 = vmatprep.subr.bf16.mxu0 0
    %317 = vmatpush1.bf16.xpose.msra.mxu0 0
    %318 = vmatprep.subr.bf16.mxu0 0
    %319 = vmatpush1.bf16.xpose.msra.mxu0 0
    %320 = vmatprep.subr.bf16.mxu0 0
    %321 = vmatpush1.bf16.xpose.msra.mxu0 %v304
    %322 = vmatprep.subr.bf16.mxu0 0
    %323 = vmatpush2.bf16.xpose.msra.mxu0 0
    %324 = vmatprep.subr.bf16.mxu0 0
    %325 = vmatpush2.bf16.xpose.msra.mxu0 0
    %326 = vmatprep.subr.bf16.mxu0 0
    %327 = vmatpush2.bf16.xpose.msra.mxu0 0
    %328 = vmatprep.subr.bf16.mxu0 0
    %329 = vmatpush2.bf16.xpose.msra.mxu0 0
    %330 = vmatprep.subr.bf16.mxu0 0
    %331 = vmatpush2.bf16.xpose.msra.mxu0 0
    %332 = vmatprep.subr.bf16.mxu0 0
    %333 = vmatpush2.bf16.xpose.msra.mxu0 0
    %334 = vmatprep.subr.bf16.mxu0 0
    %335 = vmatpush2.bf16.xpose.msra.mxu0 0
    %336 = vmatprep.subr.bf16.mxu0 0
    %337 = vmatpush2.bf16.xpose.msra.mxu0 0
    %338 = vmatprep.mubr.bf16.mxu0 0
    %339 = vmatmul.mubr.bf16.gmra.mxu0 %v301
    %v340 = vpop.f32.mrf.mxu0
    %v341 = vadd.f32 0.0, %v340
    %v342 = vpop.f32.mrf.mxu0
    %v343 = vpop.f32.mrf.mxu0
    %v344 = vpop.f32.mrf.mxu0
    %345 = vdwg.mxu0
    %v347 = vsel %vm69, %v59, 0
    %v350 = vsel %vm69, %v67, 0
    %352 = vmatprep.subr.bf16.mxu0 0
    %353 = vmatpush1.bf16.xpose.msra.mxu0 0
    %354 = vmatprep.subr.bf16.mxu0 0
    %355 = vmatpush1.bf16.xpose.msra.mxu0 0
    %356 = vmatprep.subr.bf16.mxu0 0
    %357 = vmatpush1.bf16.xpose.msra.mxu0 0
    %358 = vmatprep.subr.bf16.mxu0 0
    %359 = vmatpush1.bf16.xpose.msra.mxu0 0
    %360 = vmatprep.subr.bf16.mxu0 0
    %361 = vmatpush1.bf16.xpose.msra.mxu0 0
    %362 = vmatprep.subr.bf16.mxu0 0
    %363 = vmatpush1.bf16.xpose.msra.mxu0 0
    %364 = vmatprep.subr.bf16.mxu0 0
    %365 = vmatpush1.bf16.xpose.msra.mxu0 0
    %366 = vmatprep.subr.bf16.mxu0 0
    %367 = vmatpush1.bf16.xpose.msra.mxu0 %v350
    %368 = vmatprep.subr.bf16.mxu0 0
    %369 = vmatpush2.bf16.xpose.msra.mxu0 0
    %370 = vmatprep.subr.bf16.mxu0 0
    %371 = vmatpush2.bf16.xpose.msra.mxu0 0
    %372 = vmatprep.subr.bf16.mxu0 0
    %373 = vmatpush2.bf16.xpose.msra.mxu0 0
    %374 = vmatprep.subr.bf16.mxu0 0
    %375 = vmatpush2.bf16.xpose.msra.mxu0 0
    %376 = vmatprep.subr.bf16.mxu0 0
    %377 = vmatpush2.bf16.xpose.msra.mxu0 0
    %378 = vmatprep.subr.bf16.mxu0 0
    %379 = vmatpush2.bf16.xpose.msra.mxu0 0
    %380 = vmatprep.subr.bf16.mxu0 0
    %381 = vmatpush2.bf16.xpose.msra.mxu0 0
    %382 = vmatprep.subr.bf16.mxu0 0
    %383 = vmatpush2.bf16.xpose.msra.mxu0 0
    %384 = vmatprep.mubr.bf16.mxu0 0
    %385 = vmatmul.mubr.bf16.gmra.mxu0 %v347
    %v386 = vpop.f32.mrf.mxu0
    %v387 = vadd.f32 0.0, %v386
    %v388 = vpop.f32.mrf.mxu0
    %v389 = vpop.f32.mrf.mxu0
    %v390 = vpop.f32.mrf.mxu0
    %391 = vdwg.mxu0
    %v393 = vsel %vm69, %v60, 0
    %v396 = vsel %vm69, %v68, 0
    %398 = vmatprep.subr.bf16.mxu0 0
    %399 = vmatpush1.bf16.xpose.msra.mxu0 0
    %400 = vmatprep.subr.bf16.mxu0 0
    %401 = vmatpush1.bf16.xpose.msra.mxu0 0
    %402 = vmatprep.subr.bf16.mxu0 0
    %403 = vmatpush1.bf16.xpose.msra.mxu0 0
    %404 = vmatprep.subr.bf16.mxu0 0
    %405 = vmatpush1.bf16.xpose.msra.mxu0 0
    %406 = vmatprep.subr.bf16.mxu0 0
    %407 = vmatpush1.bf16.xpose.msra.mxu0 0
    %408 = vmatprep.subr.bf16.mxu0 0
    %409 = vmatpush1.bf16.xpose.msra.mxu0 0
    %410 = vmatprep.subr.bf16.mxu0 0
    %411 = vmatpush1.bf16.xpose.msra.mxu0 0
    %412 = vmatprep.subr.bf16.mxu0 0
    %413 = vmatpush1.bf16.xpose.msra.mxu0 %v396
    %414 = vmatprep.subr.bf16.mxu0 0
    %415 = vmatpush2.bf16.xpose.msra.mxu0 0
    %416 = vmatprep.subr.bf16.mxu0 0
    %417 = vmatpush2.bf16.xpose.msra.mxu0 0
    %418 = vmatprep.subr.bf16.mxu0 0
    %419 = vmatpush2.bf16.xpose.msra.mxu0 0
    %420 = vmatprep.subr.bf16.mxu0 0
    %421 = vmatpush2.bf16.xpose.msra.mxu0 0
    %422 = vmatprep.subr.bf16.mxu0 0
    %423 = vmatpush2.bf16.xpose.msra.mxu0 0
    %424 = vmatprep.subr.bf16.mxu0 0
    %425 = vmatpush2.bf16.xpose.msra.mxu0 0
    %426 = vmatprep.subr.bf16.mxu0 0
    %427 = vmatpush2.bf16.xpose.msra.mxu0 0
    %428 = vmatprep.subr.bf16.mxu0 0
    %429 = vmatpush2.bf16.xpose.msra.mxu0 0
    %430 = vmatprep.mubr.bf16.mxu0 0
    %431 = vmatmul.mubr.bf16.gmra.mxu0 %v393
    %v432 = vpop.f32.mrf.mxu0
    %v433 = vadd.f32 0.0, %v432
    %v434 = vpop.f32.mrf.mxu0
    %v435 = vpop.f32.mrf.mxu0
    %v436 = vpop.f32.mrf.mxu0
    %437 = vdwg.mxu0
    %v438 = vmul.f32 %v111, 0.25
    %v439 = vmul.f32 %v157, 0.25
    %v440 = vmul.f32 %v203, 0.25
    %v441 = vmul.f32 %v249, 0.25
    %v442 = vmul.f32 %v295, 0.25
    %v443 = vmul.f32 %v341, 0.25
    %v444 = vmul.f32 %v387, 0.25
    %v445 = vmul.f32 %v433, 0.25
    %v446 = vld [vmem:[#allocation2] sm:$0xff]
    %v447 = vld [vmem:[#allocation2 + $0x8] sm:$0xff]
    %v448 = vld [vmem:[#allocation2 + $0x10] sm:$0xff]
    %v449 = vld [vmem:[#allocation2 + $0x18] sm:$0xff]
    %v450 = vld [vmem:[#allocation2 + $0x20] sm:$0xff]
    %v451 = vld [vmem:[#allocation2 + $0x28] sm:$0xff]
    %v452 = vld [vmem:[#allocation2 + $0x30] sm:$0xff]
    %v453 = vld [vmem:[#allocation2 + $0x38] sm:$0xff]
    %vm454 = vcmask 64512
    %v455 = vsel %vm454, %v438, -inf
    %456 = vmax.xlane.f32.xlu0 %v455
    %v457 = vpop.xlane.xlu0 %456
    %v458 = vsel %vm454, %v439, -inf
    %459 = vmax.xlane.f32.xlu0 %v458
    %v460 = vpop.xlane.xlu0 %459
    %v461 = vsel %vm454, %v440, -inf
    %462 = vmax.xlane.f32.xlu0 %v461
    %v463 = vpop.xlane.xlu0 %462
    %v464 = vsel %vm454, %v441, -inf
    %465 = vmax.xlane.f32.xlu0 %v464
    %v466 = vpop.xlane.xlu0 %465
    %v467 = vsel %vm454, %v442, -inf
    %468 = vmax.xlane.f32.xlu0 %v467
    %v469 = vpop.xlane.xlu0 %468
    %v470 = vsel %vm454, %v443, -inf
    %471 = vmax.xlane.f32.xlu0 %v470
    %v472 = vpop.xlane.xlu0 %471
    %v473 = vsel %vm454, %v444, -inf
    %474 = vmax.xlane.f32.xlu0 %v473
    %v475 = vpop.xlane.xlu0 %474
    %v476 = vsel %vm454, %v445, -inf
    %477 = vmax.xlane.f32.xlu0 %v476
    %v478 = vpop.xlane.xlu0 %477
    %v479 = vmax.f32 %v446, %v457
    %v480 = vmax.f32 %v447, %v460
    %v481 = vmax.f32 %v448, %v463
    %v482 = vmax.f32 %v449, %v466
    %v483 = vmax.f32 %v450, %v469
    %v484 = vmax.f32 %v451, %v472
    %v485 = vmax.f32 %v452, %v475
    %v486 = vmax.f32 %v453, %v478
    %v487 = vsub.f32 %v446, %v479
    %v488 = vsub.f32 %v447, %v480
    %v489 = vsub.f32 %v448, %v481
    %v490 = vsub.f32 %v449, %v482
    %v491 = vsub.f32 %v450, %v483
    %v492 = vsub.f32 %v451, %v484
    %v493 = vsub.f32 %v452, %v485
    %v494 = vsub.f32 %v453, %v486
    %v495 = vmul.f32 %v487, 1.442695
    %v496 = vpow.pop %v495
    %v497 = vmul.f32 %v488, 1.442695
    %v498 = vpow.pop %v497
    %v499 = vmul.f32 %v489, 1.442695
    %v500 = vpow.pop %v499
    %v501 = vmul.f32 %v490, 1.442695
    %v502 = vpow.pop %v501
    %v503 = vmul.f32 %v491, 1.442695
    %v504 = vpow.pop %v503
    %v505 = vmul.f32 %v492, 1.442695
    %v506 = vpow.pop %v505
    %v507 = vmul.f32 %v493, 1.442695
    %v508 = vpow.pop %v507
    %v509 = vmul.f32 %v494, 1.442695
    %v510 = vpow.pop %v509
    %512 = vset.pattern.permute.xlu0 0
    %513 = vperm.xlu0 %512, %v479
    %v514 = vpop.permute.xlu0 %513
    %517 = vset.pattern.permute.xlu0 0
    %518 = vperm.xlu0 %517, %v480
    %v519 = vpop.permute.xlu0 %518
    %522 = vset.pattern.permute.xlu0 0
    %523 = vperm.xlu0 %522, %v481
    %v524 = vpop.permute.xlu0 %523
    %527 = vset.pattern.permute.xlu0 0
    %528 = vperm.xlu0 %527, %v482
    %v529 = vpop.permute.xlu0 %528
    %532 = vset.pattern.permute.xlu0 0
    %533 = vperm.xlu0 %532, %v483
    %v534 = vpop.permute.xlu0 %533
    %537 = vset.pattern.permute.xlu0 0
    %538 = vperm.xlu0 %537, %v484
    %v539 = vpop.permute.xlu0 %538
    %542 = vset.pattern.permute.xlu0 0
    %543 = vperm.xlu0 %542, %v485
    %v544 = vpop.permute.xlu0 %543
    %547 = vset.pattern.permute.xlu0 0
    %548 = vperm.xlu0 %547, %v486
    %v549 = vpop.permute.xlu0 %548
    %v551 = vsub.f32 %v438, %v514
    %v552 = vsub.f32 %v439, %v519
    %v553 = vsub.f32 %v440, %v524
    %v554 = vsub.f32 %v441, %v529
    %v555 = vsub.f32 %v442, %v534
    %v556 = vsub.f32 %v443, %v539
    %v557 = vsub.f32 %v444, %v544
    %v558 = vsub.f32 %v445, %v549
    %v559 = vmul.f32 %v551, 1.442695
    %v560 = vpow.pop %v559
    %v561 = vmul.f32 %v552, 1.442695
    %v562 = vpow.pop %v561
    %v563 = vmul.f32 %v553, 1.442695
    %v564 = vpow.pop %v563
    %v565 = vmul.f32 %v554, 1.442695
    %v566 = vpow.pop %v565
    %v567 = vmul.f32 %v555, 1.442695
    %v568 = vpow.pop %v567
    %v569 = vmul.f32 %v556, 1.442695
    %v570 = vpow.pop %v569
    %v571 = vmul.f32 %v557, 1.442695
    %v572 = vpow.pop %v571
    %v573 = vmul.f32 %v558, 1.442695
    %v574 = vpow.pop %v573
    %v575 = vld [vmem:[#allocation3] sm:$0xff]
    %v576 = vld [vmem:[#allocation3 + $0x8] sm:$0xff]
    %v577 = vld [vmem:[#allocation3 + $0x10] sm:$0xff]
    %v578 = vld [vmem:[#allocation3 + $0x18] sm:$0xff]
    %v579 = vld [vmem:[#allocation3 + $0x20] sm:$0xff]
    %v580 = vld [vmem:[#allocation3 + $0x28] sm:$0xff]
    %v581 = vld [vmem:[#allocation3 + $0x30] sm:$0xff]
    %v582 = vld [vmem:[#allocation3 + $0x38] sm:$0xff]
    %v583 = vmul.f32 %v496, %v575
    %v584 = vmul.f32 %v498, %v576
    %v585 = vmul.f32 %v500, %v577
    %v586 = vmul.f32 %v502, %v578
    %v587 = vmul.f32 %v504, %v579
    %v588 = vmul.f32 %v506, %v580
    %v589 = vmul.f32 %v508, %v581
    %v590 = vmul.f32 %v510, %v582
    %v591 = vsel %vm454, %v560, 0.0
    %592 = vadd.xlane.f32.xlu0 %v591
    %v593 = vpop.xlane.xlu0 %592
    %v594 = vsel %vm454, %v562, 0.0
    %595 = vadd.xlane.f32.xlu0 %v594
    %v596 = vpop.xlane.xlu0 %595
    %v597 = vsel %vm454, %v564, 0.0
    %598 = vadd.xlane.f32.xlu0 %v597
    %v599 = vpop.xlane.xlu0 %598
    %v600 = vsel %vm454, %v566, 0.0
    %601 = vadd.xlane.f32.xlu0 %v600
    %v602 = vpop.xlane.xlu0 %601
    %v603 = vsel %vm454, %v568, 0.0
    %604 = vadd.xlane.f32.xlu0 %v603
    %v605 = vpop.xlane.xlu0 %604
    %v606 = vsel %vm454, %v570, 0.0
    %607 = vadd.xlane.f32.xlu0 %v606
    %v608 = vpop.xlane.xlu0 %607
    %v609 = vsel %vm454, %v572, 0.0
    %610 = vadd.xlane.f32.xlu0 %v609
    %v611 = vpop.xlane.xlu0 %610
    %v612 = vsel %vm454, %v574, 0.0
    %613 = vadd.xlane.f32.xlu0 %v612
    %v614 = vpop.xlane.xlu0 %613
    %v615 = vadd.f32 %v583, %v593
    %v616 = vadd.f32 %v584, %v596
    %v617 = vadd.f32 %v585, %v599
    %v618 = vadd.f32 %v586, %v602
    %v619 = vadd.f32 %v587, %v605
    %v620 = vadd.f32 %v588, %v608
    %v621 = vadd.f32 %v589, %v611
    %v622 = vadd.f32 %v590, %v614
    %vm623 = vcmask 7168
    %624 = vst.msk [vmem:[#allocation3] sm:$0xff] %vm623, %v615
    %625 = vst.msk [vmem:[#allocation3 + $0x8] sm:$0xff] %vm623, %v616
    %626 = vst.msk [vmem:[#allocation3 + $0x10] sm:$0xff] %vm623, %v617
    %627 = vst.msk [vmem:[#allocation3 + $0x18] sm:$0xff] %vm623, %v618
    %628 = vst.msk [vmem:[#allocation3 + $0x20] sm:$0xff] %vm623, %v619
    %629 = vst.msk [vmem:[#allocation3 + $0x28] sm:$0xff] %vm623, %v620
    %630 = vst.msk [vmem:[#allocation3 + $0x30] sm:$0xff] %vm623, %v621
    %631 = vst.msk [vmem:[#allocation3 + $0x38] sm:$0xff] %vm623, %v622
    %v632 = vld [vmem:[#allocation4] sm:$0xff]
    %v633 = vld [vmem:[#allocation4 + $0x8] sm:$0xff]
    %v634 = vld [vmem:[#allocation4 + $0x10] sm:$0xff]
    %v635 = vld [vmem:[#allocation4 + $0x18] sm:$0xff]
    %v636 = vld [vmem:[#allocation4 + $0x20] sm:$0xff]
    %v637 = vld [vmem:[#allocation4 + $0x28] sm:$0xff]
    %v638 = vld [vmem:[#allocation4 + $0x30] sm:$0xff]
    %v639 = vld [vmem:[#allocation4 + $0x38] sm:$0xff]
    %641 = vset.pattern.permute.xlu0 0
    %642 = vperm.xlu0 %641, %v496
    %v643 = vpop.permute.xlu0 %642
    %646 = vset.pattern.permute.xlu0 0
    %647 = vperm.xlu0 %646, %v498
    %v648 = vpop.permute.xlu0 %647
    %651 = vset.pattern.permute.xlu0 0
    %652 = vperm.xlu0 %651, %v500
    %v653 = vpop.permute.xlu0 %652
    %656 = vset.pattern.permute.xlu0 0
    %657 = vperm.xlu0 %656, %v502
    %v658 = vpop.permute.xlu0 %657
    %661 = vset.pattern.permute.xlu0 0
    %662 = vperm.xlu0 %661, %v504
    %v663 = vpop.permute.xlu0 %662
    %666 = vset.pattern.permute.xlu0 0
    %667 = vperm.xlu0 %666, %v506
    %v668 = vpop.permute.xlu0 %667
    %671 = vset.pattern.permute.xlu0 0
    %672 = vperm.xlu0 %671, %v508
    %v673 = vpop.permute.xlu0 %672
    %676 = vset.pattern.permute.xlu0 0
    %677 = vperm.xlu0 %676, %v510
    %v678 = vpop.permute.xlu0 %677
    %v680 = vmul.f32 %v643, %v632
    %v681 = vmul.f32 %v648, %v633
    %v682 = vmul.f32 %v653, %v634
    %v683 = vmul.f32 %v658, %v635
    %v684 = vmul.f32 %v663, %v636
    %v685 = vmul.f32 %v668, %v637
    %v686 = vmul.f32 %v673, %v638
    %v687 = vmul.f32 %v678, %v639
    %v688 = vpack.c.bf16 %v560, %v560
    %v689 = vpack.c.bf16 %v562, %v562
    %v690 = vpack.c.bf16 %v564, %v564
    %v691 = vpack.c.bf16 %v566, %v566
    %v692 = vpack.c.bf16 %v568, %v568
    %v693 = vpack.c.bf16 %v570, %v570
    %v694 = vpack.c.bf16 %v572, %v572
    %v695 = vpack.c.bf16 %v574, %v574
    %v696 = vld [vmem:[%s2] sm:$0xf]
    %v697 = vld [vmem:[%s2 + $0x4] sm:$0xf]
    %v698 = vld [vmem:[%s2 + $0x8] sm:$0xf]
    %v699 = vld [vmem:[%s2 + $0xc] sm:$0xf]
    %v700 = vld [vmem:[%s2 + $0x10] sm:$0xf]
    %v701 = vld [vmem:[%s2 + $0x14] sm:$0xf]
    %v702 = vld [vmem:[%s2 + $0x18] sm:$0xf]
    %v703 = vld [vmem:[%s2 + $0x1c] sm:$0xf]
    %v705 = vsel %vm454, %v688, 0
    %vm707 = vcmask 1043456
    %v709 = vsel %vm707, %v696, 0
    %711 = vmatprep.subr.bf16.mxu0 0
    %712 = vmatpush1.bf16.msra.mxu0 0
    %713 = vmatprep.subr.bf16.mxu0 0
    %714 = vmatpush1.bf16.msra.mxu0 0
    %715 = vmatprep.subr.bf16.mxu0 0
    %716 = vmatpush1.bf16.msra.mxu0 0
    %717 = vmatprep.subr.bf16.mxu0 0
    %718 = vmatpush1.bf16.msra.mxu0 0
    %719 = vmatprep.subr.bf16.mxu0 0
    %720 = vmatpush1.bf16.msra.mxu0 0
    %721 = vmatprep.subr.bf16.mxu0 0
    %722 = vmatpush1.bf16.msra.mxu0 0
    %723 = vmatprep.subr.bf16.mxu0 0
    %724 = vmatpush1.bf16.msra.mxu0 0
    %725 = vmatprep.subr.bf16.mxu0 0
    %726 = vmatpush1.bf16.msra.mxu0 %v709
    %727 = vmatprep.subr.bf16.mxu0 0
    %728 = vmatpush2.bf16.msra.mxu0 0
    %729 = vmatprep.subr.bf16.mxu0 0
    %730 = vmatpush2.bf16.msra.mxu0 0
    %731 = vmatprep.subr.bf16.mxu0 0
    %732 = vmatpush2.bf16.msra.mxu0 0
    %733 = vmatprep.subr.bf16.mxu0 0
    %734 = vmatpush2.bf16.msra.mxu0 0
    %735 = vmatprep.subr.bf16.mxu0 0
    %736 = vmatpush2.bf16.msra.mxu0 0
    %737 = vmatprep.subr.bf16.mxu0 0
    %738 = vmatpush2.bf16.msra.mxu0 0
    %739 = vmatprep.subr.bf16.mxu0 0
    %740 = vmatpush2.bf16.msra.mxu0 0
    %741 = vmatprep.subr.bf16.mxu0 0
    %742 = vmatpush2.bf16.msra.mxu0 0
    %743 = vmatprep.mubr.bf16.mxu0 0
    %744 = vmatmul.mubr.bf16.gmra.mxu0 %v705
    %v745 = vpop.f32.mrf.mxu0
    %v746 = vadd.f32 0.0, %v745
    %v747 = vpop.f32.mrf.mxu0
    %v748 = vpop.f32.mrf.mxu0
    %v749 = vpop.f32.mrf.mxu0
    %750 = vdwg.mxu0
    %v752 = vsel %vm454, %v689, 0
    %v755 = vsel %vm707, %v697, 0
    %757 = vmatprep.subr.bf16.mxu0 0
    %758 = vmatpush1.bf16.msra.mxu0 0
    %759 = vmatprep.subr.bf16.mxu0 0
    %760 = vmatpush1.bf16.msra.mxu0 0
    %761 = vmatprep.subr.bf16.mxu0 0
    %762 = vmatpush1.bf16.msra.mxu0 0
    %763 = vmatprep.subr.bf16.mxu0 0
    %764 = vmatpush1.bf16.msra.mxu0 0
    %765 = vmatprep.subr.bf16.mxu0 0
    %766 = vmatpush1.bf16.msra.mxu0 0
    %767 = vmatprep.subr.bf16.mxu0 0
    %768 = vmatpush1.bf16.msra.mxu0 0
    %769 = vmatprep.subr.bf16.mxu0 0
    %770 = vmatpush1.bf16.msra.mxu0 0
    %771 = vmatprep.subr.bf16.mxu0 0
    %772 = vmatpush1.bf16.msra.mxu0 %v755
    %773 = vmatprep.subr.bf16.mxu0 0
    %774 = vmatpush2.bf16.msra.mxu0 0
    %775 = vmatprep.subr.bf16.mxu0 0
    %776 = vmatpush2.bf16.msra.mxu0 0
    %777 = vmatprep.subr.bf16.mxu0 0
    %778 = vmatpush2.bf16.msra.mxu0 0
    %779 = vmatprep.subr.bf16.mxu0 0
    %780 = vmatpush2.bf16.msra.mxu0 0
    %781 = vmatprep.subr.bf16.mxu0 0
    %782 = vmatpush2.bf16.msra.mxu0 0
    %783 = vmatprep.subr.bf16.mxu0 0
    %784 = vmatpush2.bf16.msra.mxu0 0
    %785 = vmatprep.subr.bf16.mxu0 0
    %786 = vmatpush2.bf16.msra.mxu0 0
    %787 = vmatprep.subr.bf16.mxu0 0
    %788 = vmatpush2.bf16.msra.mxu0 0
    %789 = vmatprep.mubr.bf16.mxu0 0
    %790 = vmatmul.mubr.bf16.gmra.mxu0 %v752
    %v791 = vpop.f32.mrf.mxu0
    %v792 = vadd.f32 0.0, %v791
    %v793 = vpop.f32.mrf.mxu0
    %v794 = vpop.f32.mrf.mxu0
    %v795 = vpop.f32.mrf.mxu0
    %796 = vdwg.mxu0
    %v798 = vsel %vm454, %v690, 0
    %v801 = vsel %vm707, %v698, 0
    %803 = vmatprep.subr.bf16.mxu0 0
    %804 = vmatpush1.bf16.msra.mxu0 0
    %805 = vmatprep.subr.bf16.mxu0 0
    %806 = vmatpush1.bf16.msra.mxu0 0
    %807 = vmatprep.subr.bf16.mxu0 0
    %808 = vmatpush1.bf16.msra.mxu0 0
    %809 = vmatprep.subr.bf16.mxu0 0
    %810 = vmatpush1.bf16.msra.mxu0 0
    %811 = vmatprep.subr.bf16.mxu0 0
    %812 = vmatpush1.bf16.msra.mxu0 0
    %813 = vmatprep.subr.bf16.mxu0 0
    %814 = vmatpush1.bf16.msra.mxu0 0
    %815 = vmatprep.subr.bf16.mxu0 0
    %816 = vmatpush1.bf16.msra.mxu0 0
    %817 = vmatprep.subr.bf16.mxu0 0
    %818 = vmatpush1.bf16.msra.mxu0 %v801
    %819 = vmatprep.subr.bf16.mxu0 0
    %820 = vmatpush2.bf16.msra.mxu0 0
    %821 = vmatprep.subr.bf16.mxu0 0
    %822 = vmatpush2.bf16.msra.mxu0 0
    %823 = vmatprep.subr.bf16.mxu0 0
    %824 = vmatpush2.bf16.msra.mxu0 0
    %825 = vmatprep.subr.bf16.mxu0 0
    %826 = vmatpush2.bf16.msra.mxu0 0
    %827 = vmatprep.subr.bf16.mxu0 0
    %828 = vmatpush2.bf16.msra.mxu0 0
    %829 = vmatprep.subr.bf16.mxu0 0
    %830 = vmatpush2.bf16.msra.mxu0 0
    %831 = vmatprep.subr.bf16.mxu0 0
    %832 = vmatpush2.bf16.msra.mxu0 0
    %833 = vmatprep.subr.bf16.mxu0 0
    %834 = vmatpush2.bf16.msra.mxu0 0
    %835 = vmatprep.mubr.bf16.mxu0 0
    %836 = vmatmul.mubr.bf16.gmra.mxu0 %v798
    %v837 = vpop.f32.mrf.mxu0
    %v838 = vadd.f32 0.0, %v837
    %v839 = vpop.f32.mrf.mxu0
    %v840 = vpop.f32.mrf.mxu0
    %v841 = vpop.f32.mrf.mxu0
    %842 = vdwg.mxu0
    %v844 = vsel %vm454, %v691, 0
    %v847 = vsel %vm707, %v699, 0
    %849 = vmatprep.subr.bf16.mxu0 0
    %850 = vmatpush1.bf16.msra.mxu0 0
    %851 = vmatprep.subr.bf16.mxu0 0
    %852 = vmatpush1.bf16.msra.mxu0 0
    %853 = vmatprep.subr.bf16.mxu0 0
    %854 = vmatpush1.bf16.msra.mxu0 0
    %855 = vmatprep.subr.bf16.mxu0 0
    %856 = vmatpush1.bf16.msra.mxu0 0
    %857 = vmatprep.subr.bf16.mxu0 0
    %858 = vmatpush1.bf16.msra.mxu0 0
    %859 = vmatprep.subr.bf16.mxu0 0
    %860 = vmatpush1.bf16.msra.mxu0 0
    %861 = vmatprep.subr.bf16.mxu0 0
    %862 = vmatpush1.bf16.msra.mxu0 0
    %863 = vmatprep.subr.bf16.mxu0 0
    %864 = vmatpush1.bf16.msra.mxu0 %v847
    %865 = vmatprep.subr.bf16.mxu0 0
    %866 = vmatpush2.bf16.msra.mxu0 0
    %867 = vmatprep.subr.bf16.mxu0 0
    %868 = vmatpush2.bf16.msra.mxu0 0
    %869 = vmatprep.subr.bf16.mxu0 0
    %870 = vmatpush2.bf16.msra.mxu0 0
    %871 = vmatprep.subr.bf16.mxu0 0
    %872 = vmatpush2.bf16.msra.mxu0 0
    %873 = vmatprep.subr.bf16.mxu0 0
    %874 = vmatpush2.bf16.msra.mxu0 0
    %875 = vmatprep.subr.bf16.mxu0 0
    %876 = vmatpush2.bf16.msra.mxu0 0
    %877 = vmatprep.subr.bf16.mxu0 0
    %878 = vmatpush2.bf16.msra.mxu0 0
    %879 = vmatprep.subr.bf16.mxu0 0
    %880 = vmatpush2.bf16.msra.mxu0 0
    %881 = vmatprep.mubr.bf16.mxu0 0
    %882 = vmatmul.mubr.bf16.gmra.mxu0 %v844
    %v883 = vpop.f32.mrf.mxu0
    %v884 = vadd.f32 0.0, %v883
    %v885 = vpop.f32.mrf.mxu0
    %v886 = vpop.f32.mrf.mxu0
    %v887 = vpop.f32.mrf.mxu0
    %888 = vdwg.mxu0
    %v890 = vsel %vm454, %v692, 0
    %v893 = vsel %vm707, %v700, 0
    %895 = vmatprep.subr.bf16.mxu0 0
    %896 = vmatpush1.bf16.msra.mxu0 0
    %897 = vmatprep.subr.bf16.mxu0 0
    %898 = vmatpush1.bf16.msra.mxu0 0
    %899 = vmatprep.subr.bf16.mxu0 0
    %900 = vmatpush1.bf16.msra.mxu0 0
    %901 = vmatprep.subr.bf16.mxu0 0
    %902 = vmatpush1.bf16.msra.mxu0 0
    %903 = vmatprep.subr.bf16.mxu0 0
    %904 = vmatpush1.bf16.msra.mxu0 0
    %905 = vmatprep.subr.bf16.mxu0 0
    %906 = vmatpush1.bf16.msra.mxu0 0
    %907 = vmatprep.subr.bf16.mxu0 0
    %908 = vmatpush1.bf16.msra.mxu0 0
    %909 = vmatprep.subr.bf16.mxu0 0
    %910 = vmatpush1.bf16.msra.mxu0 %v893
    %911 = vmatprep.subr.bf16.mxu0 0
    %912 = vmatpush2.bf16.msra.mxu0 0
    %913 = vmatprep.subr.bf16.mxu0 0
    %914 = vmatpush2.bf16.msra.mxu0 0
    %915 = vmatprep.subr.bf16.mxu0 0
    %916 = vmatpush2.bf16.msra.mxu0 0
    %917 = vmatprep.subr.bf16.mxu0 0
    %918 = vmatpush2.bf16.msra.mxu0 0
    %919 = vmatprep.subr.bf16.mxu0 0
    %920 = vmatpush2.bf16.msra.mxu0 0
    %921 = vmatprep.subr.bf16.mxu0 0
    %922 = vmatpush2.bf16.msra.mxu0 0
    %923 = vmatprep.subr.bf16.mxu0 0
    %924 = vmatpush2.bf16.msra.mxu0 0
    %925 = vmatprep.subr.bf16.mxu0 0
    %926 = vmatpush2.bf16.msra.mxu0 0
    %927 = vmatprep.mubr.bf16.mxu0 0
    %928 = vmatmul.mubr.bf16.gmra.mxu0 %v890
    %v929 = vpop.f32.mrf.mxu0
    %v930 = vadd.f32 0.0, %v929
    %v931 = vpop.f32.mrf.mxu0
    %v932 = vpop.f32.mrf.mxu0
    %v933 = vpop.f32.mrf.mxu0
    %934 = vdwg.mxu0
    %v936 = vsel %vm454, %v693, 0
    %v939 = vsel %vm707, %v701, 0
    %941 = vmatprep.subr.bf16.mxu0 0
    %942 = vmatpush1.bf16.msra.mxu0 0
    %943 = vmatprep.subr.bf16.mxu0 0
    %944 = vmatpush1.bf16.msra.mxu0 0
    %945 = vmatprep.subr.bf16.mxu0 0
    %946 = vmatpush1.bf16.msra.mxu0 0
    %947 = vmatprep.subr.bf16.mxu0 0
    %948 = vmatpush1.bf16.msra.mxu0 0
    %949 = vmatprep.subr.bf16.mxu0 0
    %950 = vmatpush1.bf16.msra.mxu0 0
    %951 = vmatprep.subr.bf16.mxu0 0
    %952 = vmatpush1.bf16.msra.mxu0 0
    %953 = vmatprep.subr.bf16.mxu0 0
    %954 = vmatpush1.bf16.msra.mxu0 0
    %955 = vmatprep.subr.bf16.mxu0 0
    %956 = vmatpush1.bf16.msra.mxu0 %v939
    %957 = vmatprep.subr.bf16.mxu0 0
    %958 = vmatpush2.bf16.msra.mxu0 0
    %959 = vmatprep.subr.bf16.mxu0 0
    %960 = vmatpush2.bf16.msra.mxu0 0
    %961 = vmatprep.subr.bf16.mxu0 0
    %962 = vmatpush2.bf16.msra.mxu0 0
    %963 = vmatprep.subr.bf16.mxu0 0
    %964 = vmatpush2.bf16.msra.mxu0 0
    %965 = vmatprep.subr.bf16.mxu0 0
    %966 = vmatpush2.bf16.msra.mxu0 0
    %967 = vmatprep.subr.bf16.mxu0 0
    %968 = vmatpush2.bf16.msra.mxu0 0
    %969 = vmatprep.subr.bf16.mxu0 0
    %970 = vmatpush2.bf16.msra.mxu0 0
    %971 = vmatprep.subr.bf16.mxu0 0
    %972 = vmatpush2.bf16.msra.mxu0 0
    %973 = vmatprep.mubr.bf16.mxu0 0
    %974 = vmatmul.mubr.bf16.gmra.mxu0 %v936
    %v975 = vpop.f32.mrf.mxu0
    %v976 = vadd.f32 0.0, %v975
    %v977 = vpop.f32.mrf.mxu0
    %v978 = vpop.f32.mrf.mxu0
    %v979 = vpop.f32.mrf.mxu0
    %980 = vdwg.mxu0
    %v982 = vsel %vm454, %v694, 0
    %v985 = vsel %vm707, %v702, 0
    %987 = vmatprep.subr.bf16.mxu0 0
    %988 = vmatpush1.bf16.msra.mxu0 0
    %989 = vmatprep.subr.bf16.mxu0 0
    %990 = vmatpush1.bf16.msra.mxu0 0
    %991 = vmatprep.subr.bf16.mxu0 0
    %992 = vmatpush1.bf16.msra.mxu0 0
    %993 = vmatprep.subr.bf16.mxu0 0
    %994 = vmatpush1.bf16.msra.mxu0 0
    %995 = vmatprep.subr.bf16.mxu0 0
    %996 = vmatpush1.bf16.msra.mxu0 0
    %997 = vmatprep.subr.bf16.mxu0 0
    %998 = vmatpush1.bf16.msra.mxu0 0
    %999 = vmatprep.subr.bf16.mxu0 0
    %1000 = vmatpush1.bf16.msra.mxu0 0
    %1001 = vmatprep.subr.bf16.mxu0 0
    %1002 = vmatpush1.bf16.msra.mxu0 %v985
    %1003 = vmatprep.subr.bf16.mxu0 0
    %1004 = vmatpush2.bf16.msra.mxu0 0
    %1005 = vmatprep.subr.bf16.mxu0 0
    %1006 = vmatpush2.bf16.msra.mxu0 0
    %1007 = vmatprep.subr.bf16.mxu0 0
    %1008 = vmatpush2.bf16.msra.mxu0 0
    %1009 = vmatprep.subr.bf16.mxu0 0
    %1010 = vmatpush2.bf16.msra.mxu0 0
    %1011 = vmatprep.subr.bf16.mxu0 0
    %1012 = vmatpush2.bf16.msra.mxu0 0
    %1013 = vmatprep.subr.bf16.mxu0 0
    %1014 = vmatpush2.bf16.msra.mxu0 0
    %1015 = vmatprep.subr.bf16.mxu0 0
    %1016 = vmatpush2.bf16.msra.mxu0 0
    %1017 = vmatprep.subr.bf16.mxu0 0
    %1018 = vmatpush2.bf16.msra.mxu0 0
    %1019 = vmatprep.mubr.bf16.mxu0 0
    %1020 = vmatmul.mubr.bf16.gmra.mxu0 %v982
    %v1021 = vpop.f32.mrf.mxu0
    %v1022 = vadd.f32 0.0, %v1021
    %v1023 = vpop.f32.mrf.mxu0
    %v1024 = vpop.f32.mrf.mxu0
    %v1025 = vpop.f32.mrf.mxu0
    %1026 = vdwg.mxu0
    %v1028 = vsel %vm454, %v695, 0
    %v1031 = vsel %vm707, %v703, 0
    %1033 = vmatprep.subr.bf16.mxu0 0
    %1034 = vmatpush1.bf16.msra.mxu0 0
    %1035 = vmatprep.subr.bf16.mxu0 0
    %1036 = vmatpush1.bf16.msra.mxu0 0
    %1037 = vmatprep.subr.bf16.mxu0 0
    %1038 = vmatpush1.bf16.msra.mxu0 0
    %1039 = vmatprep.subr.bf16.mxu0 0
    %1040 = vmatpush1.bf16.msra.mxu0 0
    %1041 = vmatprep.subr.bf16.mxu0 0
    %1042 = vmatpush1.bf16.msra.mxu0 0
    %1043 = vmatprep.subr.bf16.mxu0 0
    %1044 = vmatpush1.bf16.msra.mxu0 0
    %1045 = vmatprep.subr.bf16.mxu0 0
    %1046 = vmatpush1.bf16.msra.mxu0 0
    %1047 = vmatprep.subr.bf16.mxu0 0
    %1048 = vmatpush1.bf16.msra.mxu0 %v1031
    %1049 = vmatprep.subr.bf16.mxu0 0
    %1050 = vmatpush2.bf16.msra.mxu0 0
    %1051 = vmatprep.subr.bf16.mxu0 0
    %1052 = vmatpush2.bf16.msra.mxu0 0
    %1053 = vmatprep.subr.bf16.mxu0 0
    %1054 = vmatpush2.bf16.msra.mxu0 0
    %1055 = vmatprep.subr.bf16.mxu0 0
    %1056 = vmatpush2.bf16.msra.mxu0 0
    %1057 = vmatprep.subr.bf16.mxu0 0
    %1058 = vmatpush2.bf16.msra.mxu0 0
    %1059 = vmatprep.subr.bf16.mxu0 0
    %1060 = vmatpush2.bf16.msra.mxu0 0
    %1061 = vmatprep.subr.bf16.mxu0 0
    %1062 = vmatpush2.bf16.msra.mxu0 0
    %1063 = vmatprep.subr.bf16.mxu0 0
    %1064 = vmatpush2.bf16.msra.mxu0 0
    %1065 = vmatprep.mubr.bf16.mxu0 0
    %1066 = vmatmul.mubr.bf16.gmra.mxu0 %v1028
    %v1067 = vpop.f32.mrf.mxu0
    %v1068 = vadd.f32 0.0, %v1067
    %v1069 = vpop.f32.mrf.mxu0
    %v1070 = vpop.f32.mrf.mxu0
    %v1071 = vpop.f32.mrf.mxu0
    %1072 = vdwg.mxu0
    %v1073 = vadd.f32 %v680, %v746
    %v1074 = vadd.f32 %v681, %v792
    %v1075 = vadd.f32 %v682, %v838
    %v1076 = vadd.f32 %v683, %v884
    %v1077 = vadd.f32 %v684, %v930
    %v1078 = vadd.f32 %v685, %v976
    %v1079 = vadd.f32 %v686, %v1022
    %v1080 = vadd.f32 %v687, %v1068
    %1081 = vst.msk [vmem:[#allocation4] sm:$0xff] %vm69, %v1073
    %1082 = vst.msk [vmem:[#allocation4 + $0x8] sm:$0xff] %vm69, %v1074
    %1083 = vst.msk [vmem:[#allocation4 + $0x10] sm:$0xff] %vm69, %v1075
    %1084 = vst.msk [vmem:[#allocation4 + $0x18] sm:$0xff] %vm69, %v1076
    %1085 = vst.msk [vmem:[#allocation4 + $0x20] sm:$0xff] %vm69, %v1077
    %1086 = vst.msk [vmem:[#allocation4 + $0x28] sm:$0xff] %vm69, %v1078
    %1087 = vst.msk [vmem:[#allocation4 + $0x30] sm:$0xff] %vm69, %v1079
    %1088 = vst.msk [vmem:[#allocation4 + $0x38] sm:$0xff] %vm69, %v1080
    %1089 = vst.msk [vmem:[#allocation2] sm:$0xff] %vm623, %v479
    %1090 = vst.msk [vmem:[#allocation2 + $0x8] sm:$0xff] %vm623, %v480
    %1091 = vst.msk [vmem:[#allocation2 + $0x10] sm:$0xff] %vm623, %v481
    %1092 = vst.msk [vmem:[#allocation2 + $0x18] sm:$0xff] %vm623, %v482
    %1093 = vst.msk [vmem:[#allocation2 + $0x20] sm:$0xff] %vm623, %v483
    %1094 = vst.msk [vmem:[#allocation2 + $0x28] sm:$0xff] %vm623, %v484
    %1095 = vst.msk [vmem:[#allocation2 + $0x30] sm:$0xff] %vm623, %v485
    %1096 = vst.msk [vmem:[#allocation2 + $0x38] sm:$0xff] %vm623, %v486
  $region21: #{gpt_forward.12} parent=0 // pred_fallthru
    _
  %p1097 = scmp.gt.s32.totalorder %s48, %s45
  %p1098 = scmp.le.s32.totalorder %s46, %s47
  %p1099 = pnand %p1097, %p1098
  %p1100 = pneg %p1099
  // Predicated region
  $region22: #{gpt_forward.12} parent=0 // pred_check
    _
  $region23: #{gpt_forward.12} parent=0 // pred_check_branch
    %1102 = sbr.rel (%p1099) target = $region25
  $region24: #{gpt_forward.12} parent=0 // pred_region
    %v1103 = vld [vmem:[%s0] sm:$0xf]
    %v1104 = vld [vmem:[%s0 + $0x4] sm:$0xf]
    %v1105 = vld [vmem:[%s0 + $0x8] sm:$0xf]
    %v1106 = vld [vmem:[%s0 + $0xc] sm:$0xf]
    %v1107 = vld [vmem:[%s0 + $0x10] sm:$0xf]
    %v1108 = vld [vmem:[%s0 + $0x14] sm:$0xf]
    %v1109 = vld [vmem:[%s0 + $0x18] sm:$0xf]
    %v1110 = vld [vmem:[%s0 + $0x1c] sm:$0xf]
    %v1111 = vld [vmem:[%s1] sm:$0xf]
    %v1112 = vld [vmem:[%s1 + $0x4] sm:$0xf]
    %v1113 = vld [vmem:[%s1 + $0x8] sm:$0xf]
    %v1114 = vld [vmem:[%s1 + $0xc] sm:$0xf]
    %v1115 = vld [vmem:[%s1 + $0x10] sm:$0xf]
    %v1116 = vld [vmem:[%s1 + $0x14] sm:$0xf]
    %v1117 = vld [vmem:[%s1 + $0x18] sm:$0xf]
    %v1118 = vld [vmem:[%s1 + $0x1c] sm:$0xf]
    %vm1119 = vcmask 130048
    %v1121 = vsel %vm1119, %v1103, 0
    %v1124 = vsel %vm1119, %v1111, 0
    %1126 = vmatprep.subr.bf16.mxu0 0
    %1127 = vmatpush1.bf16.xpose.msra.mxu0 0
    %1128 = vmatprep.subr.bf16.mxu0 0
    %1129 = vmatpush1.bf16.xpose.msra.mxu0 0
    %1130 = vmatprep.subr.bf16.mxu0 0
    %1131 = vmatpush1.bf16.xpose.msra.mxu0 0
    %1132 = vmatprep.subr.bf16.mxu0 0
    %1133 = vmatpush1.bf16.xpose.msra.mxu0 0
    %1134 = vmatprep.subr.bf16.mxu0 0
    %1135 = vmatpush1.bf16.xpose.msra.mxu0 0
    %1136 = vmatprep.subr.bf16.mxu0 0
    %1137 = vmatpush1.bf16.xpose.msra.mxu0 0
    %1138 = vmatprep.subr.bf16.mxu0 0
    %1139 = vmatpush1.bf16.xpose.msra.mxu0 0
    %1140 = vmatprep.subr.bf16.mxu0 0
    %1141 = vmatpush1.bf16.xpose.msra.mxu0 %v1124
    %1142 = vmatprep.subr.bf16.mxu0 0
    %1143 = vmatpush2.bf16.xpose.msra.mxu0 0
    %1144 = vmatprep.subr.bf16.mxu0 0
    %1145 = vmatpush2.bf16.xpose.msra.mxu0 0
    %1146 = vmatprep.subr.bf16.mxu0 0
    %1147 = vmatpush2.bf16.xpose.msra.mxu0 0
    %1148 = vmatprep.subr.bf16.mxu0 0
    %1149 = vmatpush2.bf16.xpose.msra.mxu0 0
    %1150 = vmatprep.subr.bf16.mxu0 0
    %1151 = vmatpush2.bf16.xpose.msra.mxu0 0
    %1152 = vmatprep.subr.bf16.mxu0 0
    %1153 = vmatpush2.bf16.xpose.msra.mxu0 0
    %1154 = vmatprep.subr.bf16.mxu0 0
    %1155 = vmatpush2.bf16.xpose.msra.mxu0 0
    %1156 = vmatprep.subr.bf16.mxu0 0
    %1157 = vmatpush2.bf16.xpose.msra.mxu0 0
    %1158 = vmatprep.mubr.bf16.mxu0 0
    %1159 = vmatmul.mubr.bf16.gmra.mxu0 %v1121
    %v1160 = vpop.f32.mrf.mxu0
    %v1161 = vadd.f32 0.0, %v1160
    %v1162 = vpop.f32.mrf.mxu0
    %v1163 = vpop.f32.mrf.mxu0
    %v1164 = vpop.f32.mrf.mxu0
    %1165 = vdwg.mxu0
    %v1167 = vsel %vm1119, %v1104, 0
    %v1170 = vsel %vm1119, %v1112, 0
    %1172 = vmatprep.subr.bf16.mxu0 0
    %1173 = vmatpush1.bf16.xpose.msra.mxu0 0
    %1174 = vmatprep.subr.bf16.mxu0 0
    %1175 = vmatpush1.bf16.xpose.msra.mxu0 0
    %1176 = vmatprep.subr.bf16.mxu0 0
    %1177 = vmatpush1.bf16.xpose.msra.mxu0 0
    %1178 = vmatprep.subr.bf16.mxu0 0
    %1179 = vmatpush1.bf16.xpose.msra.mxu0 0
    %1180 = vmatprep.subr.bf16.mxu0 0
    %1181 = vmatpush1.bf16.xpose.msra.mxu0 0
    %1182 = vmatprep.subr.bf16.mxu0 0
    %1183 = vmatpush1.bf16.xpose.msra.mxu0 0
    %1184 = vmatprep.subr.bf16.mxu0 0
    %1185 = vmatpush1.bf16.xpose.msra.mxu0 0
    %1186 = vmatprep.subr.bf16.mxu0 0
    %1187 = vmatpush1.bf16.xpose.msra.mxu0 %v1170
    %1188 = vmatprep.subr.bf16.mxu0 0
    %1189 = vmatpush2.bf16.xpose.msra.mxu0 0
    %1190 = vmatprep.subr.bf16.mxu0 0
    %1191 = vmatpush2.bf16.xpose.msra.mxu0 0
    %1192 = vmatprep.subr.bf16.mxu0 0
    %1193 = vmatpush2.bf16.xpose.msra.mxu0 0
    %1194 = vmatprep.subr.bf16.mxu0 0
    %1195 = vmatpush2.bf16.xpose.msra.mxu0 0
    %1196 = vmatprep.subr.bf16.mxu0 0
    %1197 = vmatpush2.bf16.xpose.msra.mxu0 0
    %1198 = vmatprep.subr.bf16.mxu0 0
    %1199 = vmatpush2.bf16.xpose.msra.mxu0 0
    %1200 = vmatprep.subr.bf16.mxu0 0
    %1201 = vmatpush2.bf16.xpose.msra.mxu0 0
    %1202 = vmatprep.subr.bf16.mxu0 0
    %1203 = vmatpush2.bf16.xpose.msra.mxu0 0
    %1204 = vmatprep.mubr.bf16.mxu0 0
    %1205 = vmatmul.mubr.bf16.gmra.mxu0 %v1167
    %v1206 = vpop.f32.mrf.mxu0
    %v1207 = vadd.f32 0.0, %v1206
    %v1208 = vpop.f32.mrf.mxu0
    %v1209 = vpop.f32.mrf.mxu0
    %v1210 = vpop.f32.mrf.mxu0
    %1211 = vdwg.mxu0
    %v1213 = vsel %vm1119, %v1105, 0
    %v1216 = vsel %vm1119, %v1113, 0
    %1218 = vmatprep.subr.bf16.mxu0 0
    %1219 = vmatpush1.bf16.xpose.msra.mxu0 0
    %1220 = vmatprep.subr.bf16.mxu0 0
    %1221 = vmatpush1.bf16.xpose.msra.mxu0 0
    %1222 = vmatprep.subr.bf16.mxu0 0
    %1223 = vmatpush1.bf16.xpose.msra.mxu0 0
    %1224 = vmatprep.subr.bf16.mxu0 0
    %1225 = vmatpush1.bf16.xpose.msra.mxu0 0
    %1226 = vmatprep.subr.bf16.mxu0 0
    %1227 = vmatpush1.bf16.xpose.msra.mxu0 0
    %1228 = vmatprep.subr.bf16.mxu0 0
    %1229 = vmatpush1.bf16.xpose.msra.mxu0 0
    %1230 = vmatprep.subr.bf16.mxu0 0
    %1231 = vmatpush1.bf16.xpose.msra.mxu0 0
    %1232 = vmatprep.subr.bf16.mxu0 0
    %1233 = vmatpush1.bf16.xpose.msra.mxu0 %v1216
    %1234 = vmatprep.subr.bf16.mxu0 0
    %1235 = vmatpush2.bf16.xpose.msra.mxu0 0
    %1236 = vmatprep.subr.bf16.mxu0 0
    %1237 = vmatpush2.bf16.xpose.msra.mxu0 0
    %1238 = vmatprep.subr.bf16.mxu0 0
    %1239 = vmatpush2.bf16.xpose.msra.mxu0 0
    %1240 = vmatprep.subr.bf16.mxu0 0
    %1241 = vmatpush2.bf16.xpose.msra.mxu0 0
    %1242 = vmatprep.subr.bf16.mxu0 0
    %1243 = vmatpush2.bf16.xpose.msra.mxu0 0
    %1244 = vmatprep.subr.bf16.mxu0 0
    %1245 = vmatpush2.bf16.xpose.msra.mxu0 0
    %1246 = vmatprep.subr.bf16.mxu0 0
    %1247 = vmatpush2.bf16.xpose.msra.mxu0 0
    %1248 = vmatprep.subr.bf16.mxu0 0
    %1249 = vmatpush2.bf16.xpose.msra.mxu0 0
    %1250 = vmatprep.mubr.bf16.mxu0 0
    %1251 = vmatmul.mubr.bf16.gmra.mxu0 %v1213
    %v1252 = vpop.f32.mrf.mxu0
    %v1253 = vadd.f32 0.0, %v1252
    %v1254 = vpop.f32.mrf.mxu0
    %v1255 = vpop.f32.mrf.mxu0
    %v1256 = vpop.f32.mrf.mxu0
    %1257 = vdwg.mxu0
    %v1259 = vsel %vm1119, %v1106, 0
    %v1262 = vsel %vm1119, %v1114, 0
    %1264 = vmatprep.subr.bf16.mxu0 0
    %1265 = vmatpush1.bf16.xpose.msra.mxu0 0
    %1266 = vmatprep.subr.bf16.mxu0 0
    %1267 = vmatpush1.bf16.xpose.msra.mxu0 0
    %1268 = vmatprep.subr.bf16.mxu0 0
    %1269 = vmatpush1.bf16.xpose.msra.mxu0 0
    %1270 = vmatprep.subr.bf16.mxu0 0
    %1271 = vmatpush1.bf16.xpose.msra.mxu0 0
    %1272 = vmatprep.subr.bf16.mxu0 0
    %1273 = vmatpush1.bf16.xpose.msra.mxu0 0
    %1274 = vmatprep.subr.bf16.mxu0 0
    %1275 = vmatpush1.bf16.xpose.msra.mxu0 0
    %1276 = vmatprep.subr.bf16.mxu0 0
    %1277 = vmatpush1.bf16.xpose.msra.mxu0 0
    %1278 = vmatprep.subr.bf16.mxu0 0
    %1279 = vmatpush1.bf16.xpose.msra.mxu0 %v1262
    %1280 = vmatprep.subr.bf16.mxu0 0
    %1281 = vmatpush2.bf16.xpose.msra.mxu0 0
    %1282 = vmatprep.subr.bf16.mxu0 0
    %1283 = vmatpush2.bf16.xpose.msra.mxu0 0
    %1284 = vmatprep.subr.bf16.mxu0 0
    %1285 = vmatpush2.bf16.xpose.msra.mxu0 0
    %1286 = vmatprep.subr.bf16.mxu0 0
    %1287 = vmatpush2.bf16.xpose.msra.mxu0 0
    %1288 = vmatprep.subr.bf16.mxu0 0
    %1289 = vmatpush2.bf16.xpose.msra.mxu0 0
    %1290 = vmatprep.subr.bf16.mxu0 0
    %1291 = vmatpush2.bf16.xpose.msra.mxu0 0
    %1292 = vmatprep.subr.bf16.mxu0 0
    %1293 = vmatpush2.bf16.xpose.msra.mxu0 0
    %1294 = vmatprep.subr.bf16.mxu0 0
    %1295 = vmatpush2.bf16.xpose.msra.mxu0 0
    %1296 = vmatprep.mubr.bf16.mxu0 0
    %1297 = vmatmul.mubr.bf16.gmra.mxu0 %v1259
    %v1298 = vpop.f32.mrf.mxu0
    %v1299 = vadd.f32 0.0, %v1298
    %v1300 = vpop.f32.mrf.mxu0
    %v1301 = vpop.f32.mrf.mxu0
    %v1302 = vpop.f32.mrf.mxu0
    %1303 = vdwg.mxu0
    %v1305 = vsel %vm1119, %v1107, 0
    %v1308 = vsel %vm1119, %v1115, 0
    %1310 = vmatprep.subr.bf16.mxu0 0
    %1311 = vmatpush1.bf16.xpose.msra.mxu0 0
    %1312 = vmatprep.subr.bf16.mxu0 0
    %1313 = vmatpush1.bf16.xpose.msra.mxu0 0
    %1314 = vmatprep.subr.bf16.mxu0 0
    %1315 = vmatpush1.bf16.xpose.msra.mxu0 0
    %1316 = vmatprep.subr.bf16.mxu0 0
    %1317 = vmatpush1.bf16.xpose.msra.mxu0 0
    %1318 = vmatprep.subr.bf16.mxu0 0
    %1319 = vmatpush1.bf16.xpose.msra.mxu0 0
    %1320 = vmatprep.subr.bf16.mxu0 0
    %1321 = vmatpush1.bf16.xpose.msra.mxu0 0
    %1322 = vmatprep.subr.bf16.mxu0 0
    %1323 = vmatpush1.bf16.xpose.msra.mxu0 0
    %1324 = vmatprep.subr.bf16.mxu0 0
    %1325 = vmatpush1.bf16.xpose.msra.mxu0 %v1308
    %1326 = vmatprep.subr.bf16.mxu0 0
    %1327 = vmatpush2.bf16.xpose.msra.mxu0 0
    %1328 = vmatprep.subr.bf16.mxu0 0
    %1329 = vmatpush2.bf16.xpose.msra.mxu0 0
    %1330 = vmatprep.subr.bf16.mxu0 0
    %1331 = vmatpush2.bf16.xpose.msra.mxu0 0
    %1332 = vmatprep.subr.bf16.mxu0 0
    %1333 = vmatpush2.bf16.xpose.msra.mxu0 0
    %1334 = vmatprep.subr.bf16.mxu0 0
    %1335 = vmatpush2.bf16.xpose.msra.mxu0 0
    %1336 = vmatprep.subr.bf16.mxu0 0
    %1337 = vmatpush2.bf16.xpose.msra.mxu0 0
    %1338 = vmatprep.subr.bf16.mxu0 0
    %1339 = vmatpush2.bf16.xpose.msra.mxu0 0
    %1340 = vmatprep.subr.bf16.mxu0 0
    %1341 = vmatpush2.bf16.xpose.msra.mxu0 0
    %1342 = vmatprep.mubr.bf16.mxu0 0
    %1343 = vmatmul.mubr.bf16.gmra.mxu0 %v1305
    %v1344 = vpop.f32.mrf.mxu0
    %v1345 = vadd.f32 0.0, %v1344
    %v1346 = vpop.f32.mrf.mxu0
    %v1347 = vpop.f32.mrf.mxu0
    %v1348 = vpop.f32.mrf.mxu0
    %1349 = vdwg.mxu0
    %v1351 = vsel %vm1119, %v1108, 0
    %v1354 = vsel %vm1119, %v1116, 0
    %1356 = vmatprep.subr.bf16.mxu0 0
    %1357 = vmatpush1.bf16.xpose.msra.mxu0 0
    %1358 = vmatprep.subr.bf16.mxu0 0
    %1359 = vmatpush1.bf16.xpose.msra.mxu0 0
    %1360 = vmatprep.subr.bf16.mxu0 0
    %1361 = vmatpush1.bf16.xpose.msra.mxu0 0
    %1362 = vmatprep.subr.bf16.mxu0 0
    %1363 = vmatpush1.bf16.xpose.msra.mxu0 0
    %1364 = vmatprep.subr.bf16.mxu0 0
    %1365 = vmatpush1.bf16.xpose.msra.mxu0 0
    %1366 = vmatprep.subr.bf16.mxu0 0
    %1367 = vmatpush1.bf16.xpose.msra.mxu0 0
    %1368 = vmatprep.subr.bf16.mxu0 0
    %1369 = vmatpush1.bf16.xpose.msra.mxu0 0
    %1370 = vmatprep.subr.bf16.mxu0 0
    %1371 = vmatpush1.bf16.xpose.msra.mxu0 %v1354
    %1372 = vmatprep.subr.bf16.mxu0 0
    %1373 = vmatpush2.bf16.xpose.msra.mxu0 0
    %1374 = vmatprep.subr.bf16.mxu0 0
    %1375 = vmatpush2.bf16.xpose.msra.mxu0 0
    %1376 = vmatprep.subr.bf16.mxu0 0
    %1377 = vmatpush2.bf16.xpose.msra.mxu0 0
    %1378 = vmatprep.subr.bf16.mxu0 0
    %1379 = vmatpush2.bf16.xpose.msra.mxu0 0
    %1380 = vmatprep.subr.bf16.mxu0 0
    %1381 = vmatpush2.bf16.xpose.msra.mxu0 0
    %1382 = vmatprep.subr.bf16.mxu0 0
    %1383 = vmatpush2.bf16.xpose.msra.mxu0 0
    %1384 = vmatprep.subr.bf16.mxu0 0
    %1385 = vmatpush2.bf16.xpose.msra.mxu0 0
    %1386 = vmatprep.subr.bf16.mxu0 0
    %1387 = vmatpush2.bf16.xpose.msra.mxu0 0
    %1388 = vmatprep.mubr.bf16.mxu0 0
    %1389 = vmatmul.mubr.bf16.gmra.mxu0 %v1351
    %v1390 = vpop.f32.mrf.mxu0
    %v1391 = vadd.f32 0.0, %v1390
    %v1392 = vpop.f32.mrf.mxu0
    %v1393 = vpop.f32.mrf.mxu0
    %v1394 = vpop.f32.mrf.mxu0
    %1395 = vdwg.mxu0
    %v1397 = vsel %vm1119, %v1109, 0
    %v1400 = vsel %vm1119, %v1117, 0
    %1402 = vmatprep.subr.bf16.mxu0 0
    %1403 = vmatpush1.bf16.xpose.msra.mxu0 0
    %1404 = vmatprep.subr.bf16.mxu0 0
    %1405 = vmatpush1.bf16.xpose.msra.mxu0 0
    %1406 = vmatprep.subr.bf16.mxu0 0
    %1407 = vmatpush1.bf16.xpose.msra.mxu0 0
    %1408 = vmatprep.subr.bf16.mxu0 0
    %1409 = vmatpush1.bf16.xpose.msra.mxu0 0
    %1410 = vmatprep.subr.bf16.mxu0 0
    %1411 = vmatpush1.bf16.xpose.msra.mxu0 0
    %1412 = vmatprep.subr.bf16.mxu0 0
    %1413 = vmatpush1.bf16.xpose.msra.mxu0 0
    %1414 = vmatprep.subr.bf16.mxu0 0
    %1415 = vmatpush1.bf16.xpose.msra.mxu0 0
    %1416 = vmatprep.subr.bf16.mxu0 0
    %1417 = vmatpush1.bf16.xpose.msra.mxu0 %v1400
    %1418 = vmatprep.subr.bf16.mxu0 0
    %1419 = vmatpush2.bf16.xpose.msra.mxu0 0
    %1420 = vmatprep.subr.bf16.mxu0 0
    %1421 = vmatpush2.bf16.xpose.msra.mxu0 0
    %1422 = vmatprep.subr.bf16.mxu0 0
    %1423 = vmatpush2.bf16.xpose.msra.mxu0 0
    %1424 = vmatprep.subr.bf16.mxu0 0
    %1425 = vmatpush2.bf16.xpose.msra.mxu0 0
    %1426 = vmatprep.subr.bf16.mxu0 0
    %1427 = vmatpush2.bf16.xpose.msra.mxu0 0
    %1428 = vmatprep.subr.bf16.mxu0 0
    %1429 = vmatpush2.bf16.xpose.msra.mxu0 0
    %1430 = vmatprep.subr.bf16.mxu0 0
    %1431 = vmatpush2.bf16.xpose.msra.mxu0 0
    %1432 = vmatprep.subr.bf16.mxu0 0
    %1433 = vmatpush2.bf16.xpose.msra.mxu0 0
    %1434 = vmatprep.mubr.bf16.mxu0 0
    %1435 = vmatmul.mubr.bf16.gmra.mxu0 %v1397
    %v1436 = vpop.f32.mrf.mxu0
    %v1437 = vadd.f32 0.0, %v1436
    %v1438 = vpop.f32.mrf.mxu0
    %v1439 = vpop.f32.mrf.mxu0
    %v1440 = vpop.f32.mrf.mxu0
    %1441 = vdwg.mxu0
    %v1443 = vsel %vm1119, %v1110, 0
    %v1446 = vsel %vm1119, %v1118, 0
    %1448 = vmatprep.subr.bf16.mxu0 0
    %1449 = vmatpush1.bf16.xpose.msra.mxu0 0
    %1450 = vmatprep.subr.bf16.mxu0 0
    %1451 = vmatpush1.bf16.xpose.msra.mxu0 0
    %1452 = vmatprep.subr.bf16.mxu0 0
    %1453 = vmatpush1.bf16.xpose.msra.mxu0 0
    %1454 = vmatprep.subr.bf16.mxu0 0
    %1455 = vmatpush1.bf16.xpose.msra.mxu0 0
    %1456 = vmatprep.subr.bf16.mxu0 0
    %1457 = vmatpush1.bf16.xpose.msra.mxu0 0
    %1458 = vmatprep.subr.bf16.mxu0 0
    %1459 = vmatpush1.bf16.xpose.msra.mxu0 0
    %1460 = vmatprep.subr.bf16.mxu0 0
    %1461 = vmatpush1.bf16.xpose.msra.mxu0 0
    %1462 = vmatprep.subr.bf16.mxu0 0
    %1463 = vmatpush1.bf16.xpose.msra.mxu0 %v1446
    %1464 = vmatprep.subr.bf16.mxu0 0
    %1465 = vmatpush2.bf16.xpose.msra.mxu0 0
    %1466 = vmatprep.subr.bf16.mxu0 0
    %1467 = vmatpush2.bf16.xpose.msra.mxu0 0
    %1468 = vmatprep.subr.bf16.mxu0 0
    %1469 = vmatpush2.bf16.xpose.msra.mxu0 0
    %1470 = vmatprep.subr.bf16.mxu0 0
    %1471 = vmatpush2.bf16.xpose.msra.mxu0 0
    %1472 = vmatprep.subr.bf16.mxu0 0
    %1473 = vmatpush2.bf16.xpose.msra.mxu0 0
    %1474 = vmatprep.subr.bf16.mxu0 0
    %1475 = vmatpush2.bf16.xpose.msra.mxu0 0
    %1476 = vmatprep.subr.bf16.mxu0 0
    %1477 = vmatpush2.bf16.xpose.msra.mxu0 0
    %1478 = vmatprep.subr.bf16.mxu0 0
    %1479 = vmatpush2.bf16.xpose.msra.mxu0 0
    %1480 = vmatprep.mubr.bf16.mxu0 0
    %1481 = vmatmul.mubr.bf16.gmra.mxu0 %v1443
    %v1482 = vpop.f32.mrf.mxu0
    %v1483 = vadd.f32 0.0, %v1482
    %v1484 = vpop.f32.mrf.mxu0
    %v1485 = vpop.f32.mrf.mxu0
    %v1486 = vpop.f32.mrf.mxu0
    %1487 = vdwg.mxu0
    %v1488 = vmul.f32 %v1161, 0.25
    %v1489 = vmul.f32 %v1207, 0.25
    %v1490 = vmul.f32 %v1253, 0.25
    %v1491 = vmul.f32 %v1299, 0.25
    %v1492 = vmul.f32 %v1345, 0.25
    %v1493 = vmul.f32 %v1391, 0.25
    %v1494 = vmul.f32 %v1437, 0.25
    %v1495 = vmul.f32 %v1483, 0.25
    %v1496 = vlaneseq
    %v1497 = vshrl.u32 %v1496, 7
    %v1498 = vstv %s45
    %v1499 = vadd.s32 %v1498, %v1497
    %v1500 = vlaneseq
    %v1501 = vand.u32 %v1500, 127
    %v1502 = vstv %s46
    %v1503 = vadd.s32 %v1502, %v1501
    %vm1504 = vcmp.le.s32.totalorder %v1503, %v1499
    %v1505 = vsel %vm1504, 1, 0
    %vm1506 = vcmp.eq.s32.totalorder %v1505, 1
    %v1507 = vsel %vm1506, %v1488, -1e+30
    %v1508 = vsel %vm1506, %v1489, -1e+30
    %v1509 = vsel %vm1506, %v1490, -1e+30
    %v1510 = vsel %vm1506, %v1491, -1e+30
    %v1511 = vsel %vm1506, %v1492, -1e+30
    %v1512 = vsel %vm1506, %v1493, -1e+30
    %v1513 = vsel %vm1506, %v1494, -1e+30
    %v1514 = vsel %vm1506, %v1495, -1e+30
    %v1515 = vld [vmem:[#allocation2] sm:$0xff]
    %v1516 = vld [vmem:[#allocation2 + $0x8] sm:$0xff]
    %v1517 = vld [vmem:[#allocation2 + $0x10] sm:$0xff]
    %v1518 = vld [vmem:[#allocation2 + $0x18] sm:$0xff]
    %v1519 = vld [vmem:[#allocation2 + $0x20] sm:$0xff]
    %v1520 = vld [vmem:[#allocation2 + $0x28] sm:$0xff]
    %v1521 = vld [vmem:[#allocation2 + $0x30] sm:$0xff]
    %v1522 = vld [vmem:[#allocation2 + $0x38] sm:$0xff]
    %vm1523 = vcmask 64512
    %v1524 = vsel %vm1523, %v1507, -inf
    %1525 = vmax.xlane.f32.xlu0 %v1524
    %v1526 = vpop.xlane.xlu0 %1525
    %v1527 = vsel %vm1523, %v1508, -inf
    %1528 = vmax.xlane.f32.xlu0 %v1527
    %v1529 = vpop.xlane.xlu0 %1528
    %v1530 = vsel %vm1523, %v1509, -inf
    %1531 = vmax.xlane.f32.xlu0 %v1530
    %v1532 = vpop.xlane.xlu0 %1531
    %v1533 = vsel %vm1523, %v1510, -inf
    %1534 = vmax.xlane.f32.xlu0 %v1533
    %v1535 = vpop.xlane.xlu0 %1534
    %v1536 = vsel %vm1523, %v1511, -inf
    %1537 = vmax.xlane.f32.xlu0 %v1536
    %v1538 = vpop.xlane.xlu0 %1537
    %v1539 = vsel %vm1523, %v1512, -inf
    %1540 = vmax.xlane.f32.xlu0 %v1539
    %v1541 = vpop.xlane.xlu0 %1540
    %v1542 = vsel %vm1523, %v1513, -inf
    %1543 = vmax.xlane.f32.xlu0 %v1542
    %v1544 = vpop.xlane.xlu0 %1543
    %v1545 = vsel %vm1523, %v1514, -inf
    %1546 = vmax.xlane.f32.xlu0 %v1545
    %v1547 = vpop.xlane.xlu0 %1546
    %v1548 = vmax.f32 %v1515, %v1526
    %v1549 = vmax.f32 %v1516, %v1529
    %v1550 = vmax.f32 %v1517, %v1532
    %v1551 = vmax.f32 %v1518, %v1535
    %v1552 = vmax.f32 %v1519, %v1538
    %v1553 = vmax.f32 %v1520, %v1541
    %v1554 = vmax.f32 %v1521, %v1544
    %v1555 = vmax.f32 %v1522, %v1547
    %v1556 = vsub.f32 %v1515, %v1548
    %v1557 = vsub.f32 %v1516, %v1549
    %v1558 = vsub.f32 %v1517, %v1550
    %v1559 = vsub.f32 %v1518, %v1551
    %v1560 = vsub.f32 %v1519, %v1552
    %v1561 = vsub.f32 %v1520, %v1553
    %v1562 = vsub.f32 %v1521, %v1554
    %v1563 = vsub.f32 %v1522, %v1555
    %v1564 = vmul.f32 %v1556, 1.442695
    %v1565 = vpow.pop %v1564
    %v1566 = vmul.f32 %v1557, 1.442695
    %v1567 = vpow.pop %v1566
    %v1568 = vmul.f32 %v1558, 1.442695
    %v1569 = vpow.pop %v1568
    %v1570 = vmul.f32 %v1559, 1.442695
    %v1571 = vpow.pop %v1570
    %v1572 = vmul.f32 %v1560, 1.442695
    %v1573 = vpow.pop %v1572
    %v1574 = vmul.f32 %v1561, 1.442695
    %v1575 = vpow.pop %v1574
    %v1576 = vmul.f32 %v1562, 1.442695
    %v1577 = vpow.pop %v1576
    %v1578 = vmul.f32 %v1563, 1.442695
    %v1579 = vpow.pop %v1578
    %1581 = vset.pattern.permute.xlu0 0
    %1582 = vperm.xlu0 %1581, %v1548
    %v1583 = vpop.permute.xlu0 %1582
    %1586 = vset.pattern.permute.xlu0 0
    %1587 = vperm.xlu0 %1586, %v1549
    %v1588 = vpop.permute.xlu0 %1587
    %1591 = vset.pattern.permute.xlu0 0
    %1592 = vperm.xlu0 %1591, %v1550
    %v1593 = vpop.permute.xlu0 %1592
    %1596 = vset.pattern.permute.xlu0 0
    %1597 = vperm.xlu0 %1596, %v1551
    %v1598 = vpop.permute.xlu0 %1597
    %1601 = vset.pattern.permute.xlu0 0
    %1602 = vperm.xlu0 %1601, %v1552
    %v1603 = vpop.permute.xlu0 %1602
    %1606 = vset.pattern.permute.xlu0 0
    %1607 = vperm.xlu0 %1606, %v1553
    %v1608 = vpop.permute.xlu0 %1607
    %1611 = vset.pattern.permute.xlu0 0
    %1612 = vperm.xlu0 %1611, %v1554
    %v1613 = vpop.permute.xlu0 %1612
    %1616 = vset.pattern.permute.xlu0 0
    %1617 = vperm.xlu0 %1616, %v1555
    %v1618 = vpop.permute.xlu0 %1617
    %v1620 = vsub.f32 %v1507, %v1583
    %v1621 = vsub.f32 %v1508, %v1588
    %v1622 = vsub.f32 %v1509, %v1593
    %v1623 = vsub.f32 %v1510, %v1598
    %v1624 = vsub.f32 %v1511, %v1603
    %v1625 = vsub.f32 %v1512, %v1608
    %v1626 = vsub.f32 %v1513, %v1613
    %v1627 = vsub.f32 %v1514, %v1618
    %v1628 = vmul.f32 %v1620, 1.442695
    %v1629 = vpow.pop %v1628
    %v1630 = vmul.f32 %v1621, 1.442695
    %v1631 = vpow.pop %v1630
    %v1632 = vmul.f32 %v1622, 1.442695
    %v1633 = vpow.pop %v1632
    %v1634 = vmul.f32 %v1623, 1.442695
    %v1635 = vpow.pop %v1634
    %v1636 = vmul.f32 %v1624, 1.442695
    %v1637 = vpow.pop %v1636
    %v1638 = vmul.f32 %v1625, 1.442695
    %v1639 = vpow.pop %v1638
    %v1640 = vmul.f32 %v1626, 1.442695
    %v1641 = vpow.pop %v1640
    %v1642 = vmul.f32 %v1627, 1.442695
    %v1643 = vpow.pop %v1642
    %v1644 = vld [vmem:[#allocation3] sm:$0xff]
    %v1645 = vld [vmem:[#allocation3 + $0x8] sm:$0xff]
    %v1646 = vld [vmem:[#allocation3 + $0x10] sm:$0xff]
    %v1647 = vld [vmem:[#allocation3 + $0x18] sm:$0xff]
    %v1648 = vld [vmem:[#allocation3 + $0x20] sm:$0xff]
    %v1649 = vld [vmem:[#allocation3 + $0x28] sm:$0xff]
    %v1650 = vld [vmem:[#allocation3 + $0x30] sm:$0xff]
    %v1651 = vld [vmem:[#allocation3 + $0x38] sm:$0xff]
    %v1652 = vmul.f32 %v1565, %v1644
    %v1653 = vmul.f32 %v1567, %v1645
    %v1654 = vmul.f32 %v1569, %v1646
    %v1655 = vmul.f32 %v1571, %v1647
    %v1656 = vmul.f32 %v1573, %v1648
    %v1657 = vmul.f32 %v1575, %v1649
    %v1658 = vmul.f32 %v1577, %v1650
    %v1659 = vmul.f32 %v1579, %v1651
    %v1660 = vsel %vm1523, %v1629, 0.0
    %1661 = vadd.xlane.f32.xlu0 %v1660
    %v1662 = vpop.xlane.xlu0 %1661
    %v1663 = vsel %vm1523, %v1631, 0.0
    %1664 = vadd.xlane.f32.xlu0 %v1663
    %v1665 = vpop.xlane.xlu0 %1664
    %v1666 = vsel %vm1523, %v1633, 0.0
    %1667 = vadd.xlane.f32.xlu0 %v1666
    %v1668 = vpop.xlane.xlu0 %1667
    %v1669 = vsel %vm1523, %v1635, 0.0
    %1670 = vadd.xlane.f32.xlu0 %v1669
    %v1671 = vpop.xlane.xlu0 %1670
    %v1672 = vsel %vm1523, %v1637, 0.0
    %1673 = vadd.xlane.f32.xlu0 %v1672
    %v1674 = vpop.xlane.xlu0 %1673
    %v1675 = vsel %vm1523, %v1639, 0.0
    %1676 = vadd.xlane.f32.xlu0 %v1675
    %v1677 = vpop.xlane.xlu0 %1676
    %v1678 = vsel %vm1523, %v1641, 0.0
    %1679 = vadd.xlane.f32.xlu0 %v1678
    %v1680 = vpop.xlane.xlu0 %1679
    %v1681 = vsel %vm1523, %v1643, 0.0
    %1682 = vadd.xlane.f32.xlu0 %v1681
    %v1683 = vpop.xlane.xlu0 %1682
    %v1684 = vadd.f32 %v1652, %v1662
    %v1685 = vadd.f32 %v1653, %v1665
    %v1686 = vadd.f32 %v1654, %v1668
    %v1687 = vadd.f32 %v1655, %v1671
    %v1688 = vadd.f32 %v1656, %v1674
    %v1689 = vadd.f32 %v1657, %v1677
    %v1690 = vadd.f32 %v1658, %v1680
    %v1691 = vadd.f32 %v1659, %v1683
    %vm1692 = vcmask 7168
    %1693 = vst.msk [vmem:[#allocation3] sm:$0xff] %vm1692, %v1684
    %1694 = vst.msk [vmem:[#allocation3 + $0x8] sm:$0xff] %vm1692, %v1685
    %1695 = vst.msk [vmem:[#allocation3 + $0x10] sm:$0xff] %vm1692, %v1686
    %1696 = vst.msk [vmem:[#allocation3 + $0x18] sm:$0xff] %vm1692, %v1687
    %1697 = vst.msk [vmem:[#allocation3 + $0x20] sm:$0xff] %vm1692, %v1688
    %1698 = vst.msk [vmem:[#allocation3 + $0x28] sm:$0xff] %vm1692, %v1689
    %1699 = vst.msk [vmem:[#allocation3 + $0x30] sm:$0xff] %vm1692, %v1690
    %1700 = vst.msk [vmem:[#allocation3 + $0x38] sm:$0xff] %vm1692, %v1691
    %v1701 = vld [vmem:[#allocation4] sm:$0xff]
    %v1702 = vld [vmem:[#allocation4 + $0x8] sm:$0xff]
    %v1703 = vld [vmem:[#allocation4 + $0x10] sm:$0xff]
    %v1704 = vld [vmem:[#allocation4 + $0x18] sm:$0xff]
    %v1705 = vld [vmem:[#allocation4 + $0x20] sm:$0xff]
    %v1706 = vld [vmem:[#allocation4 + $0x28] sm:$0xff]
    %v1707 = vld [vmem:[#allocation4 + $0x30] sm:$0xff]
    %v1708 = vld [vmem:[#allocation4 + $0x38] sm:$0xff]
    %1710 = vset.pattern.permute.xlu0 0
    %1711 = vperm.xlu0 %1710, %v1565
    %v1712 = vpop.permute.xlu0 %1711
    %1715 = vset.pattern.permute.xlu0 0
    %1716 = vperm.xlu0 %1715, %v1567
    %v1717 = vpop.permute.xlu0 %1716
    %1720 = vset.pattern.permute.xlu0 0
    %1721 = vperm.xlu0 %1720, %v1569
    %v1722 = vpop.permute.xlu0 %1721
    %1725 = vset.pattern.permute.xlu0 0
    %1726 = vperm.xlu0 %1725, %v1571
    %v1727 = vpop.permute.xlu0 %1726
    %1730 = vset.pattern.permute.xlu0 0
    %1731 = vperm.xlu0 %1730, %v1573
    %v1732 = vpop.permute.xlu0 %1731
    %1735 = vset.pattern.permute.xlu0 0
    %1736 = vperm.xlu0 %1735, %v1575
    %v1737 = vpop.permute.xlu0 %1736
    %1740 = vset.pattern.permute.xlu0 0
    %1741 = vperm.xlu0 %1740, %v1577
    %v1742 = vpop.permute.xlu0 %1741
    %1745 = vset.pattern.permute.xlu0 0
    %1746 = vperm.xlu0 %1745, %v1579
    %v1747 = vpop.permute.xlu0 %1746
    %v1749 = vmul.f32 %v1712, %v1701
    %v1750 = vmul.f32 %v1717, %v1702
    %v1751 = vmul.f32 %v1722, %v1703
    %v1752 = vmul.f32 %v1727, %v1704
    %v1753 = vmul.f32 %v1732, %v1705
    %v1754 = vmul.f32 %v1737, %v1706
    %v1755 = vmul.f32 %v1742, %v1707
    %v1756 = vmul.f32 %v1747, %v1708
    %v1757 = vpack.c.bf16 %v1629, %v1629
    %v1758 = vpack.c.bf16 %v1631, %v1631
    %v1759 = vpack.c.bf16 %v1633, %v1633
    %v1760 = vpack.c.bf16 %v1635, %v1635
    %v1761 = vpack.c.bf16 %v1637, %v1637
    %v1762 = vpack.c.bf16 %v1639, %v1639
    %v1763 = vpack.c.bf16 %v1641, %v1641
    %v1764 = vpack.c.bf16 %v1643, %v1643
    %v1765 = vld [vmem:[%s2] sm:$0xf]
    %v1766 = vld [vmem:[%s2 + $0x4] sm:$0xf]
    %v1767 = vld [vmem:[%s2 + $0x8] sm:$0xf]
    %v1768 = vld [vmem:[%s2 + $0xc] sm:$0xf]
    %v1769 = vld [vmem:[%s2 + $0x10] sm:$0xf]
    %v1770 = vld [vmem:[%s2 + $0x14] sm:$0xf]
    %v1771 = vld [vmem:[%s2 + $0x18] sm:$0xf]
    %v1772 = vld [vmem:[%s2 + $0x1c] sm:$0xf]
    %v1774 = vsel %vm1523, %v1757, 0
    %vm1776 = vcmask 1043456
    %v1778 = vsel %vm1776, %v1765, 0
    %1780 = vmatprep.subr.bf16.mxu0 0
    %1781 = vmatpush1.bf16.msra.mxu0 0
    %1782 = vmatprep.subr.bf16.mxu0 0
    %1783 = vmatpush1.bf16.msra.mxu0 0
    %1784 = vmatprep.subr.bf16.mxu0 0
    %1785 = vmatpush1.bf16.msra.mxu0 0
    %1786 = vmatprep.subr.bf16.mxu0 0
    %1787 = vmatpush1.bf16.msra.mxu0 0
    %1788 = vmatprep.subr.bf16.mxu0 0
    %1789 = vmatpush1.bf16.msra.mxu0 0
    %1790 = vmatprep.subr.bf16.mxu0 0
    %1791 = vmatpush1.bf16.msra.mxu0 0
    %1792 = vmatprep.subr.bf16.mxu0 0
    %1793 = vmatpush1.bf16.msra.mxu0 0
    %1794 = vmatprep.subr.bf16.mxu0 0
    %1795 = vmatpush1.bf16.msra.mxu0 %v1778
    %1796 = vmatprep.subr.bf16.mxu0 0
    %1797 = vmatpush2.bf16.msra.mxu0 0
    %1798 = vmatprep.subr.bf16.mxu0 0
    %1799 = vmatpush2.bf16.msra.mxu0 0
    %1800 = vmatprep.subr.bf16.mxu0 0
    %1801 = vmatpush2.bf16.msra.mxu0 0
    %1802 = vmatprep.subr.bf16.mxu0 0
    %1803 = vmatpush2.bf16.msra.mxu0 0
    %1804 = vmatprep.subr.bf16.mxu0 0
    %1805 = vmatpush2.bf16.msra.mxu0 0
    %1806 = vmatprep.subr.bf16.mxu0 0
    %1807 = vmatpush2.bf16.msra.mxu0 0
    %1808 = vmatprep.subr.bf16.mxu0 0
    %1809 = vmatpush2.bf16.msra.mxu0 0
    %1810 = vmatprep.subr.bf16.mxu0 0
    %1811 = vmatpush2.bf16.msra.mxu0 0
    %1812 = vmatprep.mubr.bf16.mxu0 0
    %1813 = vmatmul.mubr.bf16.gmra.mxu0 %v1774
    %v1814 = vpop.f32.mrf.mxu0
    %v1815 = vadd.f32 0.0, %v1814
    %v1816 = vpop.f32.mrf.mxu0
    %v1817 = vpop.f32.mrf.mxu0
    %v1818 = vpop.f32.mrf.mxu0
    %1819 = vdwg.mxu0
    %v1821 = vsel %vm1523, %v1758, 0
    %v1824 = vsel %vm1776, %v1766, 0
    %1826 = vmatprep.subr.bf16.mxu0 0
    %1827 = vmatpush1.bf16.msra.mxu0 0
    %1828 = vmatprep.subr.bf16.mxu0 0
    %1829 = vmatpush1.bf16.msra.mxu0 0
    %1830 = vmatprep.subr.bf16.mxu0 0
    %1831 = vmatpush1.bf16.msra.mxu0 0
    %1832 = vmatprep.subr.bf16.mxu0 0
    %1833 = vmatpush1.bf16.msra.mxu0 0
    %1834 = vmatprep.subr.bf16.mxu0 0
    %1835 = vmatpush1.bf16.msra.mxu0 0
    %1836 = vmatprep.subr.bf16.mxu0 0
    %1837 = vmatpush1.bf16.msra.mxu0 0
    %1838 = vmatprep.subr.bf16.mxu0 0
    %1839 = vmatpush1.bf16.msra.mxu0 0
    %1840 = vmatprep.subr.bf16.mxu0 0
    %1841 = vmatpush1.bf16.msra.mxu0 %v1824
    %1842 = vmatprep.subr.bf16.mxu0 0
    %1843 = vmatpush2.bf16.msra.mxu0 0
    %1844 = vmatprep.subr.bf16.mxu0 0
    %1845 = vmatpush2.bf16.msra.mxu0 0
    %1846 = vmatprep.subr.bf16.mxu0 0
    %1847 = vmatpush2.bf16.msra.mxu0 0
    %1848 = vmatprep.subr.bf16.mxu0 0
    %1849 = vmatpush2.bf16.msra.mxu0 0
    %1850 = vmatprep.subr.bf16.mxu0 0
    %1851 = vmatpush2.bf16.msra.mxu0 0
    %1852 = vmatprep.subr.bf16.mxu0 0
    %1853 = vmatpush2.bf16.msra.mxu0 0
    %1854 = vmatprep.subr.bf16.mxu0 0
    %1855 = vmatpush2.bf16.msra.mxu0 0
    %1856 = vmatprep.subr.bf16.mxu0 0
    %1857 = vmatpush2.bf16.msra.mxu0 0
    %1858 = vmatprep.mubr.bf16.mxu0 0
    %1859 = vmatmul.mubr.bf16.gmra.mxu0 %v1821
    %v1860 = vpop.f32.mrf.mxu0
    %v1861 = vadd.f32 0.0, %v1860
    %v1862 = vpop.f32.mrf.mxu0
    %v1863 = vpop.f32.mrf.mxu0
    %v1864 = vpop.f32.mrf.mxu0
    %1865 = vdwg.mxu0
    %v1867 = vsel %vm1523, %v1759, 0
    %v1870 = vsel %vm1776, %v1767, 0
    %1872 = vmatprep.subr.bf16.mxu0 0
    %1873 = vmatpush1.bf16.msra.mxu0 0
    %1874 = vmatprep.subr.bf16.mxu0 0
    %1875 = vmatpush1.bf16.msra.mxu0 0
    %1876 = vmatprep.subr.bf16.mxu0 0
    %1877 = vmatpush1.bf16.msra.mxu0 0
    %1878 = vmatprep.subr.bf16.mxu0 0
    %1879 = vmatpush1.bf16.msra.mxu0 0
    %1880 = vmatprep.subr.bf16.mxu0 0
    %1881 = vmatpush1.bf16.msra.mxu0 0
    %1882 = vmatprep.subr.bf16.mxu0 0
    %1883 = vmatpush1.bf16.msra.mxu0 0
    %1884 = vmatprep.subr.bf16.mxu0 0
    %1885 = vmatpush1.bf16.msra.mxu0 0
    %1886 = vmatprep.subr.bf16.mxu0 0
    %1887 = vmatpush1.bf16.msra.mxu0 %v1870
    %1888 = vmatprep.subr.bf16.mxu0 0
    %1889 = vmatpush2.bf16.msra.mxu0 0
    %1890 = vmatprep.subr.bf16.mxu0 0
    %1891 = vmatpush2.bf16.msra.mxu0 0
    %1892 = vmatprep.subr.bf16.mxu0 0
    %1893 = vmatpush2.bf16.msra.mxu0 0
    %1894 = vmatprep.subr.bf16.mxu0 0
    %1895 = vmatpush2.bf16.msra.mxu0 0
    %1896 = vmatprep.subr.bf16.mxu0 0
    %1897 = vmatpush2.bf16.msra.mxu0 0
    %1898 = vmatprep.subr.bf16.mxu0 0
    %1899 = vmatpush2.bf16.msra.mxu0 0
    %1900 = vmatprep.subr.bf16.mxu0 0
    %1901 = vmatpush2.bf16.msra.mxu0 0
    %1902 = vmatprep.subr.bf16.mxu0 0
    %1903 = vmatpush2.bf16.msra.mxu0 0
    %1904 = vmatprep.mubr.bf16.mxu0 0
    %1905 = vmatmul.mubr.bf16.gmra.mxu0 %v1867
    %v1906 = vpop.f32.mrf.mxu0
    %v1907 = vadd.f32 0.0, %v1906
    %v1908 = vpop.f32.mrf.mxu0
    %v1909 = vpop.f32.mrf.mxu0
    %v1910 = vpop.f32.mrf.mxu0
    %1911 = vdwg.mxu0
    %v1913 = vsel %vm1523, %v1760, 0
    %v1916 = vsel %vm1776, %v1768, 0
    %1918 = vmatprep.subr.bf16.mxu0 0
    %1919 = vmatpush1.bf16.msra.mxu0 0
    %1920 = vmatprep.subr.bf16.mxu0 0
    %1921 = vmatpush1.bf16.msra.mxu0 0
    %1922 = vmatprep.subr.bf16.mxu0 0
    %1923 = vmatpush1.bf16.msra.mxu0 0
    %1924 = vmatprep.subr.bf16.mxu0 0
    %1925 = vmatpush1.bf16.msra.mxu0 0
    %1926 = vmatprep.subr.bf16.mxu0 0
    %1927 = vmatpush1.bf16.msra.mxu0 0
    %1928 = vmatprep.subr.bf16.mxu0 0
    %1929 = vmatpush1.bf16.msra.mxu0 0
    %1930 = vmatprep.subr.bf16.mxu0 0
    %1931 = vmatpush1.bf16.msra.mxu0 0
    %1932 = vmatprep.subr.bf16.mxu0 0
    %1933 = vmatpush1.bf16.msra.mxu0 %v1916
    %1934 = vmatprep.subr.bf16.mxu0 0
    %1935 = vmatpush2.bf16.msra.mxu0 0
    %1936 = vmatprep.subr.bf16.mxu0 0
    %1937 = vmatpush2.bf16.msra.mxu0 0
    %1938 = vmatprep.subr.bf16.mxu0 0
    %1939 = vmatpush2.bf16.msra.mxu0 0
    %1940 = vmatprep.subr.bf16.mxu0 0
    %1941 = vmatpush2.bf16.msra.mxu0 0
    %1942 = vmatprep.subr.bf16.mxu0 0
    %1943 = vmatpush2.bf16.msra.mxu0 0
    %1944 = vmatprep.subr.bf16.mxu0 0
    %1945 = vmatpush2.bf16.msra.mxu0 0
    %1946 = vmatprep.subr.bf16.mxu0 0
    %1947 = vmatpush2.bf16.msra.mxu0 0
    %1948 = vmatprep.subr.bf16.mxu0 0
    %1949 = vmatpush2.bf16.msra.mxu0 0
    %1950 = vmatprep.mubr.bf16.mxu0 0
    %1951 = vmatmul.mubr.bf16.gmra.mxu0 %v1913
    %v1952 = vpop.f32.mrf.mxu0
    %v1953 = vadd.f32 0.0, %v1952
    %v1954 = vpop.f32.mrf.mxu0
    %v1955 = vpop.f32.mrf.mxu0
    %v1956 = vpop.f32.mrf.mxu0
    %1957 = vdwg.mxu0
    %v1959 = vsel %vm1523, %v1761, 0
    %v1962 = vsel %vm1776, %v1769, 0
    %1964 = vmatprep.subr.bf16.mxu0 0
    %1965 = vmatpush1.bf16.msra.mxu0 0
    %1966 = vmatprep.subr.bf16.mxu0 0
    %1967 = vmatpush1.bf16.msra.mxu0 0
    %1968 = vmatprep.subr.bf16.mxu0 0
    %1969 = vmatpush1.bf16.msra.mxu0 0
    %1970 = vmatprep.subr.bf16.mxu0 0
    %1971 = vmatpush1.bf16.msra.mxu0 0
    %1972 = vmatprep.subr.bf16.mxu0 0
    %1973 = vmatpush1.bf16.msra.mxu0 0
    %1974 = vmatprep.subr.bf16.mxu0 0
    %1975 = vmatpush1.bf16.msra.mxu0 0
    %1976 = vmatprep.subr.bf16.mxu0 0
    %1977 = vmatpush1.bf16.msra.mxu0 0
    %1978 = vmatprep.subr.bf16.mxu0 0
    %1979 = vmatpush1.bf16.msra.mxu0 %v1962
    %1980 = vmatprep.subr.bf16.mxu0 0
    %1981 = vmatpush2.bf16.msra.mxu0 0
    %1982 = vmatprep.subr.bf16.mxu0 0
    %1983 = vmatpush2.bf16.msra.mxu0 0
    %1984 = vmatprep.subr.bf16.mxu0 0
    %1985 = vmatpush2.bf16.msra.mxu0 0
    %1986 = vmatprep.subr.bf16.mxu0 0
    %1987 = vmatpush2.bf16.msra.mxu0 0
    %1988 = vmatprep.subr.bf16.mxu0 0
    %1989 = vmatpush2.bf16.msra.mxu0 0
    %1990 = vmatprep.subr.bf16.mxu0 0
    %1991 = vmatpush2.bf16.msra.mxu0 0
    %1992 = vmatprep.subr.bf16.mxu0 0
    %1993 = vmatpush2.bf16.msra.mxu0 0
    %1994 = vmatprep.subr.bf16.mxu0 0
    %1995 = vmatpush2.bf16.msra.mxu0 0
    %1996 = vmatprep.mubr.bf16.mxu0 0
    %1997 = vmatmul.mubr.bf16.gmra.mxu0 %v1959
    %v1998 = vpop.f32.mrf.mxu0
    %v1999 = vadd.f32 0.0, %v1998
    %v2000 = vpop.f32.mrf.mxu0
    %v2001 = vpop.f32.mrf.mxu0
    %v2002 = vpop.f32.mrf.mxu0
    %2003 = vdwg.mxu0
    %v2005 = vsel %vm1523, %v1762, 0
    %v2008 = vsel %vm1776, %v1770, 0
    %2010 = vmatprep.subr.bf16.mxu0 0
    %2011 = vmatpush1.bf16.msra.mxu0 0
    %2012 = vmatprep.subr.bf16.mxu0 0
    %2013 = vmatpush1.bf16.msra.mxu0 0
    %2014 = vmatprep.subr.bf16.mxu0 0
    %2015 = vmatpush1.bf16.msra.mxu0 0
    %2016 = vmatprep.subr.bf16.mxu0 0
    %2017 = vmatpush1.bf16.msra.mxu0 0
    %2018 = vmatprep.subr.bf16.mxu0 0
    %2019 = vmatpush1.bf16.msra.mxu0 0
    %2020 = vmatprep.subr.bf16.mxu0 0
    %2021 = vmatpush1.bf16.msra.mxu0 0
    %2022 = vmatprep.subr.bf16.mxu0 0
    %2023 = vmatpush1.bf16.msra.mxu0 0
    %2024 = vmatprep.subr.bf16.mxu0 0
    %2025 = vmatpush1.bf16.msra.mxu0 %v2008
    %2026 = vmatprep.subr.bf16.mxu0 0
    %2027 = vmatpush2.bf16.msra.mxu0 0
    %2028 = vmatprep.subr.bf16.mxu0 0
    %2029 = vmatpush2.bf16.msra.mxu0 0
    %2030 = vmatprep.subr.bf16.mxu0 0
    %2031 = vmatpush2.bf16.msra.mxu0 0
    %2032 = vmatprep.subr.bf16.mxu0 0
    %2033 = vmatpush2.bf16.msra.mxu0 0
    %2034 = vmatprep.subr.bf16.mxu0 0
    %2035 = vmatpush2.bf16.msra.mxu0 0
    %2036 = vmatprep.subr.bf16.mxu0 0
    %2037 = vmatpush2.bf16.msra.mxu0 0
    %2038 = vmatprep.subr.bf16.mxu0 0
    %2039 = vmatpush2.bf16.msra.mxu0 0
    %2040 = vmatprep.subr.bf16.mxu0 0
    %2041 = vmatpush2.bf16.msra.mxu0 0
    %2042 = vmatprep.mubr.bf16.mxu0 0
    %2043 = vmatmul.mubr.bf16.gmra.mxu0 %v2005
    %v2044 = vpop.f32.mrf.mxu0
    %v2045 = vadd.f32 0.0, %v2044
    %v2046 = vpop.f32.mrf.mxu0
    %v2047 = vpop.f32.mrf.mxu0
    %v2048 = vpop.f32.mrf.mxu0
    %2049 = vdwg.mxu0
    %v2051 = vsel %vm1523, %v1763, 0
    %v2054 = vsel %vm1776, %v1771, 0
    %2056 = vmatprep.subr.bf16.mxu0 0
    %2057 = vmatpush1.bf16.msra.mxu0 0
    %2058 = vmatprep.subr.bf16.mxu0 0
    %2059 = vmatpush1.bf16.msra.mxu0 0
    %2060 = vmatprep.subr.bf16.mxu0 0
    %2061 = vmatpush1.bf16.msra.mxu0 0
    %2062 = vmatprep.subr.bf16.mxu0 0
    %2063 = vmatpush1.bf16.msra.mxu0 0
    %2064 = vmatprep.subr.bf16.mxu0 0
    %2065 = vmatpush1.bf16.msra.mxu0 0
    %2066 = vmatprep.subr.bf16.mxu0 0
    %2067 = vmatpush1.bf16.msra.mxu0 0
    %2068 = vmatprep.subr.bf16.mxu0 0
    %2069 = vmatpush1.bf16.msra.mxu0 0
    %2070 = vmatprep.subr.bf16.mxu0 0
    %2071 = vmatpush1.bf16.msra.mxu0 %v2054
    %2072 = vmatprep.subr.bf16.mxu0 0
    %2073 = vmatpush2.bf16.msra.mxu0 0
    %2074 = vmatprep.subr.bf16.mxu0 0
    %2075 = vmatpush2.bf16.msra.mxu0 0
    %2076 = vmatprep.subr.bf16.mxu0 0
    %2077 = vmatpush2.bf16.msra.mxu0 0
    %2078 = vmatprep.subr.bf16.mxu0 0
    %2079 = vmatpush2.bf16.msra.mxu0 0
    %2080 = vmatprep.subr.bf16.mxu0 0
    %2081 = vmatpush2.bf16.msra.mxu0 0
    %2082 = vmatprep.subr.bf16.mxu0 0
    %2083 = vmatpush2.bf16.msra.mxu0 0
    %2084 = vmatprep.subr.bf16.mxu0 0
    %2085 = vmatpush2.bf16.msra.mxu0 0
    %2086 = vmatprep.subr.bf16.mxu0 0
    %2087 = vmatpush2.bf16.msra.mxu0 0
    %2088 = vmatprep.mubr.bf16.mxu0 0
    %2089 = vmatmul.mubr.bf16.gmra.mxu0 %v2051
    %v2090 = vpop.f32.mrf.mxu0
    %v2091 = vadd.f32 0.0, %v2090
    %v2092 = vpop.f32.mrf.mxu0
    %v2093 = vpop.f32.mrf.mxu0
    %v2094 = vpop.f32.mrf.mxu0
    %2095 = vdwg.mxu0
    %v2097 = vsel %vm1523, %v1764, 0
    %v2100 = vsel %vm1776, %v1772, 0
    %2102 = vmatprep.subr.bf16.mxu0 0
    %2103 = vmatpush1.bf16.msra.mxu0 0
    %2104 = vmatprep.subr.bf16.mxu0 0
    %2105 = vmatpush1.bf16.msra.mxu0 0
    %2106 = vmatprep.subr.bf16.mxu0 0
    %2107 = vmatpush1.bf16.msra.mxu0 0
    %2108 = vmatprep.subr.bf16.mxu0 0
    %2109 = vmatpush1.bf16.msra.mxu0 0
    %2110 = vmatprep.subr.bf16.mxu0 0
    %2111 = vmatpush1.bf16.msra.mxu0 0
    %2112 = vmatprep.subr.bf16.mxu0 0
    %2113 = vmatpush1.bf16.msra.mxu0 0
    %2114 = vmatprep.subr.bf16.mxu0 0
    %2115 = vmatpush1.bf16.msra.mxu0 0
    %2116 = vmatprep.subr.bf16.mxu0 0
    %2117 = vmatpush1.bf16.msra.mxu0 %v2100
    %2118 = vmatprep.subr.bf16.mxu0 0
    %2119 = vmatpush2.bf16.msra.mxu0 0
    %2120 = vmatprep.subr.bf16.mxu0 0
    %2121 = vmatpush2.bf16.msra.mxu0 0
    %2122 = vmatprep.subr.bf16.mxu0 0
    %2123 = vmatpush2.bf16.msra.mxu0 0
    %2124 = vmatprep.subr.bf16.mxu0 0
    %2125 = vmatpush2.bf16.msra.mxu0 0
    %2126 = vmatprep.subr.bf16.mxu0 0
    %2127 = vmatpush2.bf16.msra.mxu0 0
    %2128 = vmatprep.subr.bf16.mxu0 0
    %2129 = vmatpush2.bf16.msra.mxu0 0
    %2130 = vmatprep.subr.bf16.mxu0 0
    %2131 = vmatpush2.bf16.msra.mxu0 0
    %2132 = vmatprep.subr.bf16.mxu0 0
    %2133 = vmatpush2.bf16.msra.mxu0 0
    %2134 = vmatprep.mubr.bf16.mxu0 0
    %2135 = vmatmul.mubr.bf16.gmra.mxu0 %v2097
    %v2136 = vpop.f32.mrf.mxu0
    %v2137 = vadd.f32 0.0, %v2136
    %v2138 = vpop.f32.mrf.mxu0
    %v2139 = vpop.f32.mrf.mxu0
    %v2140 = vpop.f32.mrf.mxu0
    %2141 = vdwg.mxu0
    %v2142 = vadd.f32 %v1749, %v1815
    %v2143 = vadd.f32 %v1750, %v1861
    %v2144 = vadd.f32 %v1751, %v1907
    %v2145 = vadd.f32 %v1752, %v1953
    %v2146 = vadd.f32 %v1753, %v1999
    %v2147 = vadd.f32 %v1754, %v2045
    %v2148 = vadd.f32 %v1755, %v2091
    %v2149 = vadd.f32 %v1756, %v2137
    %2150 = vst.msk [vmem:[#allocation4] sm:$0xff] %vm1119, %v2142
    %2151 = vst.msk [vmem:[#allocation4 + $0x8] sm:$0xff] %vm1119, %v2143
    %2152 = vst.msk [vmem:[#allocation4 + $0x10] sm:$0xff] %vm1119, %v2144
    %2153 = vst.msk [vmem:[#allocation4 + $0x18] sm:$0xff] %vm1119, %v2145
    %2154 = vst.msk [vmem:[#allocation4 + $0x20] sm:$0xff] %vm1119, %v2146
    %2155 = vst.msk [vmem:[#allocation4 + $0x28] sm:$0xff] %vm1119, %v2147
    %2156 = vst.msk [vmem:[#allocation4 + $0x30] sm:$0xff] %vm1119, %v2148
    %2157 = vst.msk [vmem:[#allocation4 + $0x38] sm:$0xff] %vm1119, %v2149
    %2158 = vst.msk [vmem:[#allocation2] sm:$0xff] %vm1692, %v1548
    %2159 = vst.msk [vmem:[#allocation2 + $0x8] sm:$0xff] %vm1692, %v1549
    %2160 = vst.msk [vmem:[#allocation2 + $0x10] sm:$0xff] %vm1692, %v1550
    %2161 = vst.msk [vmem:[#allocation2 + $0x18] sm:$0xff] %vm1692, %v1551
    %2162 = vst.msk [vmem:[#allocation2 + $0x20] sm:$0xff] %vm1692, %v1552
    %2163 = vst.msk [vmem:[#allocation2 + $0x28] sm:$0xff] %vm1692, %v1553
    %2164 = vst.msk [vmem:[#allocation2 + $0x30] sm:$0xff] %vm1692, %v1554
    %2165 = vst.msk [vmem:[#allocation2 + $0x38] sm:$0xff] %vm1692, %v1555
  $region25: #{gpt_forward.12} parent=0 // pred_fallthru
    _
  // Predicated region
  $region26: #{gpt_forward.12} parent=0 // pred_check
    %p2166 = pneg %p15
  $region27: #{gpt_forward.12} parent=0 // pred_check_branch
    %2168 = sbr.rel (%p2166) target = $region29
  $region28: #{gpt_forward.12} parent=0 // pred_region
    %v2169 = vld [vmem:[#allocation4] sm:$0xff]
    %v2170 = vld [vmem:[#allocation4 + $0x8] sm:$0xff]
    %v2171 = vld [vmem:[#allocation4 + $0x10] sm:$0xff]
    %v2172 = vld [vmem:[#allocation4 + $0x18] sm:$0xff]
    %v2173 = vld [vmem:[#allocation4 + $0x20] sm:$0xff]
    %v2174 = vld [vmem:[#allocation4 + $0x28] sm:$0xff]
    %v2175 = vld [vmem:[#allocation4 + $0x30] sm:$0xff]
    %v2176 = vld [vmem:[#allocation4 + $0x38] sm:$0xff]
    %v2177 = vld [vmem:[#allocation3] sm:$0xff]
    %v2178 = vld [vmem:[#allocation3 + $0x8] sm:$0xff]
    %v2179 = vld [vmem:[#allocation3 + $0x10] sm:$0xff]
    %v2180 = vld [vmem:[#allocation3 + $0x18] sm:$0xff]
    %v2181 = vld [vmem:[#allocation3 + $0x20] sm:$0xff]
    %v2182 = vld [vmem:[#allocation3 + $0x28] sm:$0xff]
    %v2183 = vld [vmem:[#allocation3 + $0x30] sm:$0xff]
    %v2184 = vld [vmem:[#allocation3 + $0x38] sm:$0xff]
    %v2185 = vrcp.pop %v2177
    %v2186 = vrcp.pop %v2178
    %v2187 = vrcp.pop %v2179
    %v2188 = vrcp.pop %v2180
    %v2189 = vrcp.pop %v2181
    %v2190 = vrcp.pop %v2182
    %v2191 = vrcp.pop %v2183
    %v2192 = vrcp.pop %v2184
    %2194 = vset.pattern.permute.xlu0 0
    %2195 = vperm.xlu0 %2194, %v2185
    %v2196 = vpop.permute.xlu0 %2195
    %2199 = vset.pattern.permute.xlu0 0
    %2200 = vperm.xlu0 %2199, %v2186
    %v2201 = vpop.permute.xlu0 %2200
    %2204 = vset.pattern.permute.xlu0 0
    %2205 = vperm.xlu0 %2204, %v2187
    %v2206 = vpop.permute.xlu0 %2205
    %2209 = vset.pattern.permute.xlu0 0
    %2210 = vperm.xlu0 %2209, %v2188
    %v2211 = vpop.permute.xlu0 %2210
    %2214 = vset.pattern.permute.xlu0 0
    %2215 = vperm.xlu0 %2214, %v2189
    %v2216 = vpop.permute.xlu0 %2215
    %2219 = vset.pattern.permute.xlu0 0
    %2220 = vperm.xlu0 %2219, %v2190
    %v2221 = vpop.permute.xlu0 %2220
    %2224 = vset.pattern.permute.xlu0 0
    %2225 = vperm.xlu0 %2224, %v2191
    %v2226 = vpop.permute.xlu0 %2225
    %2229 = vset.pattern.permute.xlu0 0
    %2230 = vperm.xlu0 %2229, %v2192
    %v2231 = vpop.permute.xlu0 %2230
    %v2233 = vmul.f32 %v2169, %v2196
    %v2234 = vmul.f32 %v2170, %v2201
    %v2235 = vmul.f32 %v2171, %v2206
    %v2236 = vmul.f32 %v2172, %v2211
    %v2237 = vmul.f32 %v2173, %v2216
    %v2238 = vmul.f32 %v2174, %v2221
    %v2239 = vmul.f32 %v2175, %v2226
    %v2240 = vmul.f32 %v2176, %v2231
    %v2241 = vpack.c.bf16 %v2233, %v2233
    %v2242 = vpack.c.bf16 %v2234, %v2234
    %v2243 = vpack.c.bf16 %v2235, %v2235
    %v2244 = vpack.c.bf16 %v2236, %v2236
    %v2245 = vpack.c.bf16 %v2237, %v2237
    %v2246 = vpack.c.bf16 %v2238, %v2238
    %v2247 = vpack.c.bf16 %v2239, %v2239
    %v2248 = vpack.c.bf16 %v2240, %v2240
    %vm2249 = vcmask 125952
    %2250 = vst.msk [vmem:[%s3] sm:$0xf] %vm2249, %v2241
    %2251 = vst.msk [vmem:[%s3 + $0x4] sm:$0xf] %vm2249, %v2242
    %2252 = vst.msk [vmem:[%s3 + $0x8] sm:$0xf] %vm2249, %v2243
    %2253 = vst.msk [vmem:[%s3 + $0xc] sm:$0xf] %vm2249, %v2244
    %2254 = vst.msk [vmem:[%s3 + $0x10] sm:$0xf] %vm2249, %v2245
    %2255 = vst.msk [vmem:[%s3 + $0x14] sm:$0xf] %vm2249, %v2246
    %2256 = vst.msk [vmem:[%s3 + $0x18] sm:$0xf] %vm2249, %v2247
    %2257 = vst.msk [vmem:[%s3 + $0x1c] sm:$0xf] %vm2249, %v2248
  $region29: #{gpt_forward.12} parent=0 // pred_fallthru
    _
  // Predicated region
  $region30: #{gpt_forward.12} parent=0 // pred_check
    _
  $region31: #{gpt_forward.12} parent=0 // pred_check_branch
    %2259 = sbr.rel (0) target = $region33
  $region32: #{gpt_forward.12} parent=0 // pred_region
    _
  $region33: #{gpt_forward.12} parent=0 // pred_fallthru
    _
  // Predicated region
  $region34: #{gpt_forward.12} parent=0 // pred_check
    _
  $region35: #{gpt_forward.12} parent=0 // pred_check_branch
    %2261 = sbr.rel (0) target = $region37
  $region36: #{gpt_forward.12} parent=0 // pred_region
    _
  $region37: #{gpt_forward.12} parent=0 // pred_fallthru
    _

// kernel: gpt_forward.15
$region0: #{gpt_forward.15}
  #allocation0 [shape = 'u32[]', space=smem, size = 0x4, offset = 0x4, fixed_abs, tag = 'smem constant byte address 0x4 - core index']
  #allocation1 [shape = 'u32[144,128]{1,0:T(1,128)}', space=vmem, size = 0x12000, scoped, tag = 'internal scratch']
  %s0 = inlined_call_operand.vmem [shape: bf16[16,256], index: 0, kind: input, shape index: {}]
  %s1 = inlined_call_operand.vmem [shape: bf16[256,64], index: 1, kind: input, shape index: {}]
  %s2 = inlined_call_operand.vmem [shape: f32[1,64], index: 2, kind: input, shape index: {}]
  %s3 = inlined_call_operand.vmem [shape: bf16[16,64], index: 3, kind: input, shape index: {}]
  %s4 = inlined_call_operand.vmem [shape: bf16[16,64], index: 4, kind: output, shape index: {}]
  %s5 = sld [smem:[#allocation0]]
  $region26: #{gpt_forward.15} parent=0
    _
  %s7 = ssub.s32 1, %s5
  %s8 = scalar_select 0, %s7, %s5
  // Predicated region
  $region2: #{gpt_forward.15} parent=0 // pred_check
    _
  $region3: #{gpt_forward.15} parent=0 // pred_check_branch
    %10 = sbr.rel (0) target = $region5
  $region4: #{gpt_forward.15} parent=0 // pred_region
    _
  $region5: #{gpt_forward.15} parent=0 // pred_fallthru
    _
  // Predicated region
  $region6: #{gpt_forward.15} parent=0 // pred_check
    _
  $region7: #{gpt_forward.15} parent=0 // pred_check_branch
    %12 = sbr.rel (0) target = $region9
  $region8: #{gpt_forward.15} parent=0 // pred_region
    _
  $region9: #{gpt_forward.15} parent=0 // pred_fallthru
    _
  // Predicated region
  $region10: #{gpt_forward.15} parent=0 // pred_check
    _
  $region11: #{gpt_forward.15} parent=0 // pred_check_branch
    %14 = sbr.rel (0) target = $region13
  $region12: #{gpt_forward.15} parent=0 // pred_region
    _
  $region13: #{gpt_forward.15} parent=0 // pred_fallthru
    _
  // Predicated region
  $region14: #{gpt_forward.15} parent=0 // pred_check
    _
  $region15: #{gpt_forward.15} parent=0 // pred_check_branch
    %16 = sbr.rel (0) target = $region17
  $region16: #{gpt_forward.15} parent=0 // pred_region
    _
  $region17: #{gpt_forward.15} parent=0 // pred_fallthru
    _
  %v18 = vld [vmem:[%s0] sm:$0xff]
  %v19 = vld [vmem:[%s0 + $0x8] sm:$0xff]
  %v20 = vld [vmem:[%s1] sm:$0xf]
  %v21 = vld [vmem:[%s1 + $0x4] sm:$0xf]
  %v22 = vld [vmem:[%s1 + $0x8] sm:$0xf]
  %v23 = vld [vmem:[%s1 + $0xc] sm:$0xf]
  %v24 = vld [vmem:[%s1 + $0x10] sm:$0xf]
  %v25 = vld [vmem:[%s1 + $0x14] sm:$0xf]
  %v26 = vld [vmem:[%s1 + $0x18] sm:$0xf]
  %v27 = vld [vmem:[%s1 + $0x1c] sm:$0xf]
  %v28 = vld [vmem:[%s1 + $0x20] sm:$0xf]
  %v29 = vld [vmem:[%s1 + $0x24] sm:$0xf]
  %v30 = vld [vmem:[%s1 + $0x28] sm:$0xf]
  %v31 = vld [vmem:[%s1 + $0x2c] sm:$0xf]
  %v32 = vld [vmem:[%s1 + $0x30] sm:$0xf]
  %v33 = vld [vmem:[%s1 + $0x34] sm:$0xf]
  %v34 = vld [vmem:[%s1 + $0x38] sm:$0xf]
  %v35 = vld [vmem:[%s1 + $0x3c] sm:$0xf]
  %v36 = vld [vmem:[%s1 + $0x40] sm:$0xf]
  %v37 = vld [vmem:[%s1 + $0x44] sm:$0xf]
  %v38 = vld [vmem:[%s1 + $0x48] sm:$0xf]
  %v39 = vld [vmem:[%s1 + $0x4c] sm:$0xf]
  %v40 = vld [vmem:[%s1 + $0x50] sm:$0xf]
  %v41 = vld [vmem:[%s1 + $0x54] sm:$0xf]
  %v42 = vld [vmem:[%s1 + $0x58] sm:$0xf]
  %v43 = vld [vmem:[%s1 + $0x5c] sm:$0xf]
  %v44 = vld [vmem:[%s1 + $0x60] sm:$0xf]
  %v45 = vld [vmem:[%s1 + $0x64] sm:$0xf]
  %v46 = vld [vmem:[%s1 + $0x68] sm:$0xf]
  %v47 = vld [vmem:[%s1 + $0x6c] sm:$0xf]
  %v48 = vld [vmem:[%s1 + $0x70] sm:$0xf]
  %v49 = vld [vmem:[%s1 + $0x74] sm:$0xf]
  %v50 = vld [vmem:[%s1 + $0x78] sm:$0xf]
  %v51 = vld [vmem:[%s1 + $0x7c] sm:$0xf]
  %v52 = vld [vmem:[%s2] sm:$0x1]
  %v54 = vlaneseq
  %v55 = vshrl.u32 %v54, 7
  %v56 = vsub.s32 0, %v55
  %v57 = vrot.slane %v52, %v56
  %v61 = vunpack.c.l.b16 %v18
  %v62 = vunpack.c.h.b16 %v18
  %v63 = vunpack.c.l.b16 %v19
  %v64 = vunpack.c.h.b16 %v19
  %v65 = vpack.c.b16 %v63, %v61
  %v66 = vpack.c.b16 %v64, %v62
  %v101 = vunpack.c.l.b16 %v20
  %v102 = vunpack.c.l.b16 %v21
  %v103 = vunpack.c.l.b16 %v22
  %v104 = vunpack.c.l.b16 %v23
  %v105 = vunpack.c.l.b16 %v24
  %v106 = vunpack.c.l.b16 %v25
  %v107 = vunpack.c.l.b16 %v26
  %v108 = vunpack.c.l.b16 %v27
  %v109 = vunpack.c.l.b16 %v28
  %v110 = vunpack.c.l.b16 %v29
  %v111 = vunpack.c.l.b16 %v30
  %v112 = vunpack.c.l.b16 %v31
  %v113 = vunpack.c.l.b16 %v32
  %v114 = vunpack.c.l.b16 %v33
  %v115 = vunpack.c.l.b16 %v34
  %v116 = vunpack.c.l.b16 %v35
  %v117 = vunpack.c.l.b16 %v36
  %v118 = vunpack.c.l.b16 %v37
  %v119 = vunpack.c.l.b16 %v38
  %v120 = vunpack.c.l.b16 %v39
  %v121 = vunpack.c.l.b16 %v40
  %v122 = vunpack.c.l.b16 %v41
  %v123 = vunpack.c.l.b16 %v42
  %v124 = vunpack.c.l.b16 %v43
  %v125 = vunpack.c.l.b16 %v44
  %v126 = vunpack.c.l.b16 %v45
  %v127 = vunpack.c.l.b16 %v46
  %v128 = vunpack.c.l.b16 %v47
  %v129 = vunpack.c.l.b16 %v48
  %v130 = vunpack.c.l.b16 %v49
  %v131 = vunpack.c.l.b16 %v50
  %v132 = vunpack.c.l.b16 %v51
  %v133 = vpack.c.b16 %v102, %v101
  %v134 = vpack.c.b16 %v104, %v103
  %v135 = vpack.c.b16 %v106, %v105
  %v136 = vpack.c.b16 %v108, %v107
  %v137 = vpack.c.b16 %v110, %v109
  %v138 = vpack.c.b16 %v112, %v111
  %v139 = vpack.c.b16 %v114, %v113
  %v140 = vpack.c.b16 %v116, %v115
  %v141 = vpack.c.b16 %v118, %v117
  %v142 = vpack.c.b16 %v120, %v119
  %v143 = vpack.c.b16 %v122, %v121
  %v144 = vpack.c.b16 %v124, %v123
  %v145 = vpack.c.b16 %v126, %v125
  %v146 = vpack.c.b16 %v128, %v127
  %v147 = vpack.c.b16 %v130, %v129
  %v148 = vpack.c.b16 %v132, %v131
  %165 = vmatprep.subr.bf16.mxu0 0
  %166 = vmatpush1.bf16.msra.mxu0 %v140
  %167 = vmatprep.subr.bf16.mxu0 0
  %168 = vmatpush1.bf16.msra.mxu0 %v139
  %169 = vmatprep.subr.bf16.mxu0 0
  %170 = vmatpush1.bf16.msra.mxu0 %v138
  %171 = vmatprep.subr.bf16.mxu0 0
  %172 = vmatpush1.bf16.msra.mxu0 %v137
  %173 = vmatprep.subr.bf16.mxu0 0
  %174 = vmatpush1.bf16.msra.mxu0 %v136
  %175 = vmatprep.subr.bf16.mxu0 0
  %176 = vmatpush1.bf16.msra.mxu0 %v135
  %177 = vmatprep.subr.bf16.mxu0 0
  %178 = vmatpush1.bf16.msra.mxu0 %v134
  %179 = vmatprep.subr.bf16.mxu0 0
  %180 = vmatpush1.bf16.msra.mxu0 %v133
  %181 = vmatprep.subr.bf16.mxu0 0
  %182 = vmatpush2.bf16.msra.mxu0 %v148
  %183 = vmatprep.subr.bf16.mxu0 0
  %184 = vmatpush2.bf16.msra.mxu0 %v147
  %185 = vmatprep.subr.bf16.mxu0 0
  %186 = vmatpush2.bf16.msra.mxu0 %v146
  %187 = vmatprep.subr.bf16.mxu0 0
  %188 = vmatpush2.bf16.msra.mxu0 %v145
  %189 = vmatprep.subr.bf16.mxu0 0
  %190 = vmatpush2.bf16.msra.mxu0 %v144
  %191 = vmatprep.subr.bf16.mxu0 0
  %192 = vmatpush2.bf16.msra.mxu0 %v143
  %193 = vmatprep.subr.bf16.mxu0 0
  %194 = vmatpush2.bf16.msra.mxu0 %v142
  %195 = vmatprep.subr.bf16.mxu0 0
  %196 = vmatpush2.bf16.msra.mxu0 %v141
  %197 = vmatprep.mubr.bf16.mxu0 %v66
  %198 = vmatmul.mubr.bf16.gmra.mxu0 %v65
  %v199 = vpop.f32.mrf.mxu0
  %v200 = vadd.f32 %v57, %v199
  %v201 = vpop.f32.mrf.mxu0
  %v202 = vpop.f32.mrf.mxu0
  %v203 = vadd.f32 %v57, %v202
  %v204 = vpop.f32.mrf.mxu0
  %205 = vdwg.mxu0
  %v206 = vld [vmem:[%s3] sm:$0xf]
  %v207 = vld [vmem:[%s3 + $0x4] sm:$0xf]
  %v208 = vunpack.c.l.bf16 %v206
  %v209 = vunpack.c.l.bf16 %v207
  %v210 = vadd.f32 %v200, %v208
  %v211 = vadd.f32 %v203, %v209
  %v212 = vpack.c.bf16 %v211, %v210
  %v214 = vunpack.c.l.b16 %v212
  %v215 = vunpack.c.h.b16 %v212
  %v216 = vpack.c.b16 %v214, %v214
  %v217 = vpack.c.b16 %v215, %v215
  %vm220 = vcmask 519168
  %221 = vst.msk [vmem:[%s4] sm:$0xf] %vm220, %v216
  %222 = vst.msk [vmem:[%s4 + $0x4] sm:$0xf] %vm220, %v217
  // Predicated region
  $region18: #{gpt_forward.15} parent=0 // pred_check
    _
  $region19: #{gpt_forward.15} parent=0 // pred_check_branch
    %224 = sbr.rel (0) target = $region21
  $region20: #{gpt_forward.15} parent=0 // pred_region
    _
  $region21: #{gpt_forward.15} parent=0 // pred_fallthru
    _
  // Predicated region
  $region22: #{gpt_forward.15} parent=0 // pred_check
    _
  $region23: #{gpt_forward.15} parent=0 // pred_check_branch
    %226 = sbr.rel (0) target = $region25
  $region24: #{gpt_forward.15} parent=0 // pred_region
    _
  $region25: #{gpt_forward.15} parent=0 // pred_fallthru
    _

// kernel: gpt_forward.21
$region0: #{gpt_forward.21}
  #allocation0 [shape = 'u32[]', space=smem, size = 0x4, offset = 0x4, fixed_abs, tag = 'smem constant byte address 0x4 - core index']
  #allocation1 [shape = 'u32[144,128]{1,0:T(1,128)}', space=vmem, size = 0x12000, scoped, tag = 'internal scratch']
  %s0 = inlined_call_operand.vmem [shape: bf16[16,64], index: 0, kind: input, shape index: {}]
  %s1 = inlined_call_operand.vmem [shape: f32[1,64], index: 1, kind: input, shape index: {}]
  %s2 = inlined_call_operand.vmem [shape: f32[1,64], index: 2, kind: input, shape index: {}]
  %s3 = inlined_call_operand.vmem [shape: bf16[512,64], index: 3, kind: input, shape index: {}]
  %s4 = inlined_call_operand.hbm [shape: f32[16,512], index: 4, kind: output, shape index: {}]
  %s5 = sld [smem:[#allocation0]]
  $region26: #{gpt_forward.21} parent=0
    _
  %s7 = ssub.s32 1, %s5
  %s8 = scalar_select 0, %s7, %s5
  $region1: #{gpt_forward.21} parent=0
    #allocation2 [shape = 'u8[32768]{0}', space=vmem, size = 0x8000, scoped, tag = 'output window, operand 0, single buffered']
    #allocation3 [shape = 's32[1]{0}', space=sflag, size = 0x4, scoped, tag = 'scoped memory for gpt_forward.21']
    %9 = vsyncpa [#allocation3], 0
    // Predicated region
    $region2: #{gpt_forward.21} parent=1 // pred_check
      _
    $region3: #{gpt_forward.21} parent=1 // pred_check_branch
      %11 = sbr.rel (0) target = $region5
    $region4: #{gpt_forward.21} parent=1 // pred_region
      _
    $region5: #{gpt_forward.21} parent=1 // pred_fallthru
      _
    // Predicated region
    $region6: #{gpt_forward.21} parent=1 // pred_check
      _
    $region7: #{gpt_forward.21} parent=1 // pred_check_branch
      %13 = sbr.rel (0) target = $region9
    $region8: #{gpt_forward.21} parent=1 // pred_region
      _
    $region9: #{gpt_forward.21} parent=1 // pred_fallthru
      _
    // Predicated region
    $region10: #{gpt_forward.21} parent=1 // pred_check
      _
    $region11: #{gpt_forward.21} parent=1 // pred_check_branch
      %15 = sbr.rel (0) target = $region13
    $region12: #{gpt_forward.21} parent=1 // pred_region
      _
    $region13: #{gpt_forward.21} parent=1 // pred_fallthru
      _
    // Predicated region
    $region14: #{gpt_forward.21} parent=1 // pred_check
      _
    $region15: #{gpt_forward.21} parent=1 // pred_check_branch
      %17 = sbr.rel (0) target = $region17
    $region16: #{gpt_forward.21} parent=1 // pred_region
      _
    $region17: #{gpt_forward.21} parent=1 // pred_fallthru
      _
    %v19 = vld [vmem:[%s0] sm:$0xf]
    %v20 = vld [vmem:[%s0 + $0x4] sm:$0xf]
    %v21 = vunpack.c.l.bf16 %v19
    %v22 = vunpack.c.l.bf16 %v20
    %vm23 = vcmask 523264
    %v24 = vsel %vm23, %v21, 0.0
    %25 = vadd.xlane.f32.xlu0 %v24
    %v26 = vpop.xlane.xlu0 %25
    %v27 = vsel %vm23, %v22, 0.0
    %28 = vadd.xlane.f32.xlu0 %v27
    %v29 = vpop.xlane.xlu0 %28
    %v30 = vrcp.pop 64.0
    %v31 = vmul.f32 %v26, %v30
    %v32 = vmul.f32 %v29, %v30
    %v33 = vsub.f32 %v21, %v31
    %v34 = vsub.f32 %v22, %v32
    %v35 = vmul.f32 %v33, %v33
    %v36 = vmul.f32 %v34, %v34
    %v37 = vsel %vm23, %v35, 0.0
    %38 = vadd.xlane.f32.xlu0 %v37
    %v39 = vpop.xlane.xlu0 %38
    %v40 = vsel %vm23, %v36, 0.0
    %41 = vadd.xlane.f32.xlu0 %v40
    %v42 = vpop.xlane.xlu0 %41
    %v43 = vmul.f32 %v39, %v30
    %v44 = vmul.f32 %v42, %v30
    %v45 = vadd.f32 %v43, 1e-05
    %v46 = vadd.f32 %v44, 1e-05
    %v47 = vrsqrt.pop %v45
    %v48 = vrsqrt.pop %v46
    %v49 = vmul.f32 %v33, %v47
    %v50 = vmul.f32 %v34, %v48
    %v51 = vld [vmem:[%s1] sm:$0x1]
    %v53 = vlaneseq
    %v54 = vshrl.u32 %v53, 7
    %v55 = vsub.s32 0, %v54
    %v56 = vrot.slane %v51, %v55
    %v58 = vmul.f32 %v49, %v56
    %v59 = vmul.f32 %v50, %v56
    %v60 = vld [vmem:[%s2] sm:$0x1]
    %v62 = vlaneseq
    %v63 = vshrl.u32 %v62, 7
    %v64 = vsub.s32 0, %v63
    %v65 = vrot.slane %v60, %v64
    %v67 = vadd.f32 %v58, %v65
    %v68 = vadd.f32 %v59, %v65
    %v69 = vpack.c.bf16 %v68, %v67
    %v70 = vld [vmem:[%s3] sm:$0xf]
    %v71 = vld [vmem:[%s3 + $0x4] sm:$0xf]
    %v72 = vld [vmem:[%s3 + $0x8] sm:$0xf]
    %v73 = vld [vmem:[%s3 + $0xc] sm:$0xf]
    %v74 = vld [vmem:[%s3 + $0x10] sm:$0xf]
    %v75 = vld [vmem:[%s3 + $0x14] sm:$0xf]
    %v76 = vld [vmem:[%s3 + $0x18] sm:$0xf]
    %v77 = vld [vmem:[%s3 + $0x1c] sm:$0xf]
    %v78 = vld [vmem:[%s3 + $0x20] sm:$0xf]
    %v79 = vld [vmem:[%s3 + $0x24] sm:$0xf]
    %v80 = vld [vmem:[%s3 + $0x28] sm:$0xf]
    %v81 = vld [vmem:[%s3 + $0x2c] sm:$0xf]
    %v82 = vld [vmem:[%s3 + $0x30] sm:$0xf]
    %v83 = vld [vmem:[%s3 + $0x34] sm:$0xf]
    %v84 = vld [vmem:[%s3 + $0x38] sm:$0xf]
    %v85 = vld [vmem:[%s3 + $0x3c] sm:$0xf]
    %v86 = vld [vmem:[%s3 + $0x40] sm:$0xf]
    %v87 = vld [vmem:[%s3 + $0x44] sm:$0xf]
    %v88 = vld [vmem:[%s3 + $0x48] sm:$0xf]
    %v89 = vld [vmem:[%s3 + $0x4c] sm:$0xf]
    %v90 = vld [vmem:[%s3 + $0x50] sm:$0xf]
    %v91 = vld [vmem:[%s3 + $0x54] sm:$0xf]
    %v92 = vld [vmem:[%s3 + $0x58] sm:$0xf]
    %v93 = vld [vmem:[%s3 + $0x5c] sm:$0xf]
    %v94 = vld [vmem:[%s3 + $0x60] sm:$0xf]
    %v95 = vld [vmem:[%s3 + $0x64] sm:$0xf]
    %v96 = vld [vmem:[%s3 + $0x68] sm:$0xf]
    %v97 = vld [vmem:[%s3 + $0x6c] sm:$0xf]
    %v98 = vld [vmem:[%s3 + $0x70] sm:$0xf]
    %v99 = vld [vmem:[%s3 + $0x74] sm:$0xf]
    %v100 = vld [vmem:[%s3 + $0x78] sm:$0xf]
    %v101 = vld [vmem:[%s3 + $0x7c] sm:$0xf]
    %v102 = vld [vmem:[%s3 + $0x80] sm:$0xf]
    %v103 = vld [vmem:[%s3 + $0x84] sm:$0xf]
    %v104 = vld [vmem:[%s3 + $0x88] sm:$0xf]
    %v105 = vld [vmem:[%s3 + $0x8c] sm:$0xf]
    %v106 = vld [vmem:[%s3 + $0x90] sm:$0xf]
    %v107 = vld [vmem:[%s3 + $0x94] sm:$0xf]
    %v108 = vld [vmem:[%s3 + $0x98] sm:$0xf]
    %v109 = vld [vmem:[%s3 + $0x9c] sm:$0xf]
    %v110 = vld [vmem:[%s3 + $0xa0] sm:$0xf]
    %v111 = vld [vmem:[%s3 + $0xa4] sm:$0xf]
    %v112 = vld [vmem:[%s3 + $0xa8] sm:$0xf]
    %v113 = vld [vmem:[%s3 + $0xac] sm:$0xf]
    %v114 = vld [vmem:[%s3 + $0xb0] sm:$0xf]
    %v115 = vld [vmem:[%s3 + $0xb4] sm:$0xf]
    %v116 = vld [vmem:[%s3 + $0xb8] sm:$0xf]
    %v117 = vld [vmem:[%s3 + $0xbc] sm:$0xf]
    %v118 = vld [vmem:[%s3 + $0xc0] sm:$0xf]
    %v119 = vld [vmem:[%s3 + $0xc4] sm:$0xf]
    %v120 = vld [vmem:[%s3 + $0xc8] sm:$0xf]
    %v121 = vld [vmem:[%s3 + $0xcc] sm:$0xf]
    %v122 = vld [vmem:[%s3 + $0xd0] sm:$0xf]
    %v123 = vld [vmem:[%s3 + $0xd4] sm:$0xf]
    %v124 = vld [vmem:[%s3 + $0xd8] sm:$0xf]
    %v125 = vld [vmem:[%s3 + $0xdc] sm:$0xf]
    %v126 = vld [vmem:[%s3 + $0xe0] sm:$0xf]
    %v127 = vld [vmem:[%s3 + $0xe4] sm:$0xf]
    %v128 = vld [vmem:[%s3 + $0xe8] sm:$0xf]
    %v129 = vld [vmem:[%s3 + $0xec] sm:$0xf]
    %v130 = vld [vmem:[%s3 + $0xf0] sm:$0xf]
    %v131 = vld [vmem:[%s3 + $0xf4] sm:$0xf]
    %v132 = vld [vmem:[%s3 + $0xf8] sm:$0xf]
    %v133 = vld [vmem:[%s3 + $0xfc] sm:$0xf]
    %v198 = vunpack.c.l.b16 %v70
    %v199 = vunpack.c.l.b16 %v71
    %v200 = vunpack.c.l.b16 %v72
    %v201 = vunpack.c.l.b16 %v73
    %v202 = vunpack.c.l.b16 %v74
    %v203 = vunpack.c.l.b16 %v75
    %v204 = vunpack.c.l.b16 %v76
    %v205 = vunpack.c.l.b16 %v77
    %v206 = vunpack.c.l.b16 %v78
    %v207 = vunpack.c.l.b16 %v79
    %v208 = vunpack.c.l.b16 %v80
    %v209 = vunpack.c.l.b16 %v81
    %v210 = vunpack.c.l.b16 %v82
    %v211 = vunpack.c.l.b16 %v83
    %v212 = vunpack.c.l.b16 %v84
    %v213 = vunpack.c.l.b16 %v85
    %v214 = vunpack.c.l.b16 %v86
    %v215 = vunpack.c.l.b16 %v87
    %v216 = vunpack.c.l.b16 %v88
    %v217 = vunpack.c.l.b16 %v89
    %v218 = vunpack.c.l.b16 %v90
    %v219 = vunpack.c.l.b16 %v91
    %v220 = vunpack.c.l.b16 %v92
    %v221 = vunpack.c.l.b16 %v93
    %v222 = vunpack.c.l.b16 %v94
    %v223 = vunpack.c.l.b16 %v95
    %v224 = vunpack.c.l.b16 %v96
    %v225 = vunpack.c.l.b16 %v97
    %v226 = vunpack.c.l.b16 %v98
    %v227 = vunpack.c.l.b16 %v99
    %v228 = vunpack.c.l.b16 %v100
    %v229 = vunpack.c.l.b16 %v101
    %v230 = vunpack.c.l.b16 %v102
    %v231 = vunpack.c.l.b16 %v103
    %v232 = vunpack.c.l.b16 %v104
    %v233 = vunpack.c.l.b16 %v105
    %v234 = vunpack.c.l.b16 %v106
    %v235 = vunpack.c.l.b16 %v107
    %v236 = vunpack.c.l.b16 %v108
    %v237 = vunpack.c.l.b16 %v109
    %v238 = vunpack.c.l.b16 %v110
    %v239 = vunpack.c.l.b16 %v111
    %v240 = vunpack.c.l.b16 %v112
    %v241 = vunpack.c.l.b16 %v113
    %v242 = vunpack.c.l.b16 %v114
    %v243 = vunpack.c.l.b16 %v115
    %v244 = vunpack.c.l.b16 %v116
    %v245 = vunpack.c.l.b16 %v117
    %v246 = vunpack.c.l.b16 %v118
    %v247 = vunpack.c.l.b16 %v119
    %v248 = vunpack.c.l.b16 %v120
    %v249 = vunpack.c.l.b16 %v121
    %v250 = vunpack.c.l.b16 %v122
    %v251 = vunpack.c.l.b16 %v123
    %v252 = vunpack.c.l.b16 %v124
    %v253 = vunpack.c.l.b16 %v125
    %v254 = vunpack.c.l.b16 %v126
    %v255 = vunpack.c.l.b16 %v127
    %v256 = vunpack.c.l.b16 %v128
    %v257 = vunpack.c.l.b16 %v129
    %v258 = vunpack.c.l.b16 %v130
    %v259 = vunpack.c.l.b16 %v131
    %v260 = vunpack.c.l.b16 %v132
    %v261 = vunpack.c.l.b16 %v133
    %v262 = vpack.c.b16 %v199, %v198
    %v263 = vpack.c.b16 %v201, %v200
    %v264 = vpack.c.b16 %v203, %v202
    %v265 = vpack.c.b16 %v205, %v204
    %v266 = vpack.c.b16 %v207, %v206
    %v267 = vpack.c.b16 %v209, %v208
    %v268 = vpack.c.b16 %v211, %v210
    %v269 = vpack.c.b16 %v213, %v212
    %v270 = vpack.c.b16 %v215, %v214
    %v271 = vpack.c.b16 %v217, %v216
    %v272 = vpack.c.b16 %v219, %v218
    %v273 = vpack.c.b16 %v221, %v220
    %v274 = vpack.c.b16 %v223, %v222
    %v275 = vpack.c.b16 %v225, %v224
    %v276 = vpack.c.b16 %v227, %v226
    %v277 = vpack.c.b16 %v229, %v228
    %v278 = vpack.c.b16 %v231, %v230
    %v279 = vpack.c.b16 %v233, %v232
    %v280 = vpack.c.b16 %v235, %v234
    %v281 = vpack.c.b16 %v237, %v236
    %v282 = vpack.c.b16 %v239, %v238
    %v283 = vpack.c.b16 %v241, %v240
    %v284 = vpack.c.b16 %v243, %v242
    %v285 = vpack.c.b16 %v245, %v244
    %v286 = vpack.c.b16 %v247, %v246
    %v287 = vpack.c.b16 %v249, %v248
    %v288 = vpack.c.b16 %v251, %v250
    %v289 = vpack.c.b16 %v253, %v252
    %v290 = vpack.c.b16 %v255, %v254
    %v291 = vpack.c.b16 %v257, %v256
    %v292 = vpack.c.b16 %v259, %v258
    %v293 = vpack.c.b16 %v261, %v260
    %v295 = vsel %vm23, %v69, 0
    %v298 = vsel %vm23, %v262, 0
    %v301 = vsel %vm23, %v263, 0
    %v304 = vsel %vm23, %v264, 0
    %v307 = vsel %vm23, %v265, 0
    %v310 = vsel %vm23, %v266, 0
    %v313 = vsel %vm23, %v267, 0
    %v316 = vsel %vm23, %v268, 0
    %v319 = vsel %vm23, %v269, 0
    %v322 = vsel %vm23, %v270, 0
    %v325 = vsel %vm23, %v271, 0
    %v328 = vsel %vm23, %v272, 0
    %v331 = vsel %vm23, %v273, 0
    %v334 = vsel %vm23, %v274, 0
    %v337 = vsel %vm23, %v275, 0
    %v340 = vsel %vm23, %v276, 0
    %v343 = vsel %vm23, %v277, 0
    %v346 = vsel %vm23, %v278, 0
    %v349 = vsel %vm23, %v279, 0
    %v352 = vsel %vm23, %v280, 0
    %v355 = vsel %vm23, %v281, 0
    %v358 = vsel %vm23, %v282, 0
    %v361 = vsel %vm23, %v283, 0
    %v364 = vsel %vm23, %v284, 0
    %v367 = vsel %vm23, %v285, 0
    %v370 = vsel %vm23, %v286, 0
    %v373 = vsel %vm23, %v287, 0
    %v376 = vsel %vm23, %v288, 0
    %v379 = vsel %vm23, %v289, 0
    %v382 = vsel %vm23, %v290, 0
    %v385 = vsel %vm23, %v291, 0
    %v388 = vsel %vm23, %v292, 0
    %v391 = vsel %vm23, %v293, 0
    %393 = vmatprep.subr.bf16.mxu0 0
    %394 = vmatpush1.bf16.xpose.msra.mxu0 %v319
    %395 = vmatprep.subr.bf16.mxu0 0
    %396 = vmatpush1.bf16.xpose.msra.mxu0 %v316
    %397 = vmatprep.subr.bf16.mxu0 0
    %398 = vmatpush1.bf16.xpose.msra.mxu0 %v313
    %399 = vmatprep.subr.bf16.mxu0 0
    %400 = vmatpush1.bf16.xpose.msra.mxu0 %v310
    %401 = vmatprep.subr.bf16.mxu0 0
    %402 = vmatpush1.bf16.xpose.msra.mxu0 %v307
    %403 = vmatprep.subr.bf16.mxu0 0
    %404 = vmatpush1.bf16.xpose.msra.mxu0 %v304
    %405 = vmatprep.subr.bf16.mxu0 0
    %406 = vmatpush1.bf16.xpose.msra.mxu0 %v301
    %407 = vmatprep.subr.bf16.mxu0 0
    %408 = vmatpush1.bf16.xpose.msra.mxu0 %v298
    %409 = vmatprep.subr.bf16.mxu0 0
    %410 = vmatpush2.bf16.xpose.msra.mxu0 %v343
    %411 = vmatprep.subr.bf16.mxu0 0
    %412 = vmatpush2.bf16.xpose.msra.mxu0 %v340
    %413 = vmatprep.subr.bf16.mxu0 0
    %414 = vmatpush2.bf16.xpose.msra.mxu0 %v337
    %415 = vmatprep.subr.bf16.mxu0 0
    %416 = vmatpush2.bf16.xpose.msra.mxu0 %v334
    %417 = vmatprep.subr.bf16.mxu0 0
    %418 = vmatpush2.bf16.xpose.msra.mxu0 %v331
    %419 = vmatprep.subr.bf16.mxu0 0
    %420 = vmatpush2.bf16.xpose.msra.mxu0 %v328
    %421 = vmatprep.subr.bf16.mxu0 0
    %422 = vmatpush2.bf16.xpose.msra.mxu0 %v325
    %423 = vmatprep.subr.bf16.mxu0 0
    %424 = vmatpush2.bf16.xpose.msra.mxu0 %v322
    %425 = vmatprep.mubr.bf16.mxu0 0
    %426 = vmatmul.mubr.bf16.gmra.mxu0 %v295
    %v427 = vpop.f32.mrf.mxu0
    %v428 = vadd.f32 0.0, %v427
    %v429 = vpop.f32.mrf.mxu0
    %v430 = vadd.f32 0.0, %v429
    %v431 = vpop.f32.mrf.mxu0
    %v432 = vadd.f32 0.0, %v431
    %v433 = vpop.f32.mrf.mxu0
    %v434 = vadd.f32 0.0, %v433
    %435 = vdwg.mxu0
    %436 = vmatprep.subr.bf16.mxu0 0
    %437 = vmatpush1.bf16.xpose.msra.mxu0 %v367
    %438 = vmatprep.subr.bf16.mxu0 0
    %439 = vmatpush1.bf16.xpose.msra.mxu0 %v364
    %440 = vmatprep.subr.bf16.mxu0 0
    %441 = vmatpush1.bf16.xpose.msra.mxu0 %v361
    %442 = vmatprep.subr.bf16.mxu0 0
    %443 = vmatpush1.bf16.xpose.msra.mxu0 %v358
    %444 = vmatprep.subr.bf16.mxu0 0
    %445 = vmatpush1.bf16.xpose.msra.mxu0 %v355
    %446 = vmatprep.subr.bf16.mxu0 0
    %447 = vmatpush1.bf16.xpose.msra.mxu0 %v352
    %448 = vmatprep.subr.bf16.mxu0 0
    %449 = vmatpush1.bf16.xpose.msra.mxu0 %v349
    %450 = vmatprep.subr.bf16.mxu0 0
    %451 = vmatpush1.bf16.xpose.msra.mxu0 %v346
    %452 = vmatprep.subr.bf16.mxu0 0
    %453 = vmatpush2.bf16.xpose.msra.mxu0 %v391
    %454 = vmatprep.subr.bf16.mxu0 0
    %455 = vmatpush2.bf16.xpose.msra.mxu0 %v388
    %456 = vmatprep.subr.bf16.mxu0 0
    %457 = vmatpush2.bf16.xpose.msra.mxu0 %v385
    %458 = vmatprep.subr.bf16.mxu0 0
    %459 = vmatpush2.bf16.xpose.msra.mxu0 %v382
    %460 = vmatprep.subr.bf16.mxu0 0
    %461 = vmatpush2.bf16.xpose.msra.mxu0 %v379
    %462 = vmatprep.subr.bf16.mxu0 0
    %463 = vmatpush2.bf16.xpose.msra.mxu0 %v376
    %464 = vmatprep.subr.bf16.mxu0 0
    %465 = vmatpush2.bf16.xpose.msra.mxu0 %v373
    %466 = vmatprep.subr.bf16.mxu0 0
    %467 = vmatpush2.bf16.xpose.msra.mxu0 %v370
    %468 = vmatprep.mubr.bf16.mxu0 0
    %469 = vmatmul.mubr.bf16.gmra.mxu0 %v295
    %v470 = vpop.f32.mrf.mxu0
    %v471 = vadd.f32 0.0, %v470
    %v472 = vpop.f32.mrf.mxu0
    %v473 = vadd.f32 0.0, %v472
    %v474 = vpop.f32.mrf.mxu0
    %v475 = vadd.f32 0.0, %v474
    %v476 = vpop.f32.mrf.mxu0
    %v477 = vadd.f32 0.0, %v476
    %478 = vdwg.mxu0
    %479 = vst [vmem:[#allocation2] sm:$0xff] %v428
    %480 = vst [vmem:[#allocation2 + $0x8] sm:$0xff] %v430
    %481 = vst [vmem:[#allocation2 + $0x10] sm:$0xff] %v471
    %482 = vst [vmem:[#allocation2 + $0x18] sm:$0xff] %v473
    %483 = vst [vmem:[#allocation2 + $0x20] sm:$0xff] %v432
    %484 = vst [vmem:[#allocation2 + $0x28] sm:$0xff] %v434
    %485 = vst [vmem:[#allocation2 + $0x30] sm:$0xff] %v475
    %486 = vst [vmem:[#allocation2 + $0x38] sm:$0xff] %v477
    // Predicated region
    $region18: #{gpt_forward.21} parent=1 // pred_check
      _
    $region19: #{gpt_forward.21} parent=1 // pred_check_branch
      %488 = sbr.rel (0) target = $region21
    $region20: #{gpt_forward.21} parent=1 // pred_region
      %s490 = ssub.s32 1024, 1024
      %491 = vsyncadd [#allocation3], %s490
      %s492 = sshll.u32 [#allocation2], 4
      %s493 = int_to_ptr.vmem [resolvable:$true] %s492
      %498 = dma.vmem_to_hbm [thread:$0]  %s493, 1024, %s4, [#allocation3], 512, 512, 32
    $region21: #{gpt_forward.21} parent=1 // pred_fallthru
      _
    // Predicated region
    $region22: #{gpt_forward.21} parent=1 // pred_check
      _
    $region23: #{gpt_forward.21} parent=1 // pred_check_branch
      %500 = sbr.rel (0) target = $region25
    $region24: #{gpt_forward.21} parent=1 // pred_region
      %501 = dma.done [#allocation3], 1024
    $region25: #{gpt_forward.21} parent=1 // pred_fallthru
      _
    %502 = vsyncpa [#allocation3], 1

</llo_original>
